<compile_context>
chip_gen: v7x
topology: tpu7x:2x2x1
jax: 0.10.0
libtpu: 0.0.40
codegen_flags: <defaults>
</compile_context>

<pallas_src>
import functools

import jax
import jax.numpy as jnp
from jax.experimental import pallas as pl
from jax.experimental.pallas import tpu as pltpu

BN_EPS = 1e-5


def _cdiv(a, b):
    return -(-a // b)


def _round_up(x, m):
    return _cdiv(x, m) * m


@functools.lru_cache(maxsize=None)
def _tpu_hw_info():
    """Best-effort (VMEM bytes, TensorCores per chip) with safe fallbacks."""
    vmem_bytes = 64 * 1024 * 1024          # conservative default (v7x per-TC)
    num_cores = 1
    try:
        info = pltpu.get_tpu_info()
        v = int(getattr(info, "vmem_capacity_bytes", 0) or 0)
        if v > 0:
            vmem_bytes = v
        for name in ("num_tensorcores", "tensorcores_per_chip",
                     "num_cores", "cores_per_chip"):
            c = getattr(info, name, None)
            if c:
                num_cores = int(c)
                break
    except Exception:
        pass  # non-TPU trace / older jax: keep conservative defaults
    return vmem_bytes, max(1, num_cores)


def _tile_plan(batch, seq_len, dim, hidden, num_cores, vmem_limit,
               block_batch=None, target_tile_bytes=4 << 20, max_m_rows=4096):
    """Pick TB (batch rows per grid step), grid steps, and the padded batch."""
    if block_batch is None:
        bytes_per_m_row = (dim * 4 * 2                        # a tile, dbl-buffered f32
                           + 3 * dim * 2                      # packed bf16 lhs (<= 3D)
                           + 4 * _round_up(hidden, 128) * 4)  # f32 score/Dice temps
        m_rows = min(
            max(8, target_tile_bytes // max(dim * 4, 1)),     # ~4 MiB input_a tile
            max_m_rows,                                       # cap the folded M dim
            max(8 * seq_len, (vmem_limit // 2) // bytes_per_m_row))
        tb = max(1, m_rows // max(seq_len, 1))
        if num_cores >= 2:
            # Keep >= num_cores "parallel" grid steps so every TensorCore works.
            tb = min(tb, _cdiv(batch, num_cores))
        tb = min(tb, batch)
    else:
        tb = block_batch
    tb = _round_up(max(tb, 1), 8)             # sublane-aligned (TB, D) output block
    steps = _cdiv(batch, tb)
    if num_cores >= 2 and steps > 1:
        steps = _round_up(steps, num_cores)   # balanced across TensorCores
    return tb, steps, steps * tb


def _fuse_kernel(a_ref, b_ref, w_main_ref, *rest, block_batch, seq_len, len_b,
                 weight_norm, compute_dtype):
    if len_b == 1:
        (w_b_ref, bn_scale_ref, bn_shift_ref, alpha_ref, b1_ref, w2_ref,
         b2_ref, out_ref) = rest
    else:
        (bn_scale_ref, bn_shift_ref, alpha_ref, b1_ref, w2_ref,
         b2_ref, out_ref) = rest

    TB, L = block_batch, seq_len
    H = w_main_ref.shape[-1]
    a3 = a_ref[...].astype(jnp.float32)                        # (TB, L, D)
    D = a3.shape[-1]
    M = TB * L
    a2 = a3.reshape(M, D)

    # Linear(4D -> H) with the feature concat folded into stacked weights:
    #   cat([a, b, a-b, a*b]) @ W1 == a@(W1a+W1c) + b@(W1b-W1c) + (a*b)@W1d
    if len_b == 1:
        b3 = b_ref[...].astype(jnp.float32)                    # (TB, 1, D)
        # Only the a*b Hadamard term needs the broadcast of input_b.
        ab2 = (a3 * jnp.broadcast_to(b3, a3.shape)).reshape(M, D)
        lhs = jnp.concatenate([a2, ab2], axis=-1).astype(compute_dtype)   # (M, 2D)
        score = jnp.dot(lhs, w_main_ref[...],
                        preferred_element_type=jnp.float32).reshape(TB, L, H)
        # b @ (W1b - W1c) computed once per example (M = TB, not TB*L) and
        # sublane-broadcast over the sequence axis.
        score_b = jnp.dot(b3.reshape(TB, D).astype(compute_dtype), w_b_ref[...],
                          preferred_element_type=jnp.float32)             # (TB, H)
        score = score + jnp.broadcast_to(score_b[:, None, :], score.shape)
    else:
        b3 = b_ref[...].astype(jnp.float32)                    # (TB, L, D)
        b2d = b3.reshape(M, D)
        lhs = jnp.concatenate([a2, b2d, a2 * b2d],
                              axis=-1).astype(compute_dtype)              # (M, 3D)
        score = jnp.dot(lhs, w_main_ref[...],
                        preferred_element_type=jnp.float32).reshape(TB, L, H)

    score = score + b1_ref[...]                                # (+ (1,1,H) bias)

    # Dice: eval-mode BN over the L axis folded into (1, L, H) scale/shift;
    # gate p*x + alpha*(1-p)*x rewritten exactly as x*(alpha + p*(1-alpha)).
    normed = score * bn_scale_ref[...] + bn_shift_ref[...]
    p = jax.nn.sigmoid(normed)
    alpha = alpha_ref[...]                                     # (1, 1, H)
    score = score * (alpha + p * (1.0 - alpha))                # (TB, L, H)

    # Linear(H -> 1) as a VPU multiply + lane reduce (no N=1 MXU matmul).
    s = jnp.sum(score * w2_ref[...], axis=-1, keepdims=True) + b2_ref[0]  # (TB,L,1)

    if weight_norm:
        # TODO(synk): PyTorch's legacy F.softmax(dim=None) picks dim=0 on 3-D
        # inputs; we apply it over the intended attention axis (the sequence L).
        s = jax.nn.softmax(s * 0.5, axis=1)

    # Score-weighted reduce over L replaces the per-example (1,L)@(L,D) matmul.
    out_ref[...] = jnp.sum(s * a3, axis=1).astype(out_ref.dtype)          # (TB, D)
    # TODO(synk): lane-dense (1, TB*D) output repack skipped on purpose: output
    # bytes are tiny vs. the input_a read and the (TB,D)->(1,TB*D) in-kernel
    # relayout would add an XLU pass per step.


def fuse_layer_forward(input_a, input_b, params, *, weight_norm=False,
                       block_batch=None, compute_dtype=jnp.bfloat16):
    """JAX/Pallas equivalent of FuseLayer.forward([input_a, input_b])."""
    input_a = jnp.asarray(input_a)
    input_b = jnp.asarray(input_b)
    # Keep bf16 inputs as-is (halves the dominant HBM read); everything else
    # runs as f32. Elementwise math inside the kernel is always f32.
    if input_a.dtype != jnp.bfloat16:
        input_a = input_a.astype(jnp.float32)
    if input_b.dtype != jnp.bfloat16:
        input_b = input_b.astype(jnp.float32)

    if input_b.ndim == 2:
        input_b = input_b[:, None, :]
    B, L, D = input_a.shape
    len_b = input_b.shape[1]
    assert len_b in (L, 1), "len_b should be equal with len_a, or 1"
    # NOTE: input_b is NOT broadcast-materialized in HBM when it is (B, 1, D).

    w1 = params["w1"].astype(jnp.float32)                      # (4D, H)
    H = w1.shape[1]

    vmem_bytes, num_cores = _tpu_hw_info()
    # 32..48 MiB: above the per-step need, below physical VMEM on all gens.
    vmem_limit = int(max(32 << 20, min(int(vmem_bytes * 0.7), 48 << 20)))
    TB, steps, B_pad = _tile_plan(B, L, D, H, num_cores, vmem_limit,
                                  block_batch=block_batch)

    if B_pad != B:     # pad awkward batch sizes instead of degrading TB
        pad = ((0, B_pad - B), (0, 0), (0, 0))
        input_a = jnp.pad(input_a, pad)
        input_b = jnp.pad(input_b, pad)

    # --- host-side, TB-independent parameter folding -------------------------
    w1a, w1b, w1c, w1d = w1[0:D], w1[D:2 * D], w1[2 * D:3 * D], w1[3 * D:4 * D]
    w1_a, w1_b, w1_ab = w1a + w1c, w1b - w1c, w1d              # (D, H) each
    if len_b == 1:
        w_main = jnp.concatenate([w1_a, w1_ab], 0).astype(compute_dtype)  # (2D, H)
        w_b = w1_b.astype(compute_dtype)                                  # (D, H)
    else:
        w_main = jnp.concatenate([w1_a, w1_b, w1_ab],
                                 0).astype(compute_dtype)                 # (3D, H)
        w_b = None

    b1 = params["b1"].reshape(1, 1, H).astype(jnp.float32)
    # Eval-mode BatchNorm1d(num_features=L) folded into lane-dense (1, L, H)
    # scale/shift — TB-independent, a few KiB in VMEM.
    scale = (params["bn_gamma"] /
             jnp.sqrt(params["bn_var"] + BN_EPS)).astype(jnp.float32)     # (L,)
    shift = (params["bn_beta"] - params["bn_mean"] * scale).astype(jnp.float32)
    bn_scale = jnp.broadcast_to(scale[:, None], (L, H))[None].astype(jnp.float32)
    bn_shift = jnp.broadcast_to(shift[:, None], (L, H))[None].astype(jnp.float32)
    alpha = params["alpha"].reshape(1, 1, H).astype(jnp.float32)
    w2_row = params["w2"].reshape(1, 1, H).astype(jnp.float32)
    b2 = params["b2"].reshape(1).astype(jnp.float32)           # scalar -> SMEM

    kernel = functools.partial(
        _fuse_kernel, block_batch=TB, seq_len=L, len_b=len_b,
        weight_norm=weight_norm, compute_dtype=compute_dtype)

    const2 = lambda i: (0, 0)
    const3 = lambda i: (0, 0, 0)
    in_specs = [
        pl.BlockSpec((TB, L, D), lambda i: (i, 0, 0)),         # input_a tile
        pl.BlockSpec((TB, len_b, D), lambda i: (i, 0, 0)),     # input_b (un-broadcast)
        pl.BlockSpec(w_main.shape, const2),                    # stacked folded W1
    ]
    args = [input_a, input_b, w_main]
    if len_b == 1:
        in_specs.append(pl.BlockSpec((D, H), const2))          # W1b - W1c
        args.append(w_b)
    in_specs += [
        pl.BlockSpec((1, L, H), const3),                       # BN scale
        pl.BlockSpec((1, L, H), const3),                       # BN shift
        pl.BlockSpec((1, 1, H), const3),                       # alpha
        pl.BlockSpec((1, 1, H), const3),                       # b1
        pl.BlockSpec((1, 1, H), const3),                       # w2 row
        pl.BlockSpec(memory_space=pltpu.MemorySpace.SMEM),     # b2 scalar
    ]
    args += [bn_scale, bn_shift, alpha, b1, w2_row, b2]

    out = pl.pallas_call(
        kernel,
        out_shape=jax.ShapeDtypeStruct((B_pad, D), jnp.float32),
        grid_spec=pltpu.PrefetchScalarGridSpec(
            num_scalar_prefetch=0,
            grid=(steps,),
            in_specs=in_specs,
            out_specs=pl.BlockSpec((TB, D), lambda i: (i, 0)),
        ),
        compiler_params=pltpu.CompilerParams(
            dimension_semantics=("parallel",),
            vmem_limit_bytes=vmem_limit),
    )(*args)
    return out[:B] if B_pad != B else out


def _reference_forward(input_a, input_b, params, *, weight_norm=False):
    """Pure-JAX reference mirroring the PyTorch module (eval mode)."""
    if input_b.ndim == 2:
        input_b = input_b[:, None, :]
    B, L, D = input_a.shape
    if input_b.shape[1] == 1 and L > 1:
        input_b = jnp.broadcast_to(input_b, (B, L, D))
    feats = jnp.concatenate(
        [input_a, input_b, input_a - input_b, input_a * input_b], axis=-1)
    score = feats @ params["w1"] + params["b1"]                       # (B,L,H)
    normed = (score - params["bn_mean"][None, :, None]) \
        / jnp.sqrt(params["bn_var"][None, :, None] + BN_EPS)
    normed = normed * params["bn_gamma"][None, :, None] \
        + params["bn_beta"][None, :, None]
    p = jax.nn.sigmoid(normed)
    score = p * score + params["alpha"][None, None, :] * (1.0 - p) * score
    s = score @ params["w2"] + params["b2"]                           # (B,L,1)
    s = jnp.transpose(s, (0, 2, 1))                                   # (B,1,L)
    if weight_norm:
        s = jax.nn.softmax(s * 0.5, axis=-1)
    out = jnp.matmul(s, input_a)                                      # (B,1,D)
    return jnp.squeeze(out, axis=1)


def init_params(key, dim, seq_len, hidden):
    """Deterministic, non-trivial parameters matching FuseLayer shapes."""
    keys = jax.random.split(key, 9)
    d4 = 4 * dim

    def xavier_normal(k, fan_in, fan_out, shape):
        std = (2.0 / (fan_in + fan_out)) ** 0.5
        return std * jax.random.normal(k, shape, dtype=jnp.float32)

    return {
        # nn.Linear(4*dim, hidden): stored transposed for y = x @ W.
        "w1": xavier_normal(keys[0], d4, hidden, (d4, hidden)),
        "b1": 0.1 * jax.random.normal(keys[1], (hidden,), dtype=jnp.float32),
        # nn.Linear(hidden, 1)
        "w2": xavier_normal(keys[2], hidden, 1, (hidden, 1)),
        "b2": 0.1 * jax.random.normal(keys[3], (1,), dtype=jnp.float32),
        # Dice: BatchNorm1d(num_features=input_length) eval-mode stats/affine.
        "bn_gamma": 1.0 + 0.1 * jax.random.normal(keys[4], (seq_len,), dtype=jnp.float32),
        "bn_beta": 0.1 * jax.random.normal(keys[5], (seq_len,), dtype=jnp.float32),
        "bn_mean": 0.2 * jax.random.normal(keys[6], (seq_len,), dtype=jnp.float32),
        "bn_var": 1.0 + 0.5 * jax.random.uniform(keys[7], (seq_len,), dtype=jnp.float32),
        "alpha": 0.1 * jax.random.normal(keys[8], (hidden,), dtype=jnp.float32),
    }
    # TODO(synk): dropout / l2_reg / use_bn of the MLP are training-time-only
    # knobs in the PyTorch module and are not part of the eval forward pass.


if __name__ == "__main__":
    # batch, input_length, in_shape (dim), hidden_units[-1]
    B, L, D, H = 64, 8, 32, 36

    key = jax.random.PRNGKey(0)
    ka, kb, kb3, kp = jax.random.split(key, 4)
    input_a = jax.random.normal(ka, (B, L, D), dtype=jnp.float32)
    input_b = jax.random.normal(kb, (B, D), dtype=jnp.float32)    # 2-D branch
    params = init_params(kp, D, L, H)

    ref = _reference_forward(input_a, input_b, params)

    # Default path: bf16 MXU operands, f32 accumulate + elementwise math.
    out = jax.block_until_ready(fuse_layer_forward(input_a, input_b, params))
    assert out.shape == (B, D)
    assert jnp.allclose(out, ref, atol=1e-1, rtol=5e-2), "mismatch (bf16 MXU)"

    # Exact-algebra check with f32 MXU operands.
    out_f32 = jax.block_until_ready(
        fuse_layer_forward(input_a, input_b, params, compute_dtype=jnp.float32))
    assert jnp.allclose(out_f32, ref, atol=5e-4, rtol=5e-4), "mismatch (f32)"

    # weight_norm path (attention-score normalization).
    out_wn = jax.block_until_ready(
        fuse_layer_forward(input_a, input_b, params, weight_norm=True,
                           compute_dtype=jnp.float32))
    ref_wn = _reference_forward(input_a, input_b, params, weight_norm=True)
    assert jnp.allclose(out_wn, ref_wn, atol=5e-4, rtol=5e-4), \
        "mismatch (weight_norm)"

    # 3-D input_b (len_b == L) together with a batch that needs padding.
    B2 = 50
    input_a2 = input_a[:B2]
    input_b3 = jax.random.normal(kb3, (B2, L, D), dtype=jnp.float32)
    out3 = jax.block_until_ready(
        fuse_layer_forward(input_a2, input_b3, params,
                           compute_dtype=jnp.float32))
    assert out3.shape == (B2, D)
    ref3 = _reference_forward(input_a2, input_b3, params)
    assert jnp.allclose(out3, ref3, atol=5e-4, rtol=5e-4), "mismatch (len_b==L)"

    print("KERNEL_OK")
</pallas_src>

<mosaic_0001>
module attributes {stable_mosaic.version = 11 : i64} {
  func.func @_fuse_kernel(%arg0: i32, %arg1: memref<64x8x32xf32, #tpu.memory_space<vmem>>, %arg2: memref<64x1x32xf32, #tpu.memory_space<vmem>>, %arg3: memref<64x36xbf16, #tpu.memory_space<vmem>>, %arg4: memref<32x36xbf16, #tpu.memory_space<vmem>>, %arg5: memref<1x8x36xf32, #tpu.memory_space<vmem>>, %arg6: memref<1x8x36xf32, #tpu.memory_space<vmem>>, %arg7: memref<1x1x36xf32, #tpu.memory_space<vmem>>, %arg8: memref<1x1x36xf32, #tpu.memory_space<vmem>>, %arg9: memref<1x1x36xf32, #tpu.memory_space<vmem>>, %arg10: memref<1xf32, #tpu.memory_space<smem>>, %arg11: memref<64x32xf32, #tpu.memory_space<vmem>>) attributes {dimension_semantics = [#tpu.dimension_semantics<parallel>], iteration_bounds = array<i64: 1>, scalar_prefetch = 0 : i64, scratch_operands = 0 : i64, tpu.core_type = #tpu.core_type<tc>, window_params = [{transform_indices = @transform_0, window_bounds = array<i64: 64, 8, 32>}, {transform_indices = @transform_1, window_bounds = array<i64: 64, 1, 32>}, {pipeline_mode = #tpu.pipeline_mode<synchronous>, transform_indices = @transform_2, window_bounds = array<i64: 64, 36>}, {pipeline_mode = #tpu.pipeline_mode<synchronous>, transform_indices = @transform_3, window_bounds = array<i64: 32, 36>}, {pipeline_mode = #tpu.pipeline_mode<synchronous>, transform_indices = @transform_4, window_bounds = array<i64: 1, 8, 36>}, {pipeline_mode = #tpu.pipeline_mode<synchronous>, transform_indices = @transform_5, window_bounds = array<i64: 1, 8, 36>}, {pipeline_mode = #tpu.pipeline_mode<synchronous>, transform_indices = @transform_6, window_bounds = array<i64: 1, 1, 36>}, {pipeline_mode = #tpu.pipeline_mode<synchronous>, transform_indices = @transform_7, window_bounds = array<i64: 1, 1, 36>}, {pipeline_mode = #tpu.pipeline_mode<synchronous>, transform_indices = @transform_8, window_bounds = array<i64: 1, 1, 36>}, {transform_indices = @transform_9, window_bounds = array<i64: 1>}, {transform_indices = @transform_10, window_bounds = array<i64: 64, 32>}]} {
    %c0 = arith.constant 0 : index
    %c0_0 = arith.constant 0 : index
    %c0_1 = arith.constant 0 : index
    %0 = vector.load %arg1[%c0, %c0_0, %c0_1] : memref<64x8x32xf32, #tpu.memory_space<vmem>>, vector<64x8x32xf32>
    %1 = vector.shape_cast %0 : vector<64x8x32xf32> to vector<512x32xf32>
    %c0_2 = arith.constant 0 : index
    %c0_3 = arith.constant 0 : index
    %c0_4 = arith.constant 0 : index
    %2 = vector.load %arg2[%c0_2, %c0_3, %c0_4] : memref<64x1x32xf32, #tpu.memory_space<vmem>>, vector<64x1x32xf32>
    %3 = vector.shape_cast %2 : vector<64x1x32xf32> to vector<64x1x32xf32>
    %4 = vector.broadcast %3 : vector<64x1x32xf32> to vector<64x8x32xf32>
    %5 = arith.mulf %0, %4 : vector<64x8x32xf32>
    %6 = vector.shape_cast %5 : vector<64x8x32xf32> to vector<512x32xf32>
    %7 = tpu.concatenate %1, %6 in 1 : vector<512x32xf32>, vector<512x32xf32> -> vector<512x64xf32>
    %8 = arith.truncf %7 : vector<512x64xf32> to vector<512x64xbf16>
    %c0_5 = arith.constant 0 : index
    %c0_6 = arith.constant 0 : index
    %9 = vector.load %arg3[%c0_5, %c0_6] : memref<64x36xbf16, #tpu.memory_space<vmem>>, vector<64x36xbf16>
    %cst = arith.constant dense<0.000000e+00> : vector<512x36xf32>
    %10 = tpu.matmul %8, %9, %cst {dimension_numbers = #tpu.dot_dimension_numbers<[1], [0], [0], [1], [0, 0, 1, 1], [], []>} : vector<512x64xbf16>, vector<64x36xbf16>, vector<512x36xf32> -> vector<512x36xf32>
    %11 = vector.shape_cast %10 : vector<512x36xf32> to vector<64x8x36xf32>
    %12 = vector.shape_cast %2 : vector<64x1x32xf32> to vector<64x32xf32>
    %13 = arith.truncf %12 : vector<64x32xf32> to vector<64x32xbf16>
    %c0_7 = arith.constant 0 : index
    %c0_8 = arith.constant 0 : index
    %14 = vector.load %arg4[%c0_7, %c0_8] : memref<32x36xbf16, #tpu.memory_space<vmem>>, vector<32x36xbf16>
    %cst_9 = arith.constant dense<0.000000e+00> : vector<64x36xf32>
    %15 = tpu.matmul %13, %14, %cst_9 {dimension_numbers = #tpu.dot_dimension_numbers<[1], [0], [0], [1], [0, 0, 1, 1], [], []>} : vector<64x32xbf16>, vector<32x36xbf16>, vector<64x36xf32> -> vector<64x36xf32>
    %16 = vector.shape_cast %15 : vector<64x36xf32> to vector<64x1x36xf32>
    %17 = vector.shape_cast %16 : vector<64x1x36xf32> to vector<64x1x36xf32>
    %18 = vector.broadcast %17 : vector<64x1x36xf32> to vector<64x8x36xf32>
    %19 = arith.addf %11, %18 : vector<64x8x36xf32>
    %c0_10 = arith.constant 0 : index
    %c0_11 = arith.constant 0 : index
    %c0_12 = arith.constant 0 : index
    %20 = vector.load %arg8[%c0_10, %c0_11, %c0_12] : memref<1x1x36xf32, #tpu.memory_space<vmem>>, vector<1x1x36xf32>
    %21 = vector.broadcast %20 : vector<1x1x36xf32> to vector<64x8x36xf32>
    %22 = arith.addf %19, %21 : vector<64x8x36xf32>
    %c0_13 = arith.constant 0 : index
    %c0_14 = arith.constant 0 : index
    %c0_15 = arith.constant 0 : index
    %23 = vector.load %arg5[%c0_13, %c0_14, %c0_15] : memref<1x8x36xf32, #tpu.memory_space<vmem>>, vector<1x8x36xf32>
    %24 = vector.broadcast %23 : vector<1x8x36xf32> to vector<64x8x36xf32>
    %25 = arith.mulf %22, %24 : vector<64x8x36xf32>
    %c0_16 = arith.constant 0 : index
    %c0_17 = arith.constant 0 : index
    %c0_18 = arith.constant 0 : index
    %26 = vector.load %arg6[%c0_16, %c0_17, %c0_18] : memref<1x8x36xf32, #tpu.memory_space<vmem>>, vector<1x8x36xf32>
    %27 = vector.broadcast %26 : vector<1x8x36xf32> to vector<64x8x36xf32>
    %28 = arith.addf %25, %27 : vector<64x8x36xf32>
    %29 = arith.negf %28 : vector<64x8x36xf32>
    %30 = math.exp %29 : vector<64x8x36xf32>
    %cst_19 = arith.constant 1.000000e+00 : f32
    %31 = vector.broadcast %cst_19 : f32 to vector<64x8x36xf32>
    %32 = arith.addf %31, %30 : vector<64x8x36xf32>
    %33 = arith.divf %31, %32 : vector<64x8x36xf32>
    %c0_20 = arith.constant 0 : index
    %c0_21 = arith.constant 0 : index
    %c0_22 = arith.constant 0 : index
    %34 = vector.load %arg7[%c0_20, %c0_21, %c0_22] : memref<1x1x36xf32, #tpu.memory_space<vmem>>, vector<1x1x36xf32>
    %cst_23 = arith.constant 1.000000e+00 : f32
    %35 = vector.broadcast %cst_23 : f32 to vector<1x1x36xf32>
    %36 = arith.subf %35, %34 : vector<1x1x36xf32>
    %37 = vector.broadcast %36 : vector<1x1x36xf32> to vector<64x8x36xf32>
    %38 = arith.mulf %33, %37 : vector<64x8x36xf32>
    %39 = vector.broadcast %34 : vector<1x1x36xf32> to vector<64x8x36xf32>
    %40 = arith.addf %39, %38 : vector<64x8x36xf32>
    %41 = arith.mulf %22, %40 : vector<64x8x36xf32>
    %c0_24 = arith.constant 0 : index
    %c0_25 = arith.constant 0 : index
    %c0_26 = arith.constant 0 : index
    %42 = vector.load %arg9[%c0_24, %c0_25, %c0_26] : memref<1x1x36xf32, #tpu.memory_space<vmem>>, vector<1x1x36xf32>
    %43 = vector.broadcast %42 : vector<1x1x36xf32> to vector<64x8x36xf32>
    %44 = arith.mulf %41, %43 : vector<64x8x36xf32>
    %cst_27 = arith.constant dense<0.000000e+00> : vector<64x8xf32>
    %45 = vector.multi_reduction <add>, %44, %cst_27 [2] : vector<64x8x36xf32> to vector<64x8xf32>
    %46 = vector.shape_cast %45 : vector<64x8xf32> to vector<64x8x1xf32>
    %c0_28 = arith.constant 0 : index
    %47 = memref.load %arg10[%c0_28] : memref<1xf32, #tpu.memory_space<smem>>
    %48 = vector.broadcast %47 : f32 to vector<64x8x1xf32>
    %49 = arith.addf %46, %48 : vector<64x8x1xf32>
    %50 = vector.broadcast %49 : vector<64x8x1xf32> to vector<64x8x32xf32>
    %51 = arith.mulf %50, %0 : vector<64x8x32xf32>
    %cst_29 = arith.constant dense<0.000000e+00> : vector<64x32xf32>
    %52 = vector.multi_reduction <add>, %51, %cst_29 [1] : vector<64x8x32xf32> to vector<64x32xf32>
    %c0_30 = arith.constant 0 : index
    %c0_31 = arith.constant 0 : index
    %53 = vector.load %arg11[%c0_30, %c0_31] : memref<64x32xf32, #tpu.memory_space<vmem>>, vector<64x32xf32>
    tpu.vector_store %arg11[%c0_30, %c0_31], %52 {strides = array<i32>} : memref<64x32xf32, #tpu.memory_space<vmem>>, vector<64x32xf32>,
    return
  }
  func.func @transform_0(%arg0: i32) -> (i32, i32, i32) {
    %c0_i32 = arith.constant 0 : i32
    %c0_i32_0 = arith.constant 0 : i32
    %c0_i32_1 = arith.constant 0 : i32
    return %arg0, %c0_i32, %c0_i32_0 : i32, i32, i32
  }
  func.func @transform_1(%arg0: i32) -> (i32, i32, i32) {
    %c0_i32 = arith.constant 0 : i32
    %c0_i32_0 = arith.constant 0 : i32
    %c0_i32_1 = arith.constant 0 : i32
    return %arg0, %c0_i32, %c0_i32_0 : i32, i32, i32
  }
  func.func @transform_2(%arg0: i32) -> (i32, i32) {
    %c0_i32 = arith.constant 0 : i32
    %c0_i32_0 = arith.constant 0 : i32
    %c0_i32_1 = arith.constant 0 : i32
    return %c0_i32, %c0_i32_0 : i32, i32
  }
  func.func @transform_3(%arg0: i32) -> (i32, i32) {
    %c0_i32 = arith.constant 0 : i32
    %c0_i32_0 = arith.constant 0 : i32
    %c0_i32_1 = arith.constant 0 : i32
    return %c0_i32, %c0_i32_0 : i32, i32
  }
  func.func @transform_4(%arg0: i32) -> (i32, i32, i32) {
    %c0_i32 = arith.constant 0 : i32
    %c0_i32_0 = arith.constant 0 : i32
    %c0_i32_1 = arith.constant 0 : i32
    %c0_i32_2 = arith.constant 0 : i32
    return %c0_i32, %c0_i32_0, %c0_i32_1 : i32, i32, i32
  }
  func.func @transform_5(%arg0: i32) -> (i32, i32, i32) {
    %c0_i32 = arith.constant 0 : i32
    %c0_i32_0 = arith.constant 0 : i32
    %c0_i32_1 = arith.constant 0 : i32
    %c0_i32_2 = arith.constant 0 : i32
    return %c0_i32, %c0_i32_0, %c0_i32_1 : i32, i32, i32
  }
  func.func @transform_6(%arg0: i32) -> (i32, i32, i32) {
    %c0_i32 = arith.constant 0 : i32
    %c0_i32_0 = arith.constant 0 : i32
    %c0_i32_1 = arith.constant 0 : i32
    %c0_i32_2 = arith.constant 0 : i32
    return %c0_i32, %c0_i32_0, %c0_i32_1 : i32, i32, i32
  }
  func.func @transform_7(%arg0: i32) -> (i32, i32, i32) {
    %c0_i32 = arith.constant 0 : i32
    %c0_i32_0 = arith.constant 0 : i32
    %c0_i32_1 = arith.constant 0 : i32
    %c0_i32_2 = arith.constant 0 : i32
    return %c0_i32, %c0_i32_0, %c0_i32_1 : i32, i32, i32
  }
  func.func @transform_8(%arg0: i32) -> (i32, i32, i32) {
    %c0_i32 = arith.constant 0 : i32
    %c0_i32_0 = arith.constant 0 : i32
    %c0_i32_1 = arith.constant 0 : i32
    %c0_i32_2 = arith.constant 0 : i32
    return %c0_i32, %c0_i32_0, %c0_i32_1 : i32, i32, i32
  }
  func.func @transform_9(%arg0: i32) -> i32 {
    %c0_i32 = arith.constant 0 : i32
    %c0_i32_0 = arith.constant 0 : i32
    return %c0_i32 : i32
  }
  func.func @transform_10(%arg0: i32) -> (i32, i32) {
    %c0_i32 = arith.constant 0 : i32
    %c0_i32_0 = arith.constant 0 : i32
    return %arg0, %c0_i32 : i32, i32
  }
}

</mosaic_0001>

<llo_original>
// kernel: tpu_custom_call.1
$region0: #{tpu_custom_call.1}
  #allocation0 [shape = 'u32[]', space=smem, size = 0x4, offset = 0x4, fixed_abs, tag = 'smem constant byte address 0x4 - core index']
  #allocation1 [shape = 'u32[144,128]{1,0:T(1,128)}', space=vmem, size = 0x12000, scoped, tag = 'internal scratch']
  #allocation2 [shape = 'f32[1]{0:T(128)S(6)}', space=smem, size = 0x200, scoped, tag = 'scoped memory for tpu_custom_call.1']
  %s0 = inlined_call_operand.vmem [shape: f32[64,8,32], index: 0, kind: input, shape index: {}]
  %s1 = inlined_call_operand.vmem [shape: f32[64,1,32], index: 1, kind: input, shape index: {}]
  %s2 = inlined_call_operand.vmem [shape: bf16[64,36], index: 2, kind: input, shape index: {}]
  %s3 = inlined_call_operand.vmem [shape: bf16[32,36], index: 3, kind: input, shape index: {}]
  %s4 = inlined_call_operand.vmem [shape: f32[1,8,36], index: 4, kind: input, shape index: {}]
  %s5 = inlined_call_operand.vmem [shape: f32[1,8,36], index: 5, kind: input, shape index: {}]
  %s6 = inlined_call_operand.vmem [shape: f32[1,1,36], index: 6, kind: input, shape index: {}]
  %s7 = inlined_call_operand.vmem [shape: f32[1,1,36], index: 7, kind: input, shape index: {}]
  %s8 = inlined_call_operand.vmem [shape: f32[1,1,36], index: 8, kind: input, shape index: {}]
  %s9 = inlined_call_operand.<no memory space> [shape: f32[1], index: 9, kind: input, shape index: {}]
  %s10 = inlined_call_operand.vmem [shape: f32[64,32], index: 10, kind: output, shape index: {}]
  %s11 = sld [smem:[#allocation0]]
  $region50: #{tpu_custom_call.1} parent=0
    _
  %s13 = ssub.s32 1, %s11
  %s14 = scalar_select 0, %s13, %s11
  %15 = sst [smem:[#allocation2]] %s9
  // Predicated region
  $region2: #{tpu_custom_call.1} parent=0 // pred_check
    _
  $region3: #{tpu_custom_call.1} parent=0 // pred_check_branch
    %17 = sbr.rel (0) target = $region5
  $region4: #{tpu_custom_call.1} parent=0 // pred_region
    _
  $region5: #{tpu_custom_call.1} parent=0 // pred_fallthru
    _
  // Predicated region
  $region6: #{tpu_custom_call.1} parent=0 // pred_check
    _
  $region7: #{tpu_custom_call.1} parent=0 // pred_check_branch
    %19 = sbr.rel (0) target = $region9
  $region8: #{tpu_custom_call.1} parent=0 // pred_region
    _
  $region9: #{tpu_custom_call.1} parent=0 // pred_fallthru
    _
  // Predicated region
  $region10: #{tpu_custom_call.1} parent=0 // pred_check
    _
  $region11: #{tpu_custom_call.1} parent=0 // pred_check_branch
    %21 = sbr.rel (0) target = $region13
  $region12: #{tpu_custom_call.1} parent=0 // pred_region
    _
  $region13: #{tpu_custom_call.1} parent=0 // pred_fallthru
    _
  // Predicated region
  $region14: #{tpu_custom_call.1} parent=0 // pred_check
    _
  $region15: #{tpu_custom_call.1} parent=0 // pred_check_branch
    %23 = sbr.rel (0) target = $region17
  $region16: #{tpu_custom_call.1} parent=0 // pred_region
    _
  $region17: #{tpu_custom_call.1} parent=0 // pred_fallthru
    _
  // Predicated region
  $region18: #{tpu_custom_call.1} parent=0 // pred_check
    _
  $region19: #{tpu_custom_call.1} parent=0 // pred_check_branch
    %25 = sbr.rel (0) target = $region21
  $region20: #{tpu_custom_call.1} parent=0 // pred_region
    _
  $region21: #{tpu_custom_call.1} parent=0 // pred_fallthru
    _
  // Predicated region
  $region22: #{tpu_custom_call.1} parent=0 // pred_check
    _
  $region23: #{tpu_custom_call.1} parent=0 // pred_check_branch
    %27 = sbr.rel (0) target = $region25
  $region24: #{tpu_custom_call.1} parent=0 // pred_region
    _
  $region25: #{tpu_custom_call.1} parent=0 // pred_fallthru
    _
  // Predicated region
  $region26: #{tpu_custom_call.1} parent=0 // pred_check
    _
  $region27: #{tpu_custom_call.1} parent=0 // pred_check_branch
    %29 = sbr.rel (0) target = $region29
  $region28: #{tpu_custom_call.1} parent=0 // pred_region
    _
  $region29: #{tpu_custom_call.1} parent=0 // pred_fallthru
    _
  // Predicated region
  $region30: #{tpu_custom_call.1} parent=0 // pred_check
    _
  $region31: #{tpu_custom_call.1} parent=0 // pred_check_branch
    %31 = sbr.rel (0) target = $region33
  $region32: #{tpu_custom_call.1} parent=0 // pred_region
    _
  $region33: #{tpu_custom_call.1} parent=0 // pred_fallthru
    _
  // Predicated region
  $region34: #{tpu_custom_call.1} parent=0 // pred_check
    _
  $region35: #{tpu_custom_call.1} parent=0 // pred_check_branch
    %33 = sbr.rel (0) target = $region37
  $region36: #{tpu_custom_call.1} parent=0 // pred_region
    _
  $region37: #{tpu_custom_call.1} parent=0 // pred_fallthru
    _
  // Predicated region
  $region38: #{tpu_custom_call.1} parent=0 // pred_check
    _
  $region39: #{tpu_custom_call.1} parent=0 // pred_check_branch
    %35 = sbr.rel (0) target = $region41
  $region40: #{tpu_custom_call.1} parent=0 // pred_region
    _
  $region41: #{tpu_custom_call.1} parent=0 // pred_fallthru
    _
  %v37 = vld [vmem:[%s0] sm:$0xff]
  %v38 = vld [vmem:[%s0 + $0x8] sm:$0xff]
  %v39 = vld [vmem:[%s0 + $0x10] sm:$0xff]
  %v40 = vld [vmem:[%s0 + $0x18] sm:$0xff]
  %v41 = vld [vmem:[%s0 + $0x20] sm:$0xff]
  %v42 = vld [vmem:[%s0 + $0x28] sm:$0xff]
  %v43 = vld [vmem:[%s0 + $0x30] sm:$0xff]
  %v44 = vld [vmem:[%s0 + $0x38] sm:$0xff]
  %v45 = vld [vmem:[%s0 + $0x40] sm:$0xff]
  %v46 = vld [vmem:[%s0 + $0x48] sm:$0xff]
  %v47 = vld [vmem:[%s0 + $0x50] sm:$0xff]
  %v48 = vld [vmem:[%s0 + $0x58] sm:$0xff]
  %v49 = vld [vmem:[%s0 + $0x60] sm:$0xff]
  %v50 = vld [vmem:[%s0 + $0x68] sm:$0xff]
  %v51 = vld [vmem:[%s0 + $0x70] sm:$0xff]
  %v52 = vld [vmem:[%s0 + $0x78] sm:$0xff]
  %v53 = vld [vmem:[%s0 + $0x80] sm:$0xff]
  %v54 = vld [vmem:[%s0 + $0x88] sm:$0xff]
  %v55 = vld [vmem:[%s0 + $0x90] sm:$0xff]
  %v56 = vld [vmem:[%s0 + $0x98] sm:$0xff]
  %v57 = vld [vmem:[%s0 + $0xa0] sm:$0xff]
  %v58 = vld [vmem:[%s0 + $0xa8] sm:$0xff]
  %v59 = vld [vmem:[%s0 + $0xb0] sm:$0xff]
  %v60 = vld [vmem:[%s0 + $0xb8] sm:$0xff]
  %v61 = vld [vmem:[%s0 + $0xc0] sm:$0xff]
  %v62 = vld [vmem:[%s0 + $0xc8] sm:$0xff]
  %v63 = vld [vmem:[%s0 + $0xd0] sm:$0xff]
  %v64 = vld [vmem:[%s0 + $0xd8] sm:$0xff]
  %v65 = vld [vmem:[%s0 + $0xe0] sm:$0xff]
  %v66 = vld [vmem:[%s0 + $0xe8] sm:$0xff]
  %v67 = vld [vmem:[%s0 + $0xf0] sm:$0xff]
  %v68 = vld [vmem:[%s0 + $0xf8] sm:$0xff]
  %v69 = vld [vmem:[%s0 + $0x100] sm:$0xff]
  %v70 = vld [vmem:[%s0 + $0x108] sm:$0xff]
  %v71 = vld [vmem:[%s0 + $0x110] sm:$0xff]
  %v72 = vld [vmem:[%s0 + $0x118] sm:$0xff]
  %v73 = vld [vmem:[%s0 + $0x120] sm:$0xff]
  %v74 = vld [vmem:[%s0 + $0x128] sm:$0xff]
  %v75 = vld [vmem:[%s0 + $0x130] sm:$0xff]
  %v76 = vld [vmem:[%s0 + $0x138] sm:$0xff]
  %v77 = vld [vmem:[%s0 + $0x140] sm:$0xff]
  %v78 = vld [vmem:[%s0 + $0x148] sm:$0xff]
  %v79 = vld [vmem:[%s0 + $0x150] sm:$0xff]
  %v80 = vld [vmem:[%s0 + $0x158] sm:$0xff]
  %v81 = vld [vmem:[%s0 + $0x160] sm:$0xff]
  %v82 = vld [vmem:[%s0 + $0x168] sm:$0xff]
  %v83 = vld [vmem:[%s0 + $0x170] sm:$0xff]
  %v84 = vld [vmem:[%s0 + $0x178] sm:$0xff]
  %v85 = vld [vmem:[%s0 + $0x180] sm:$0xff]
  %v86 = vld [vmem:[%s0 + $0x188] sm:$0xff]
  %v87 = vld [vmem:[%s0 + $0x190] sm:$0xff]
  %v88 = vld [vmem:[%s0 + $0x198] sm:$0xff]
  %v89 = vld [vmem:[%s0 + $0x1a0] sm:$0xff]
  %v90 = vld [vmem:[%s0 + $0x1a8] sm:$0xff]
  %v91 = vld [vmem:[%s0 + $0x1b0] sm:$0xff]
  %v92 = vld [vmem:[%s0 + $0x1b8] sm:$0xff]
  %v93 = vld [vmem:[%s0 + $0x1c0] sm:$0xff]
  %v94 = vld [vmem:[%s0 + $0x1c8] sm:$0xff]
  %v95 = vld [vmem:[%s0 + $0x1d0] sm:$0xff]
  %v96 = vld [vmem:[%s0 + $0x1d8] sm:$0xff]
  %v97 = vld [vmem:[%s0 + $0x1e0] sm:$0xff]
  %v98 = vld [vmem:[%s0 + $0x1e8] sm:$0xff]
  %v99 = vld [vmem:[%s0 + $0x1f0] sm:$0xff]
  %v100 = vld [vmem:[%s0 + $0x1f8] sm:$0xff]
  %v101 = vld [vmem:[%s1] sm:$0x1]
  %v102 = vld [vmem:[%s1 + $0x1] sm:$0x1]
  %v103 = vld [vmem:[%s1 + $0x2] sm:$0x1]
  %v104 = vld [vmem:[%s1 + $0x3] sm:$0x1]
  %v105 = vld [vmem:[%s1 + $0x4] sm:$0x1]
  %v106 = vld [vmem:[%s1 + $0x5] sm:$0x1]
  %v107 = vld [vmem:[%s1 + $0x6] sm:$0x1]
  %v108 = vld [vmem:[%s1 + $0x7] sm:$0x1]
  %v109 = vld [vmem:[%s1 + $0x8] sm:$0x1]
  %v110 = vld [vmem:[%s1 + $0x9] sm:$0x1]
  %v111 = vld [vmem:[%s1 + $0xa] sm:$0x1]
  %v112 = vld [vmem:[%s1 + $0xb] sm:$0x1]
  %v113 = vld [vmem:[%s1 + $0xc] sm:$0x1]
  %v114 = vld [vmem:[%s1 + $0xd] sm:$0x1]
  %v115 = vld [vmem:[%s1 + $0xe] sm:$0x1]
  %v116 = vld [vmem:[%s1 + $0xf] sm:$0x1]
  %v117 = vld [vmem:[%s1 + $0x10] sm:$0x1]
  %v118 = vld [vmem:[%s1 + $0x11] sm:$0x1]
  %v119 = vld [vmem:[%s1 + $0x12] sm:$0x1]
  %v120 = vld [vmem:[%s1 + $0x13] sm:$0x1]
  %v121 = vld [vmem:[%s1 + $0x14] sm:$0x1]
  %v122 = vld [vmem:[%s1 + $0x15] sm:$0x1]
  %v123 = vld [vmem:[%s1 + $0x16] sm:$0x1]
  %v124 = vld [vmem:[%s1 + $0x17] sm:$0x1]
  %v125 = vld [vmem:[%s1 + $0x18] sm:$0x1]
  %v126 = vld [vmem:[%s1 + $0x19] sm:$0x1]
  %v127 = vld [vmem:[%s1 + $0x1a] sm:$0x1]
  %v128 = vld [vmem:[%s1 + $0x1b] sm:$0x1]
  %v129 = vld [vmem:[%s1 + $0x1c] sm:$0x1]
  %v130 = vld [vmem:[%s1 + $0x1d] sm:$0x1]
  %v131 = vld [vmem:[%s1 + $0x1e] sm:$0x1]
  %v132 = vld [vmem:[%s1 + $0x1f] sm:$0x1]
  %v133 = vld [vmem:[%s1 + $0x20] sm:$0x1]
  %v134 = vld [vmem:[%s1 + $0x21] sm:$0x1]
  %v135 = vld [vmem:[%s1 + $0x22] sm:$0x1]
  %v136 = vld [vmem:[%s1 + $0x23] sm:$0x1]
  %v137 = vld [vmem:[%s1 + $0x24] sm:$0x1]
  %v138 = vld [vmem:[%s1 + $0x25] sm:$0x1]
  %v139 = vld [vmem:[%s1 + $0x26] sm:$0x1]
  %v140 = vld [vmem:[%s1 + $0x27] sm:$0x1]
  %v141 = vld [vmem:[%s1 + $0x28] sm:$0x1]
  %v142 = vld [vmem:[%s1 + $0x29] sm:$0x1]
  %v143 = vld [vmem:[%s1 + $0x2a] sm:$0x1]
  %v144 = vld [vmem:[%s1 + $0x2b] sm:$0x1]
  %v145 = vld [vmem:[%s1 + $0x2c] sm:$0x1]
  %v146 = vld [vmem:[%s1 + $0x2d] sm:$0x1]
  %v147 = vld [vmem:[%s1 + $0x2e] sm:$0x1]
  %v148 = vld [vmem:[%s1 + $0x2f] sm:$0x1]
  %v149 = vld [vmem:[%s1 + $0x30] sm:$0x1]
  %v150 = vld [vmem:[%s1 + $0x31] sm:$0x1]
  %v151 = vld [vmem:[%s1 + $0x32] sm:$0x1]
  %v152 = vld [vmem:[%s1 + $0x33] sm:$0x1]
  %v153 = vld [vmem:[%s1 + $0x34] sm:$0x1]
  %v154 = vld [vmem:[%s1 + $0x35] sm:$0x1]
  %v155 = vld [vmem:[%s1 + $0x36] sm:$0x1]
  %v156 = vld [vmem:[%s1 + $0x37] sm:$0x1]
  %v157 = vld [vmem:[%s1 + $0x38] sm:$0x1]
  %v158 = vld [vmem:[%s1 + $0x39] sm:$0x1]
  %v159 = vld [vmem:[%s1 + $0x3a] sm:$0x1]
  %v160 = vld [vmem:[%s1 + $0x3b] sm:$0x1]
  %v161 = vld [vmem:[%s1 + $0x3c] sm:$0x1]
  %v162 = vld [vmem:[%s1 + $0x3d] sm:$0x1]
  %v163 = vld [vmem:[%s1 + $0x3e] sm:$0x1]
  %v164 = vld [vmem:[%s1 + $0x3f] sm:$0x1]
  %v229 = vlaneseq
  %v230 = vshrl.u32 %v229, 7
  %v231 = vsub.s32 0, %v230
  %v232 = vrot.slane %v101, %v231
  %v233 = vlaneseq
  %v234 = vshrl.u32 %v233, 7
  %v235 = vsub.s32 0, %v234
  %v236 = vrot.slane %v102, %v235
  %v237 = vlaneseq
  %v238 = vshrl.u32 %v237, 7
  %v239 = vsub.s32 0, %v238
  %v240 = vrot.slane %v103, %v239
  %v241 = vlaneseq
  %v242 = vshrl.u32 %v241, 7
  %v243 = vsub.s32 0, %v242
  %v244 = vrot.slane %v104, %v243
  %v245 = vlaneseq
  %v246 = vshrl.u32 %v245, 7
  %v247 = vsub.s32 0, %v246
  %v248 = vrot.slane %v105, %v247
  %v249 = vlaneseq
  %v250 = vshrl.u32 %v249, 7
  %v251 = vsub.s32 0, %v250
  %v252 = vrot.slane %v106, %v251
  %v253 = vlaneseq
  %v254 = vshrl.u32 %v253, 7
  %v255 = vsub.s32 0, %v254
  %v256 = vrot.slane %v107, %v255
  %v257 = vlaneseq
  %v258 = vshrl.u32 %v257, 7
  %v259 = vsub.s32 0, %v258
  %v260 = vrot.slane %v108, %v259
  %v261 = vlaneseq
  %v262 = vshrl.u32 %v261, 7
  %v263 = vsub.s32 0, %v262
  %v264 = vrot.slane %v109, %v263
  %v265 = vlaneseq
  %v266 = vshrl.u32 %v265, 7
  %v267 = vsub.s32 0, %v266
  %v268 = vrot.slane %v110, %v267
  %v269 = vlaneseq
  %v270 = vshrl.u32 %v269, 7
  %v271 = vsub.s32 0, %v270
  %v272 = vrot.slane %v111, %v271
  %v273 = vlaneseq
  %v274 = vshrl.u32 %v273, 7
  %v275 = vsub.s32 0, %v274
  %v276 = vrot.slane %v112, %v275
  %v277 = vlaneseq
  %v278 = vshrl.u32 %v277, 7
  %v279 = vsub.s32 0, %v278
  %v280 = vrot.slane %v113, %v279
  %v281 = vlaneseq
  %v282 = vshrl.u32 %v281, 7
  %v283 = vsub.s32 0, %v282
  %v284 = vrot.slane %v114, %v283
  %v285 = vlaneseq
  %v286 = vshrl.u32 %v285, 7
  %v287 = vsub.s32 0, %v286
  %v288 = vrot.slane %v115, %v287
  %v289 = vlaneseq
  %v290 = vshrl.u32 %v289, 7
  %v291 = vsub.s32 0, %v290
  %v292 = vrot.slane %v116, %v291
  %v293 = vlaneseq
  %v294 = vshrl.u32 %v293, 7
  %v295 = vsub.s32 0, %v294
  %v296 = vrot.slane %v117, %v295
  %v297 = vlaneseq
  %v298 = vshrl.u32 %v297, 7
  %v299 = vsub.s32 0, %v298
  %v300 = vrot.slane %v118, %v299
  %v301 = vlaneseq
  %v302 = vshrl.u32 %v301, 7
  %v303 = vsub.s32 0, %v302
  %v304 = vrot.slane %v119, %v303
  %v305 = vlaneseq
  %v306 = vshrl.u32 %v305, 7
  %v307 = vsub.s32 0, %v306
  %v308 = vrot.slane %v120, %v307
  %v309 = vlaneseq
  %v310 = vshrl.u32 %v309, 7
  %v311 = vsub.s32 0, %v310
  %v312 = vrot.slane %v121, %v311
  %v313 = vlaneseq
  %v314 = vshrl.u32 %v313, 7
  %v315 = vsub.s32 0, %v314
  %v316 = vrot.slane %v122, %v315
  %v317 = vlaneseq
  %v318 = vshrl.u32 %v317, 7
  %v319 = vsub.s32 0, %v318
  %v320 = vrot.slane %v123, %v319
  %v321 = vlaneseq
  %v322 = vshrl.u32 %v321, 7
  %v323 = vsub.s32 0, %v322
  %v324 = vrot.slane %v124, %v323
  %v325 = vlaneseq
  %v326 = vshrl.u32 %v325, 7
  %v327 = vsub.s32 0, %v326
  %v328 = vrot.slane %v125, %v327
  %v329 = vlaneseq
  %v330 = vshrl.u32 %v329, 7
  %v331 = vsub.s32 0, %v330
  %v332 = vrot.slane %v126, %v331
  %v333 = vlaneseq
  %v334 = vshrl.u32 %v333, 7
  %v335 = vsub.s32 0, %v334
  %v336 = vrot.slane %v127, %v335
  %v337 = vlaneseq
  %v338 = vshrl.u32 %v337, 7
  %v339 = vsub.s32 0, %v338
  %v340 = vrot.slane %v128, %v339
  %v341 = vlaneseq
  %v342 = vshrl.u32 %v341, 7
  %v343 = vsub.s32 0, %v342
  %v344 = vrot.slane %v129, %v343
  %v345 = vlaneseq
  %v346 = vshrl.u32 %v345, 7
  %v347 = vsub.s32 0, %v346
  %v348 = vrot.slane %v130, %v347
  %v349 = vlaneseq
  %v350 = vshrl.u32 %v349, 7
  %v351 = vsub.s32 0, %v350
  %v352 = vrot.slane %v131, %v351
  %v353 = vlaneseq
  %v354 = vshrl.u32 %v353, 7
  %v355 = vsub.s32 0, %v354
  %v356 = vrot.slane %v132, %v355
  %v357 = vlaneseq
  %v358 = vshrl.u32 %v357, 7
  %v359 = vsub.s32 0, %v358
  %v360 = vrot.slane %v133, %v359
  %v361 = vlaneseq
  %v362 = vshrl.u32 %v361, 7
  %v363 = vsub.s32 0, %v362
  %v364 = vrot.slane %v134, %v363
  %v365 = vlaneseq
  %v366 = vshrl.u32 %v365, 7
  %v367 = vsub.s32 0, %v366
  %v368 = vrot.slane %v135, %v367
  %v369 = vlaneseq
  %v370 = vshrl.u32 %v369, 7
  %v371 = vsub.s32 0, %v370
  %v372 = vrot.slane %v136, %v371
  %v373 = vlaneseq
  %v374 = vshrl.u32 %v373, 7
  %v375 = vsub.s32 0, %v374
  %v376 = vrot.slane %v137, %v375
  %v377 = vlaneseq
  %v378 = vshrl.u32 %v377, 7
  %v379 = vsub.s32 0, %v378
  %v380 = vrot.slane %v138, %v379
  %v381 = vlaneseq
  %v382 = vshrl.u32 %v381, 7
  %v383 = vsub.s32 0, %v382
  %v384 = vrot.slane %v139, %v383
  %v385 = vlaneseq
  %v386 = vshrl.u32 %v385, 7
  %v387 = vsub.s32 0, %v386
  %v388 = vrot.slane %v140, %v387
  %v389 = vlaneseq
  %v390 = vshrl.u32 %v389, 7
  %v391 = vsub.s32 0, %v390
  %v392 = vrot.slane %v141, %v391
  %v393 = vlaneseq
  %v394 = vshrl.u32 %v393, 7
  %v395 = vsub.s32 0, %v394
  %v396 = vrot.slane %v142, %v395
  %v397 = vlaneseq
  %v398 = vshrl.u32 %v397, 7
  %v399 = vsub.s32 0, %v398
  %v400 = vrot.slane %v143, %v399
  %v401 = vlaneseq
  %v402 = vshrl.u32 %v401, 7
  %v403 = vsub.s32 0, %v402
  %v404 = vrot.slane %v144, %v403
  %v405 = vlaneseq
  %v406 = vshrl.u32 %v405, 7
  %v407 = vsub.s32 0, %v406
  %v408 = vrot.slane %v145, %v407
  %v409 = vlaneseq
  %v410 = vshrl.u32 %v409, 7
  %v411 = vsub.s32 0, %v410
  %v412 = vrot.slane %v146, %v411
  %v413 = vlaneseq
  %v414 = vshrl.u32 %v413, 7
  %v415 = vsub.s32 0, %v414
  %v416 = vrot.slane %v147, %v415
  %v417 = vlaneseq
  %v418 = vshrl.u32 %v417, 7
  %v419 = vsub.s32 0, %v418
  %v420 = vrot.slane %v148, %v419
  %v421 = vlaneseq
  %v422 = vshrl.u32 %v421, 7
  %v423 = vsub.s32 0, %v422
  %v424 = vrot.slane %v149, %v423
  %v425 = vlaneseq
  %v426 = vshrl.u32 %v425, 7
  %v427 = vsub.s32 0, %v426
  %v428 = vrot.slane %v150, %v427
  %v429 = vlaneseq
  %v430 = vshrl.u32 %v429, 7
  %v431 = vsub.s32 0, %v430
  %v432 = vrot.slane %v151, %v431
  %v433 = vlaneseq
  %v434 = vshrl.u32 %v433, 7
  %v435 = vsub.s32 0, %v434
  %v436 = vrot.slane %v152, %v435
  %v437 = vlaneseq
  %v438 = vshrl.u32 %v437, 7
  %v439 = vsub.s32 0, %v438
  %v440 = vrot.slane %v153, %v439
  %v441 = vlaneseq
  %v442 = vshrl.u32 %v441, 7
  %v443 = vsub.s32 0, %v442
  %v444 = vrot.slane %v154, %v443
  %v445 = vlaneseq
  %v446 = vshrl.u32 %v445, 7
  %v447 = vsub.s32 0, %v446
  %v448 = vrot.slane %v155, %v447
  %v449 = vlaneseq
  %v450 = vshrl.u32 %v449, 7
  %v451 = vsub.s32 0, %v450
  %v452 = vrot.slane %v156, %v451
  %v453 = vlaneseq
  %v454 = vshrl.u32 %v453, 7
  %v455 = vsub.s32 0, %v454
  %v456 = vrot.slane %v157, %v455
  %v457 = vlaneseq
  %v458 = vshrl.u32 %v457, 7
  %v459 = vsub.s32 0, %v458
  %v460 = vrot.slane %v158, %v459
  %v461 = vlaneseq
  %v462 = vshrl.u32 %v461, 7
  %v463 = vsub.s32 0, %v462
  %v464 = vrot.slane %v159, %v463
  %v465 = vlaneseq
  %v466 = vshrl.u32 %v465, 7
  %v467 = vsub.s32 0, %v466
  %v468 = vrot.slane %v160, %v467
  %v469 = vlaneseq
  %v470 = vshrl.u32 %v469, 7
  %v471 = vsub.s32 0, %v470
  %v472 = vrot.slane %v161, %v471
  %v473 = vlaneseq
  %v474 = vshrl.u32 %v473, 7
  %v475 = vsub.s32 0, %v474
  %v476 = vrot.slane %v162, %v475
  %v477 = vlaneseq
  %v478 = vshrl.u32 %v477, 7
  %v479 = vsub.s32 0, %v478
  %v480 = vrot.slane %v163, %v479
  %v481 = vlaneseq
  %v482 = vshrl.u32 %v481, 7
  %v483 = vsub.s32 0, %v482
  %v484 = vrot.slane %v164, %v483
  %v549 = vmul.f32 %v37, %v232
  %v550 = vmul.f32 %v38, %v236
  %v551 = vmul.f32 %v39, %v240
  %v552 = vmul.f32 %v40, %v244
  %v553 = vmul.f32 %v41, %v248
  %v554 = vmul.f32 %v42, %v252
  %v555 = vmul.f32 %v43, %v256
  %v556 = vmul.f32 %v44, %v260
  %v557 = vmul.f32 %v45, %v264
  %v558 = vmul.f32 %v46, %v268
  %v559 = vmul.f32 %v47, %v272
  %v560 = vmul.f32 %v48, %v276
  %v561 = vmul.f32 %v49, %v280
  %v562 = vmul.f32 %v50, %v284
  %v563 = vmul.f32 %v51, %v288
  %v564 = vmul.f32 %v52, %v292
  %v565 = vmul.f32 %v53, %v296
  %v566 = vmul.f32 %v54, %v300
  %v567 = vmul.f32 %v55, %v304
  %v568 = vmul.f32 %v56, %v308
  %v569 = vmul.f32 %v57, %v312
  %v570 = vmul.f32 %v58, %v316
  %v571 = vmul.f32 %v59, %v320
  %v572 = vmul.f32 %v60, %v324
  %v573 = vmul.f32 %v61, %v328
  %v574 = vmul.f32 %v62, %v332
  %v575 = vmul.f32 %v63, %v336
  %v576 = vmul.f32 %v64, %v340
  %v577 = vmul.f32 %v65, %v344
  %v578 = vmul.f32 %v66, %v348
  %v579 = vmul.f32 %v67, %v352
  %v580 = vmul.f32 %v68, %v356
  %v581 = vmul.f32 %v69, %v360
  %v582 = vmul.f32 %v70, %v364
  %v583 = vmul.f32 %v71, %v368
  %v584 = vmul.f32 %v72, %v372
  %v585 = vmul.f32 %v73, %v376
  %v586 = vmul.f32 %v74, %v380
  %v587 = vmul.f32 %v75, %v384
  %v588 = vmul.f32 %v76, %v388
  %v589 = vmul.f32 %v77, %v392
  %v590 = vmul.f32 %v78, %v396
  %v591 = vmul.f32 %v79, %v400
  %v592 = vmul.f32 %v80, %v404
  %v593 = vmul.f32 %v81, %v408
  %v594 = vmul.f32 %v82, %v412
  %v595 = vmul.f32 %v83, %v416
  %v596 = vmul.f32 %v84, %v420
  %v597 = vmul.f32 %v85, %v424
  %v598 = vmul.f32 %v86, %v428
  %v599 = vmul.f32 %v87, %v432
  %v600 = vmul.f32 %v88, %v436
  %v601 = vmul.f32 %v89, %v440
  %v602 = vmul.f32 %v90, %v444
  %v603 = vmul.f32 %v91, %v448
  %v604 = vmul.f32 %v92, %v452
  %v605 = vmul.f32 %v93, %v456
  %v606 = vmul.f32 %v94, %v460
  %v607 = vmul.f32 %v95, %v464
  %v608 = vmul.f32 %v96, %v468
  %v609 = vmul.f32 %v97, %v472
  %v610 = vmul.f32 %v98, %v476
  %v611 = vmul.f32 %v99, %v480
  %v612 = vmul.f32 %v100, %v484
  %677 = vrot.lane.b32.xlu0 %v549, 32
  %v678 = vpop.permute.xlu0 %677
  %679 = vrot.lane.b32.xlu0 %v550, 32
  %v680 = vpop.permute.xlu0 %679
  %681 = vrot.lane.b32.xlu0 %v551, 32
  %v682 = vpop.permute.xlu0 %681
  %683 = vrot.lane.b32.xlu0 %v552, 32
  %v684 = vpop.permute.xlu0 %683
  %685 = vrot.lane.b32.xlu0 %v553, 32
  %v686 = vpop.permute.xlu0 %685
  %687 = vrot.lane.b32.xlu0 %v554, 32
  %v688 = vpop.permute.xlu0 %687
  %689 = vrot.lane.b32.xlu0 %v555, 32
  %v690 = vpop.permute.xlu0 %689
  %691 = vrot.lane.b32.xlu0 %v556, 32
  %v692 = vpop.permute.xlu0 %691
  %693 = vrot.lane.b32.xlu0 %v557, 32
  %v694 = vpop.permute.xlu0 %693
  %695 = vrot.lane.b32.xlu0 %v558, 32
  %v696 = vpop.permute.xlu0 %695
  %697 = vrot.lane.b32.xlu0 %v559, 32
  %v698 = vpop.permute.xlu0 %697
  %699 = vrot.lane.b32.xlu0 %v560, 32
  %v700 = vpop.permute.xlu0 %699
  %701 = vrot.lane.b32.xlu0 %v561, 32
  %v702 = vpop.permute.xlu0 %701
  %703 = vrot.lane.b32.xlu0 %v562, 32
  %v704 = vpop.permute.xlu0 %703
  %705 = vrot.lane.b32.xlu0 %v563, 32
  %v706 = vpop.permute.xlu0 %705
  %707 = vrot.lane.b32.xlu0 %v564, 32
  %v708 = vpop.permute.xlu0 %707
  %709 = vrot.lane.b32.xlu0 %v565, 32
  %v710 = vpop.permute.xlu0 %709
  %711 = vrot.lane.b32.xlu0 %v566, 32
  %v712 = vpop.permute.xlu0 %711
  %713 = vrot.lane.b32.xlu0 %v567, 32
  %v714 = vpop.permute.xlu0 %713
  %715 = vrot.lane.b32.xlu0 %v568, 32
  %v716 = vpop.permute.xlu0 %715
  %717 = vrot.lane.b32.xlu0 %v569, 32
  %v718 = vpop.permute.xlu0 %717
  %719 = vrot.lane.b32.xlu0 %v570, 32
  %v720 = vpop.permute.xlu0 %719
  %721 = vrot.lane.b32.xlu0 %v571, 32
  %v722 = vpop.permute.xlu0 %721
  %723 = vrot.lane.b32.xlu0 %v572, 32
  %v724 = vpop.permute.xlu0 %723
  %725 = vrot.lane.b32.xlu0 %v573, 32
  %v726 = vpop.permute.xlu0 %725
  %727 = vrot.lane.b32.xlu0 %v574, 32
  %v728 = vpop.permute.xlu0 %727
  %729 = vrot.lane.b32.xlu0 %v575, 32
  %v730 = vpop.permute.xlu0 %729
  %731 = vrot.lane.b32.xlu0 %v576, 32
  %v732 = vpop.permute.xlu0 %731
  %733 = vrot.lane.b32.xlu0 %v577, 32
  %v734 = vpop.permute.xlu0 %733
  %735 = vrot.lane.b32.xlu0 %v578, 32
  %v736 = vpop.permute.xlu0 %735
  %737 = vrot.lane.b32.xlu0 %v579, 32
  %v738 = vpop.permute.xlu0 %737
  %739 = vrot.lane.b32.xlu0 %v580, 32
  %v740 = vpop.permute.xlu0 %739
  %741 = vrot.lane.b32.xlu0 %v581, 32
  %v742 = vpop.permute.xlu0 %741
  %743 = vrot.lane.b32.xlu0 %v582, 32
  %v744 = vpop.permute.xlu0 %743
  %745 = vrot.lane.b32.xlu0 %v583, 32
  %v746 = vpop.permute.xlu0 %745
  %747 = vrot.lane.b32.xlu0 %v584, 32
  %v748 = vpop.permute.xlu0 %747
  %749 = vrot.lane.b32.xlu0 %v585, 32
  %v750 = vpop.permute.xlu0 %749
  %751 = vrot.lane.b32.xlu0 %v586, 32
  %v752 = vpop.permute.xlu0 %751
  %753 = vrot.lane.b32.xlu0 %v587, 32
  %v754 = vpop.permute.xlu0 %753
  %755 = vrot.lane.b32.xlu0 %v588, 32
  %v756 = vpop.permute.xlu0 %755
  %757 = vrot.lane.b32.xlu0 %v589, 32
  %v758 = vpop.permute.xlu0 %757
  %759 = vrot.lane.b32.xlu0 %v590, 32
  %v760 = vpop.permute.xlu0 %759
  %761 = vrot.lane.b32.xlu0 %v591, 32
  %v762 = vpop.permute.xlu0 %761
  %763 = vrot.lane.b32.xlu0 %v592, 32
  %v764 = vpop.permute.xlu0 %763
  %765 = vrot.lane.b32.xlu0 %v593, 32
  %v766 = vpop.permute.xlu0 %765
  %767 = vrot.lane.b32.xlu0 %v594, 32
  %v768 = vpop.permute.xlu0 %767
  %769 = vrot.lane.b32.xlu0 %v595, 32
  %v770 = vpop.permute.xlu0 %769
  %771 = vrot.lane.b32.xlu0 %v596, 32
  %v772 = vpop.permute.xlu0 %771
  %773 = vrot.lane.b32.xlu0 %v597, 32
  %v774 = vpop.permute.xlu0 %773
  %775 = vrot.lane.b32.xlu0 %v598, 32
  %v776 = vpop.permute.xlu0 %775
  %777 = vrot.lane.b32.xlu0 %v599, 32
  %v778 = vpop.permute.xlu0 %777
  %779 = vrot.lane.b32.xlu0 %v600, 32
  %v780 = vpop.permute.xlu0 %779
  %781 = vrot.lane.b32.xlu0 %v601, 32
  %v782 = vpop.permute.xlu0 %781
  %783 = vrot.lane.b32.xlu0 %v602, 32
  %v784 = vpop.permute.xlu0 %783
  %785 = vrot.lane.b32.xlu0 %v603, 32
  %v786 = vpop.permute.xlu0 %785
  %787 = vrot.lane.b32.xlu0 %v604, 32
  %v788 = vpop.permute.xlu0 %787
  %789 = vrot.lane.b32.xlu0 %v605, 32
  %v790 = vpop.permute.xlu0 %789
  %791 = vrot.lane.b32.xlu0 %v606, 32
  %v792 = vpop.permute.xlu0 %791
  %793 = vrot.lane.b32.xlu0 %v607, 32
  %v794 = vpop.permute.xlu0 %793
  %795 = vrot.lane.b32.xlu0 %v608, 32
  %v796 = vpop.permute.xlu0 %795
  %797 = vrot.lane.b32.xlu0 %v609, 32
  %v798 = vpop.permute.xlu0 %797
  %799 = vrot.lane.b32.xlu0 %v610, 32
  %v800 = vpop.permute.xlu0 %799
  %801 = vrot.lane.b32.xlu0 %v611, 32
  %v802 = vpop.permute.xlu0 %801
  %803 = vrot.lane.b32.xlu0 %v612, 32
  %v804 = vpop.permute.xlu0 %803
  %vm869 = vcmask 261120
  %v870 = vsel %vm869, %v37, %v678
  %v871 = vsel %vm869, %v38, %v680
  %v872 = vsel %vm869, %v39, %v682
  %v873 = vsel %vm869, %v40, %v684
  %v874 = vsel %vm869, %v41, %v686
  %v875 = vsel %vm869, %v42, %v688
  %v876 = vsel %vm869, %v43, %v690
  %v877 = vsel %vm869, %v44, %v692
  %v878 = vsel %vm869, %v45, %v694
  %v879 = vsel %vm869, %v46, %v696
  %v880 = vsel %vm869, %v47, %v698
  %v881 = vsel %vm869, %v48, %v700
  %v882 = vsel %vm869, %v49, %v702
  %v883 = vsel %vm869, %v50, %v704
  %v884 = vsel %vm869, %v51, %v706
  %v885 = vsel %vm869, %v52, %v708
  %v886 = vsel %vm869, %v53, %v710
  %v887 = vsel %vm869, %v54, %v712
  %v888 = vsel %vm869, %v55, %v714
  %v889 = vsel %vm869, %v56, %v716
  %v890 = vsel %vm869, %v57, %v718
  %v891 = vsel %vm869, %v58, %v720
  %v892 = vsel %vm869, %v59, %v722
  %v893 = vsel %vm869, %v60, %v724
  %v894 = vsel %vm869, %v61, %v726
  %v895 = vsel %vm869, %v62, %v728
  %v896 = vsel %vm869, %v63, %v730
  %v897 = vsel %vm869, %v64, %v732
  %v898 = vsel %vm869, %v65, %v734
  %v899 = vsel %vm869, %v66, %v736
  %v900 = vsel %vm869, %v67, %v738
  %v901 = vsel %vm869, %v68, %v740
  %v902 = vsel %vm869, %v69, %v742
  %v903 = vsel %vm869, %v70, %v744
  %v904 = vsel %vm869, %v71, %v746
  %v905 = vsel %vm869, %v72, %v748
  %v906 = vsel %vm869, %v73, %v750
  %v907 = vsel %vm869, %v74, %v752
  %v908 = vsel %vm869, %v75, %v754
  %v909 = vsel %vm869, %v76, %v756
  %v910 = vsel %vm869, %v77, %v758
  %v911 = vsel %vm869, %v78, %v760
  %v912 = vsel %vm869, %v79, %v762
  %v913 = vsel %vm869, %v80, %v764
  %v914 = vsel %vm869, %v81, %v766
  %v915 = vsel %vm869, %v82, %v768
  %v916 = vsel %vm869, %v83, %v770
  %v917 = vsel %vm869, %v84, %v772
  %v918 = vsel %vm869, %v85, %v774
  %v919 = vsel %vm869, %v86, %v776
  %v920 = vsel %vm869, %v87, %v778
  %v921 = vsel %vm869, %v88, %v780
  %v922 = vsel %vm869, %v89, %v782
  %v923 = vsel %vm869, %v90, %v784
  %v924 = vsel %vm869, %v91, %v786
  %v925 = vsel %vm869, %v92, %v788
  %v926 = vsel %vm869, %v93, %v790
  %v927 = vsel %vm869, %v94, %v792
  %v928 = vsel %vm869, %v95, %v794
  %v929 = vsel %vm869, %v96, %v796
  %v930 = vsel %vm869, %v97, %v798
  %v931 = vsel %vm869, %v98, %v800
  %v932 = vsel %vm869, %v99, %v802
  %v933 = vsel %vm869, %v100, %v804
  %v934 = vpack.c.bf16 %v871, %v870
  %v935 = vpack.c.bf16 %v873, %v872
  %v936 = vpack.c.bf16 %v875, %v874
  %v937 = vpack.c.bf16 %v877, %v876
  %v938 = vpack.c.bf16 %v879, %v878
  %v939 = vpack.c.bf16 %v881, %v880
  %v940 = vpack.c.bf16 %v883, %v882
  %v941 = vpack.c.bf16 %v885, %v884
  %v942 = vpack.c.bf16 %v887, %v886
  %v943 = vpack.c.bf16 %v889, %v888
  %v944 = vpack.c.bf16 %v891, %v890
  %v945 = vpack.c.bf16 %v893, %v892
  %v946 = vpack.c.bf16 %v895, %v894
  %v947 = vpack.c.bf16 %v897, %v896
  %v948 = vpack.c.bf16 %v899, %v898
  %v949 = vpack.c.bf16 %v901, %v900
  %v950 = vpack.c.bf16 %v903, %v902
  %v951 = vpack.c.bf16 %v905, %v904
  %v952 = vpack.c.bf16 %v907, %v906
  %v953 = vpack.c.bf16 %v909, %v908
  %v954 = vpack.c.bf16 %v911, %v910
  %v955 = vpack.c.bf16 %v913, %v912
  %v956 = vpack.c.bf16 %v915, %v914
  %v957 = vpack.c.bf16 %v917, %v916
  %v958 = vpack.c.bf16 %v919, %v918
  %v959 = vpack.c.bf16 %v921, %v920
  %v960 = vpack.c.bf16 %v923, %v922
  %v961 = vpack.c.bf16 %v925, %v924
  %v962 = vpack.c.bf16 %v927, %v926
  %v963 = vpack.c.bf16 %v929, %v928
  %v964 = vpack.c.bf16 %v931, %v930
  %v965 = vpack.c.bf16 %v933, %v932
  %v966 = vld [vmem:[%s2] sm:$0xf]
  %v967 = vld [vmem:[%s2 + $0x4] sm:$0xf]
  %v968 = vld [vmem:[%s2 + $0x8] sm:$0xf]
  %v969 = vld [vmem:[%s2 + $0xc] sm:$0xf]
  %v970 = vld [vmem:[%s2 + $0x10] sm:$0xf]
  %v971 = vld [vmem:[%s2 + $0x14] sm:$0xf]
  %v972 = vld [vmem:[%s2 + $0x18] sm:$0xf]
  %v973 = vld [vmem:[%s2 + $0x1c] sm:$0xf]
  %v982 = vunpack.c.l.b16 %v966
  %v983 = vunpack.c.l.b16 %v967
  %v984 = vunpack.c.l.b16 %v968
  %v985 = vunpack.c.l.b16 %v969
  %v986 = vunpack.c.l.b16 %v970
  %v987 = vunpack.c.l.b16 %v971
  %v988 = vunpack.c.l.b16 %v972
  %v989 = vunpack.c.l.b16 %v973
  %v990 = vpack.c.b16 %v983, %v982
  %v991 = vpack.c.b16 %v985, %v984
  %v992 = vpack.c.b16 %v987, %v986
  %v993 = vpack.c.b16 %v989, %v988
  %vm998 = vcmask 523264
  %v1000 = vsel %vm998, %v934, 0
  %v1003 = vsel %vm998, %v935, 0
  %v1006 = vsel %vm998, %v936, 0
  %v1009 = vsel %vm998, %v937, 0
  %v1012 = vsel %vm998, %v938, 0
  %v1015 = vsel %vm998, %v939, 0
  %v1018 = vsel %vm998, %v940, 0
  %v1021 = vsel %vm998, %v941, 0
  %v1024 = vsel %vm998, %v942, 0
  %v1027 = vsel %vm998, %v943, 0
  %v1030 = vsel %vm998, %v944, 0
  %v1033 = vsel %vm998, %v945, 0
  %v1036 = vsel %vm998, %v946, 0
  %v1039 = vsel %vm998, %v947, 0
  %v1042 = vsel %vm998, %v948, 0
  %v1045 = vsel %vm998, %v949, 0
  %v1048 = vsel %vm998, %v950, 0
  %v1051 = vsel %vm998, %v951, 0
  %v1054 = vsel %vm998, %v952, 0
  %v1057 = vsel %vm998, %v953, 0
  %v1060 = vsel %vm998, %v954, 0
  %v1063 = vsel %vm998, %v955, 0
  %v1066 = vsel %vm998, %v956, 0
  %v1069 = vsel %vm998, %v957, 0
  %v1072 = vsel %vm998, %v958, 0
  %v1075 = vsel %vm998, %v959, 0
  %v1078 = vsel %vm998, %v960, 0
  %v1081 = vsel %vm998, %v961, 0
  %v1084 = vsel %vm998, %v962, 0
  %v1087 = vsel %vm998, %v963, 0
  %v1090 = vsel %vm998, %v964, 0
  %v1093 = vsel %vm998, %v965, 0
  %1095 = vmatprep.subr.bf16.mxu0 0
  %1096 = vmatpush1.bf16.msra.mxu0 %v990
  %1097 = vmatprep.subr.bf16.mxu0 0
  %1098 = vmatpush1.bf16.msra.mxu0 %v991
  %1099 = vmatprep.subr.bf16.mxu0 0
  %1100 = vmatpush1.bf16.msra.mxu0 %v992
  %1101 = vmatprep.subr.bf16.mxu0 0
  %1102 = vmatpush1.bf16.msra.mxu0 %v993
  %1103 = vmatprep.subr.bf16.mxu0 0
  %1104 = vmatpush1.bf16.msra.mxu0 0
  %1105 = vmatprep.subr.bf16.mxu0 0
  %1106 = vmatpush1.bf16.msra.mxu0 0
  %1107 = vmatprep.subr.bf16.mxu0 0
  %1108 = vmatpush1.bf16.msra.mxu0 0
  %1109 = vmatprep.subr.bf16.mxu0 0
  %1110 = vmatpush1.bf16.msra.mxu0 0
  %1111 = vmatprep.subr.bf16.mxu0 0
  %1112 = vmatpush1.bf16.msra.mxu0 0
  %1113 = vmatprep.subr.bf16.mxu0 0
  %1114 = vmatpush1.bf16.msra.mxu0 0
  %1115 = vmatprep.subr.bf16.mxu0 0
  %1116 = vmatpush1.bf16.msra.mxu0 0
  %1117 = vmatprep.subr.bf16.mxu0 0
  %1118 = vmatpush1.bf16.msra.mxu0 0
  %1119 = vmatprep.subr.bf16.mxu0 0
  %1120 = vmatpush1.bf16.msra.mxu0 0
  %1121 = vmatprep.subr.bf16.mxu0 0
  %1122 = vmatpush1.bf16.msra.mxu0 0
  %1123 = vmatprep.subr.bf16.mxu0 0
  %1124 = vmatpush1.bf16.msra.mxu0 0
  %1125 = vmatprep.subr.bf16.mxu0 0
  %1126 = vmatpush1.bf16.msra.mxu0 0
  %1127 = vmatprep.mubr.bf16.mxu0 0
  %1128 = vmatmul.mubr.bf16.gmra.mrb[0].mxu0 %v1000
  %v1129 = vpop.f32.mrb[0].mxu0
  %v1130 = vadd.f32 0.0, %v1129
  %v1131 = vpop.f32.mrb[0].mxu0
  %v1132 = vpop.f32.mrb[0].mxu0
  %v1133 = vadd.f32 0.0, %v1132
  %v1134 = vpop.f32.mrb[0].mxu0
  %1135 = vmatprep.mubr.bf16.mxu0 0
  %1136 = vmatmul.mubr.bf16.gmra.mrb[0].mxu0 %v1003
  %v1137 = vpop.f32.mrb[0].mxu0
  %v1138 = vadd.f32 0.0, %v1137
  %v1139 = vpop.f32.mrb[0].mxu0
  %v1140 = vpop.f32.mrb[0].mxu0
  %v1141 = vadd.f32 0.0, %v1140
  %v1142 = vpop.f32.mrb[0].mxu0
  %1143 = vmatprep.mubr.bf16.mxu0 0
  %1144 = vmatmul.mubr.bf16.gmra.mrb[0].mxu0 %v1006
  %v1145 = vpop.f32.mrb[0].mxu0
  %v1146 = vadd.f32 0.0, %v1145
  %v1147 = vpop.f32.mrb[0].mxu0
  %v1148 = vpop.f32.mrb[0].mxu0
  %v1149 = vadd.f32 0.0, %v1148
  %v1150 = vpop.f32.mrb[0].mxu0
  %1151 = vmatprep.mubr.bf16.mxu0 0
  %1152 = vmatmul.mubr.bf16.gmra.mrb[0].mxu0 %v1009
  %v1153 = vpop.f32.mrb[0].mxu0
  %v1154 = vadd.f32 0.0, %v1153
  %v1155 = vpop.f32.mrb[0].mxu0
  %v1156 = vpop.f32.mrb[0].mxu0
  %v1157 = vadd.f32 0.0, %v1156
  %v1158 = vpop.f32.mrb[0].mxu0
  %1159 = vmatprep.mubr.bf16.mxu0 0
  %1160 = vmatmul.mubr.bf16.gmra.mrb[0].mxu0 %v1012
  %v1161 = vpop.f32.mrb[0].mxu0
  %v1162 = vadd.f32 0.0, %v1161
  %v1163 = vpop.f32.mrb[0].mxu0
  %v1164 = vpop.f32.mrb[0].mxu0
  %v1165 = vadd.f32 0.0, %v1164
  %v1166 = vpop.f32.mrb[0].mxu0
  %1167 = vmatprep.mubr.bf16.mxu0 0
  %1168 = vmatmul.mubr.bf16.gmra.mrb[0].mxu0 %v1015
  %v1169 = vpop.f32.mrb[0].mxu0
  %v1170 = vadd.f32 0.0, %v1169
  %v1171 = vpop.f32.mrb[0].mxu0
  %v1172 = vpop.f32.mrb[0].mxu0
  %v1173 = vadd.f32 0.0, %v1172
  %v1174 = vpop.f32.mrb[0].mxu0
  %1175 = vmatprep.mubr.bf16.mxu0 0
  %1176 = vmatmul.mubr.bf16.gmra.mrb[0].mxu0 %v1018
  %v1177 = vpop.f32.mrb[0].mxu0
  %v1178 = vadd.f32 0.0, %v1177
  %v1179 = vpop.f32.mrb[0].mxu0
  %v1180 = vpop.f32.mrb[0].mxu0
  %v1181 = vadd.f32 0.0, %v1180
  %v1182 = vpop.f32.mrb[0].mxu0
  %1183 = vmatprep.mubr.bf16.mxu0 0
  %1184 = vmatmul.mubr.bf16.gmra.mrb[0].mxu0 %v1021
  %v1185 = vpop.f32.mrb[0].mxu0
  %v1186 = vadd.f32 0.0, %v1185
  %v1187 = vpop.f32.mrb[0].mxu0
  %v1188 = vpop.f32.mrb[0].mxu0
  %v1189 = vadd.f32 0.0, %v1188
  %v1190 = vpop.f32.mrb[0].mxu0
  %1191 = vmatprep.mubr.bf16.mxu0 0
  %1192 = vmatmul.mubr.bf16.gmra.mrb[0].mxu0 %v1024
  %v1193 = vpop.f32.mrb[0].mxu0
  %v1194 = vadd.f32 0.0, %v1193
  %v1195 = vpop.f32.mrb[0].mxu0
  %v1196 = vpop.f32.mrb[0].mxu0
  %v1197 = vadd.f32 0.0, %v1196
  %v1198 = vpop.f32.mrb[0].mxu0
  %1199 = vmatprep.mubr.bf16.mxu0 0
  %1200 = vmatmul.mubr.bf16.gmra.mrb[0].mxu0 %v1027
  %v1201 = vpop.f32.mrb[0].mxu0
  %v1202 = vadd.f32 0.0, %v1201
  %v1203 = vpop.f32.mrb[0].mxu0
  %v1204 = vpop.f32.mrb[0].mxu0
  %v1205 = vadd.f32 0.0, %v1204
  %v1206 = vpop.f32.mrb[0].mxu0
  %1207 = vmatprep.mubr.bf16.mxu0 0
  %1208 = vmatmul.mubr.bf16.gmra.mrb[0].mxu0 %v1030
  %v1209 = vpop.f32.mrb[0].mxu0
  %v1210 = vadd.f32 0.0, %v1209
  %v1211 = vpop.f32.mrb[0].mxu0
  %v1212 = vpop.f32.mrb[0].mxu0
  %v1213 = vadd.f32 0.0, %v1212
  %v1214 = vpop.f32.mrb[0].mxu0
  %1215 = vmatprep.mubr.bf16.mxu0 0
  %1216 = vmatmul.mubr.bf16.gmra.mrb[0].mxu0 %v1033
  %v1217 = vpop.f32.mrb[0].mxu0
  %v1218 = vadd.f32 0.0, %v1217
  %v1219 = vpop.f32.mrb[0].mxu0
  %v1220 = vpop.f32.mrb[0].mxu0
  %v1221 = vadd.f32 0.0, %v1220
  %v1222 = vpop.f32.mrb[0].mxu0
  %1223 = vmatprep.mubr.bf16.mxu0 0
  %1224 = vmatmul.mubr.bf16.gmra.mrb[0].mxu0 %v1036
  %v1225 = vpop.f32.mrb[0].mxu0
  %v1226 = vadd.f32 0.0, %v1225
  %v1227 = vpop.f32.mrb[0].mxu0
  %v1228 = vpop.f32.mrb[0].mxu0
  %v1229 = vadd.f32 0.0, %v1228
  %v1230 = vpop.f32.mrb[0].mxu0
  %1231 = vmatprep.mubr.bf16.mxu0 0
  %1232 = vmatmul.mubr.bf16.gmra.mrb[0].mxu0 %v1039
  %v1233 = vpop.f32.mrb[0].mxu0
  %v1234 = vadd.f32 0.0, %v1233
  %v1235 = vpop.f32.mrb[0].mxu0
  %v1236 = vpop.f32.mrb[0].mxu0
  %v1237 = vadd.f32 0.0, %v1236
  %v1238 = vpop.f32.mrb[0].mxu0
  %1239 = vmatprep.mubr.bf16.mxu0 0
  %1240 = vmatmul.mubr.bf16.gmra.mrb[0].mxu0 %v1042
  %v1241 = vpop.f32.mrb[0].mxu0
  %v1242 = vadd.f32 0.0, %v1241
  %v1243 = vpop.f32.mrb[0].mxu0
  %v1244 = vpop.f32.mrb[0].mxu0
  %v1245 = vadd.f32 0.0, %v1244
  %v1246 = vpop.f32.mrb[0].mxu0
  %1247 = vmatprep.mubr.bf16.mxu0 0
  %1248 = vmatmul.mubr.bf16.gmra.mrb[0].mxu0 %v1045
  %v1249 = vpop.f32.mrb[0].mxu0
  %v1250 = vadd.f32 0.0, %v1249
  %v1251 = vpop.f32.mrb[0].mxu0
  %v1252 = vpop.f32.mrb[0].mxu0
  %v1253 = vadd.f32 0.0, %v1252
  %v1254 = vpop.f32.mrb[0].mxu0
  %1255 = vmatprep.mubr.bf16.mxu0 0
  %1256 = vmatmul.mubr.bf16.gmra.mrb[0].mxu0 %v1048
  %v1257 = vpop.f32.mrb[0].mxu0
  %v1258 = vadd.f32 0.0, %v1257
  %v1259 = vpop.f32.mrb[0].mxu0
  %v1260 = vpop.f32.mrb[0].mxu0
  %v1261 = vadd.f32 0.0, %v1260
  %v1262 = vpop.f32.mrb[0].mxu0
  %1263 = vmatprep.mubr.bf16.mxu0 0
  %1264 = vmatmul.mubr.bf16.gmra.mrb[0].mxu0 %v1051
  %v1265 = vpop.f32.mrb[0].mxu0
  %v1266 = vadd.f32 0.0, %v1265
  %v1267 = vpop.f32.mrb[0].mxu0
  %v1268 = vpop.f32.mrb[0].mxu0
  %v1269 = vadd.f32 0.0, %v1268
  %v1270 = vpop.f32.mrb[0].mxu0
  %1271 = vmatprep.mubr.bf16.mxu0 0
  %1272 = vmatmul.mubr.bf16.gmra.mrb[0].mxu0 %v1054
  %v1273 = vpop.f32.mrb[0].mxu0
  %v1274 = vadd.f32 0.0, %v1273
  %v1275 = vpop.f32.mrb[0].mxu0
  %v1276 = vpop.f32.mrb[0].mxu0
  %v1277 = vadd.f32 0.0, %v1276
  %v1278 = vpop.f32.mrb[0].mxu0
  %1279 = vmatprep.mubr.bf16.mxu0 0
  %1280 = vmatmul.mubr.bf16.gmra.mrb[0].mxu0 %v1057
  %v1281 = vpop.f32.mrb[0].mxu0
  %v1282 = vadd.f32 0.0, %v1281
  %v1283 = vpop.f32.mrb[0].mxu0
  %v1284 = vpop.f32.mrb[0].mxu0
  %v1285 = vadd.f32 0.0, %v1284
  %v1286 = vpop.f32.mrb[0].mxu0
  %1287 = vmatprep.mubr.bf16.mxu0 0
  %1288 = vmatmul.mubr.bf16.gmra.mrb[0].mxu0 %v1060
  %v1289 = vpop.f32.mrb[0].mxu0
  %v1290 = vadd.f32 0.0, %v1289
  %v1291 = vpop.f32.mrb[0].mxu0
  %v1292 = vpop.f32.mrb[0].mxu0
  %v1293 = vadd.f32 0.0, %v1292
  %v1294 = vpop.f32.mrb[0].mxu0
  %1295 = vmatprep.mubr.bf16.mxu0 0
  %1296 = vmatmul.mubr.bf16.gmra.mrb[0].mxu0 %v1063
  %v1297 = vpop.f32.mrb[0].mxu0
  %v1298 = vadd.f32 0.0, %v1297
  %v1299 = vpop.f32.mrb[0].mxu0
  %v1300 = vpop.f32.mrb[0].mxu0
  %v1301 = vadd.f32 0.0, %v1300
  %v1302 = vpop.f32.mrb[0].mxu0
  %1303 = vmatprep.mubr.bf16.mxu0 0
  %1304 = vmatmul.mubr.bf16.gmra.mrb[0].mxu0 %v1066
  %v1305 = vpop.f32.mrb[0].mxu0
  %v1306 = vadd.f32 0.0, %v1305
  %v1307 = vpop.f32.mrb[0].mxu0
  %v1308 = vpop.f32.mrb[0].mxu0
  %v1309 = vadd.f32 0.0, %v1308
  %v1310 = vpop.f32.mrb[0].mxu0
  %1311 = vmatprep.mubr.bf16.mxu0 0
  %1312 = vmatmul.mubr.bf16.gmra.mrb[0].mxu0 %v1069
  %v1313 = vpop.f32.mrb[0].mxu0
  %v1314 = vadd.f32 0.0, %v1313
  %v1315 = vpop.f32.mrb[0].mxu0
  %v1316 = vpop.f32.mrb[0].mxu0
  %v1317 = vadd.f32 0.0, %v1316
  %v1318 = vpop.f32.mrb[0].mxu0
  %1319 = vmatprep.mubr.bf16.mxu0 0
  %1320 = vmatmul.mubr.bf16.gmra.mrb[0].mxu0 %v1072
  %v1321 = vpop.f32.mrb[0].mxu0
  %v1322 = vadd.f32 0.0, %v1321
  %v1323 = vpop.f32.mrb[0].mxu0
  %v1324 = vpop.f32.mrb[0].mxu0
  %v1325 = vadd.f32 0.0, %v1324
  %v1326 = vpop.f32.mrb[0].mxu0
  %1327 = vmatprep.mubr.bf16.mxu0 0
  %1328 = vmatmul.mubr.bf16.gmra.mrb[0].mxu0 %v1075
  %v1329 = vpop.f32.mrb[0].mxu0
  %v1330 = vadd.f32 0.0, %v1329
  %v1331 = vpop.f32.mrb[0].mxu0
  %v1332 = vpop.f32.mrb[0].mxu0
  %v1333 = vadd.f32 0.0, %v1332
  %v1334 = vpop.f32.mrb[0].mxu0
  %1335 = vmatprep.mubr.bf16.mxu0 0
  %1336 = vmatmul.mubr.bf16.gmra.mrb[0].mxu0 %v1078
  %v1337 = vpop.f32.mrb[0].mxu0
  %v1338 = vadd.f32 0.0, %v1337
  %v1339 = vpop.f32.mrb[0].mxu0
  %v1340 = vpop.f32.mrb[0].mxu0
  %v1341 = vadd.f32 0.0, %v1340
  %v1342 = vpop.f32.mrb[0].mxu0
  %1343 = vmatprep.mubr.bf16.mxu0 0
  %1344 = vmatmul.mubr.bf16.gmra.mrb[0].mxu0 %v1081
  %v1345 = vpop.f32.mrb[0].mxu0
  %v1346 = vadd.f32 0.0, %v1345
  %v1347 = vpop.f32.mrb[0].mxu0
  %v1348 = vpop.f32.mrb[0].mxu0
  %v1349 = vadd.f32 0.0, %v1348
  %v1350 = vpop.f32.mrb[0].mxu0
  %1351 = vmatprep.mubr.bf16.mxu0 0
  %1352 = vmatmul.mubr.bf16.gmra.mrb[0].mxu0 %v1084
  %v1353 = vpop.f32.mrb[0].mxu0
  %v1354 = vadd.f32 0.0, %v1353
  %v1355 = vpop.f32.mrb[0].mxu0
  %v1356 = vpop.f32.mrb[0].mxu0
  %v1357 = vadd.f32 0.0, %v1356
  %v1358 = vpop.f32.mrb[0].mxu0
  %1359 = vmatprep.mubr.bf16.mxu0 0
  %1360 = vmatmul.mubr.bf16.gmra.mrb[0].mxu0 %v1087
  %v1361 = vpop.f32.mrb[0].mxu0
  %v1362 = vadd.f32 0.0, %v1361
  %v1363 = vpop.f32.mrb[0].mxu0
  %v1364 = vpop.f32.mrb[0].mxu0
  %v1365 = vadd.f32 0.0, %v1364
  %v1366 = vpop.f32.mrb[0].mxu0
  %1367 = vmatprep.mubr.bf16.mxu0 0
  %1368 = vmatmul.mubr.bf16.gmra.mrb[0].mxu0 %v1090
  %v1369 = vpop.f32.mrb[0].mxu0
  %v1370 = vadd.f32 0.0, %v1369
  %v1371 = vpop.f32.mrb[0].mxu0
  %v1372 = vpop.f32.mrb[0].mxu0
  %v1373 = vadd.f32 0.0, %v1372
  %v1374 = vpop.f32.mrb[0].mxu0
  %1375 = vmatprep.mubr.bf16.mxu0 0
  %1376 = vmatmul.mubr.bf16.gmra.mrb[0].mxu0 %v1093
  %v1377 = vpop.f32.mrb[0].mxu0
  %v1378 = vadd.f32 0.0, %v1377
  %v1379 = vpop.f32.mrb[0].mxu0
  %v1380 = vpop.f32.mrb[0].mxu0
  %v1381 = vadd.f32 0.0, %v1380
  %v1382 = vpop.f32.mrb[0].mxu0
  %1383 = vdwg.mxu0
  %v1384 = vpack.c.bf16 %v101, %v101
  %v1385 = vpack.c.bf16 %v102, %v102
  %v1386 = vpack.c.bf16 %v103, %v103
  %v1387 = vpack.c.bf16 %v104, %v104
  %v1388 = vpack.c.bf16 %v105, %v105
  %v1389 = vpack.c.bf16 %v106, %v106
  %v1390 = vpack.c.bf16 %v107, %v107
  %v1391 = vpack.c.bf16 %v108, %v108
  %v1392 = vpack.c.bf16 %v109, %v109
  %v1393 = vpack.c.bf16 %v110, %v110
  %v1394 = vpack.c.bf16 %v111, %v111
  %v1395 = vpack.c.bf16 %v112, %v112
  %v1396 = vpack.c.bf16 %v113, %v113
  %v1397 = vpack.c.bf16 %v114, %v114
  %v1398 = vpack.c.bf16 %v115, %v115
  %v1399 = vpack.c.bf16 %v116, %v116
  %v1400 = vpack.c.bf16 %v117, %v117
  %v1401 = vpack.c.bf16 %v118, %v118
  %v1402 = vpack.c.bf16 %v119, %v119
  %v1403 = vpack.c.bf16 %v120, %v120
  %v1404 = vpack.c.bf16 %v121, %v121
  %v1405 = vpack.c.bf16 %v122, %v122
  %v1406 = vpack.c.bf16 %v123, %v123
  %v1407 = vpack.c.bf16 %v124, %v124
  %v1408 = vpack.c.bf16 %v125, %v125
  %v1409 = vpack.c.bf16 %v126, %v126
  %v1410 = vpack.c.bf16 %v127, %v127
  %v1411 = vpack.c.bf16 %v128, %v128
  %v1412 = vpack.c.bf16 %v129, %v129
  %v1413 = vpack.c.bf16 %v130, %v130
  %v1414 = vpack.c.bf16 %v131, %v131
  %v1415 = vpack.c.bf16 %v132, %v132
  %v1416 = vpack.c.bf16 %v133, %v133
  %v1417 = vpack.c.bf16 %v134, %v134
  %v1418 = vpack.c.bf16 %v135, %v135
  %v1419 = vpack.c.bf16 %v136, %v136
  %v1420 = vpack.c.bf16 %v137, %v137
  %v1421 = vpack.c.bf16 %v138, %v138
  %v1422 = vpack.c.bf16 %v139, %v139
  %v1423 = vpack.c.bf16 %v140, %v140
  %v1424 = vpack.c.bf16 %v141, %v141
  %v1425 = vpack.c.bf16 %v142, %v142
  %v1426 = vpack.c.bf16 %v143, %v143
  %v1427 = vpack.c.bf16 %v144, %v144
  %v1428 = vpack.c.bf16 %v145, %v145
  %v1429 = vpack.c.bf16 %v146, %v146
  %v1430 = vpack.c.bf16 %v147, %v147
  %v1431 = vpack.c.bf16 %v148, %v148
  %v1432 = vpack.c.bf16 %v149, %v149
  %v1433 = vpack.c.bf16 %v150, %v150
  %v1434 = vpack.c.bf16 %v151, %v151
  %v1435 = vpack.c.bf16 %v152, %v152
  %v1436 = vpack.c.bf16 %v153, %v153
  %v1437 = vpack.c.bf16 %v154, %v154
  %v1438 = vpack.c.bf16 %v155, %v155
  %v1439 = vpack.c.bf16 %v156, %v156
  %v1440 = vpack.c.bf16 %v157, %v157
  %v1441 = vpack.c.bf16 %v158, %v158
  %v1442 = vpack.c.bf16 %v159, %v159
  %v1443 = vpack.c.bf16 %v160, %v160
  %v1444 = vpack.c.bf16 %v161, %v161
  %v1445 = vpack.c.bf16 %v162, %v162
  %v1446 = vpack.c.bf16 %v163, %v163
  %v1447 = vpack.c.bf16 %v164, %v164
  %v1448 = vld [vmem:[%s3] sm:$0xf]
  %v1449 = vld [vmem:[%s3 + $0x4] sm:$0xf]
  %v1450 = vld [vmem:[%s3 + $0x8] sm:$0xf]
  %v1451 = vld [vmem:[%s3 + $0xc] sm:$0xf]
  %v1516 = vunpack.c.l.b16 %v1384
  %v1517 = vunpack.c.l.b16 %v1385
  %v1518 = vunpack.c.l.b16 %v1386
  %v1519 = vunpack.c.l.b16 %v1387
  %v1520 = vunpack.c.l.b16 %v1388
  %v1521 = vunpack.c.l.b16 %v1389
  %v1522 = vunpack.c.l.b16 %v1390
  %v1523 = vunpack.c.l.b16 %v1391
  %v1524 = vunpack.c.l.b16 %v1392
  %v1525 = vunpack.c.l.b16 %v1393
  %v1526 = vunpack.c.l.b16 %v1394
  %v1527 = vunpack.c.l.b16 %v1395
  %v1528 = vunpack.c.l.b16 %v1396
  %v1529 = vunpack.c.l.b16 %v1397
  %v1530 = vunpack.c.l.b16 %v1398
  %v1531 = vunpack.c.l.b16 %v1399
  %v1532 = vunpack.c.l.b16 %v1400
  %v1533 = vunpack.c.l.b16 %v1401
  %v1534 = vunpack.c.l.b16 %v1402
  %v1535 = vunpack.c.l.b16 %v1403
  %v1536 = vunpack.c.l.b16 %v1404
  %v1537 = vunpack.c.l.b16 %v1405
  %v1538 = vunpack.c.l.b16 %v1406
  %v1539 = vunpack.c.l.b16 %v1407
  %v1540 = vunpack.c.l.b16 %v1408
  %v1541 = vunpack.c.l.b16 %v1409
  %v1542 = vunpack.c.l.b16 %v1410
  %v1543 = vunpack.c.l.b16 %v1411
  %v1544 = vunpack.c.l.b16 %v1412
  %v1545 = vunpack.c.l.b16 %v1413
  %v1546 = vunpack.c.l.b16 %v1414
  %v1547 = vunpack.c.l.b16 %v1415
  %v1548 = vunpack.c.l.b16 %v1416
  %v1549 = vunpack.c.l.b16 %v1417
  %v1550 = vunpack.c.l.b16 %v1418
  %v1551 = vunpack.c.l.b16 %v1419
  %v1552 = vunpack.c.l.b16 %v1420
  %v1553 = vunpack.c.l.b16 %v1421
  %v1554 = vunpack.c.l.b16 %v1422
  %v1555 = vunpack.c.l.b16 %v1423
  %v1556 = vunpack.c.l.b16 %v1424
  %v1557 = vunpack.c.l.b16 %v1425
  %v1558 = vunpack.c.l.b16 %v1426
  %v1559 = vunpack.c.l.b16 %v1427
  %v1560 = vunpack.c.l.b16 %v1428
  %v1561 = vunpack.c.l.b16 %v1429
  %v1562 = vunpack.c.l.b16 %v1430
  %v1563 = vunpack.c.l.b16 %v1431
  %v1564 = vunpack.c.l.b16 %v1432
  %v1565 = vunpack.c.l.b16 %v1433
  %v1566 = vunpack.c.l.b16 %v1434
  %v1567 = vunpack.c.l.b16 %v1435
  %v1568 = vunpack.c.l.b16 %v1436
  %v1569 = vunpack.c.l.b16 %v1437
  %v1570 = vunpack.c.l.b16 %v1438
  %v1571 = vunpack.c.l.b16 %v1439
  %v1572 = vunpack.c.l.b16 %v1440
  %v1573 = vunpack.c.l.b16 %v1441
  %v1574 = vunpack.c.l.b16 %v1442
  %v1575 = vunpack.c.l.b16 %v1443
  %v1576 = vunpack.c.l.b16 %v1444
  %v1577 = vunpack.c.l.b16 %v1445
  %v1578 = vunpack.c.l.b16 %v1446
  %v1579 = vunpack.c.l.b16 %v1447
  %v1580 = vrot.slane %v1517, 7
  %vm1581 = vcmask 1041409
  %v1582 = vsel %vm1581, %v1580, %v1516
  %v1583 = vrot.slane %v1518, 6
  %vm1584 = vcmask 1042434
  %v1585 = vsel %vm1584, %v1583, %v1582
  %v1586 = vrot.slane %v1519, 5
  %vm1587 = vcmask 1043459
  %v1588 = vsel %vm1587, %v1586, %v1585
  %v1589 = vrot.slane %v1520, 4
  %vm1590 = vcmask 1044484
  %v1591 = vsel %vm1590, %v1589, %v1588
  %v1592 = vrot.slane %v1521, 3
  %vm1593 = vcmask 1045509
  %v1594 = vsel %vm1593, %v1592, %v1591
  %v1595 = vrot.slane %v1522, 2
  %vm1596 = vcmask 1046534
  %v1597 = vsel %vm1596, %v1595, %v1594
  %v1598 = vrot.slane %v1523, 1
  %vm1599 = vcmask 1047559
  %v1600 = vsel %vm1599, %v1598, %v1597
  %v1601 = vrot.slane %v1525, 7
  %v1602 = vsel %vm1581, %v1601, %v1524
  %v1603 = vrot.slane %v1526, 6
  %v1604 = vsel %vm1584, %v1603, %v1602
  %v1605 = vrot.slane %v1527, 5
  %v1606 = vsel %vm1587, %v1605, %v1604
  %v1607 = vrot.slane %v1528, 4
  %v1608 = vsel %vm1590, %v1607, %v1606
  %v1609 = vrot.slane %v1529, 3
  %v1610 = vsel %vm1593, %v1609, %v1608
  %v1611 = vrot.slane %v1530, 2
  %v1612 = vsel %vm1596, %v1611, %v1610
  %v1613 = vrot.slane %v1531, 1
  %v1614 = vsel %vm1599, %v1613, %v1612
  %v1615 = vrot.slane %v1533, 7
  %v1616 = vsel %vm1581, %v1615, %v1532
  %v1617 = vrot.slane %v1534, 6
  %v1618 = vsel %vm1584, %v1617, %v1616
  %v1619 = vrot.slane %v1535, 5
  %v1620 = vsel %vm1587, %v1619, %v1618
  %v1621 = vrot.slane %v1536, 4
  %v1622 = vsel %vm1590, %v1621, %v1620
  %v1623 = vrot.slane %v1537, 3
  %v1624 = vsel %vm1593, %v1623, %v1622
  %v1625 = vrot.slane %v1538, 2
  %v1626 = vsel %vm1596, %v1625, %v1624
  %v1627 = vrot.slane %v1539, 1
  %v1628 = vsel %vm1599, %v1627, %v1626
  %v1629 = vrot.slane %v1541, 7
  %v1630 = vsel %vm1581, %v1629, %v1540
  %v1631 = vrot.slane %v1542, 6
  %v1632 = vsel %vm1584, %v1631, %v1630
  %v1633 = vrot.slane %v1543, 5
  %v1634 = vsel %vm1587, %v1633, %v1632
  %v1635 = vrot.slane %v1544, 4
  %v1636 = vsel %vm1590, %v1635, %v1634
  %v1637 = vrot.slane %v1545, 3
  %v1638 = vsel %vm1593, %v1637, %v1636
  %v1639 = vrot.slane %v1546, 2
  %v1640 = vsel %vm1596, %v1639, %v1638
  %v1641 = vrot.slane %v1547, 1
  %v1642 = vsel %vm1599, %v1641, %v1640
  %v1643 = vrot.slane %v1549, 7
  %v1644 = vsel %vm1581, %v1643, %v1548
  %v1645 = vrot.slane %v1550, 6
  %v1646 = vsel %vm1584, %v1645, %v1644
  %v1647 = vrot.slane %v1551, 5
  %v1648 = vsel %vm1587, %v1647, %v1646
  %v1649 = vrot.slane %v1552, 4
  %v1650 = vsel %vm1590, %v1649, %v1648
  %v1651 = vrot.slane %v1553, 3
  %v1652 = vsel %vm1593, %v1651, %v1650
  %v1653 = vrot.slane %v1554, 2
  %v1654 = vsel %vm1596, %v1653, %v1652
  %v1655 = vrot.slane %v1555, 1
  %v1656 = vsel %vm1599, %v1655, %v1654
  %v1657 = vrot.slane %v1557, 7
  %v1658 = vsel %vm1581, %v1657, %v1556
  %v1659 = vrot.slane %v1558, 6
  %v1660 = vsel %vm1584, %v1659, %v1658
  %v1661 = vrot.slane %v1559, 5
  %v1662 = vsel %vm1587, %v1661, %v1660
  %v1663 = vrot.slane %v1560, 4
  %v1664 = vsel %vm1590, %v1663, %v1662
  %v1665 = vrot.slane %v1561, 3
  %v1666 = vsel %vm1593, %v1665, %v1664
  %v1667 = vrot.slane %v1562, 2
  %v1668 = vsel %vm1596, %v1667, %v1666
  %v1669 = vrot.slane %v1563, 1
  %v1670 = vsel %vm1599, %v1669, %v1668
  %v1671 = vrot.slane %v1565, 7
  %v1672 = vsel %vm1581, %v1671, %v1564
  %v1673 = vrot.slane %v1566, 6
  %v1674 = vsel %vm1584, %v1673, %v1672
  %v1675 = vrot.slane %v1567, 5
  %v1676 = vsel %vm1587, %v1675, %v1674
  %v1677 = vrot.slane %v1568, 4
  %v1678 = vsel %vm1590, %v1677, %v1676
  %v1679 = vrot.slane %v1569, 3
  %v1680 = vsel %vm1593, %v1679, %v1678
  %v1681 = vrot.slane %v1570, 2
  %v1682 = vsel %vm1596, %v1681, %v1680
  %v1683 = vrot.slane %v1571, 1
  %v1684 = vsel %vm1599, %v1683, %v1682
  %v1685 = vrot.slane %v1573, 7
  %v1686 = vsel %vm1581, %v1685, %v1572
  %v1687 = vrot.slane %v1574, 6
  %v1688 = vsel %vm1584, %v1687, %v1686
  %v1689 = vrot.slane %v1575, 5
  %v1690 = vsel %vm1587, %v1689, %v1688
  %v1691 = vrot.slane %v1576, 4
  %v1692 = vsel %vm1590, %v1691, %v1690
  %v1693 = vrot.slane %v1577, 3
  %v1694 = vsel %vm1593, %v1693, %v1692
  %v1695 = vrot.slane %v1578, 2
  %v1696 = vsel %vm1596, %v1695, %v1694
  %v1697 = vrot.slane %v1579, 1
  %v1698 = vsel %vm1599, %v1697, %v1696
  %v1699 = vpack.c.b16 %v1614, %v1600
  %v1700 = vpack.c.b16 %v1642, %v1628
  %v1701 = vpack.c.b16 %v1670, %v1656
  %v1702 = vpack.c.b16 %v1698, %v1684
  %v1707 = vunpack.c.l.b16 %v1448
  %v1708 = vunpack.c.l.b16 %v1449
  %v1709 = vunpack.c.l.b16 %v1450
  %v1710 = vunpack.c.l.b16 %v1451
  %v1711 = vpack.c.b16 %v1708, %v1707
  %v1712 = vpack.c.b16 %v1710, %v1709
  %v1716 = vsel %vm869, %v1699, 0
  %v1719 = vsel %vm869, %v1700, 0
  %v1722 = vsel %vm869, %v1701, 0
  %v1725 = vsel %vm869, %v1702, 0
  %1727 = vmatprep.subr.bf16.mxu0 0
  %1728 = vmatpush1.bf16.msra.mxu0 %v1711
  %1729 = vmatprep.subr.bf16.mxu0 0
  %1730 = vmatpush1.bf16.msra.mxu0 %v1712
  %1731 = vmatprep.subr.bf16.mxu0 0
  %1732 = vmatpush1.bf16.msra.mxu0 0
  %1733 = vmatprep.subr.bf16.mxu0 0
  %1734 = vmatpush1.bf16.msra.mxu0 0
  %1735 = vmatprep.subr.bf16.mxu0 0
  %1736 = vmatpush1.bf16.msra.mxu0 0
  %1737 = vmatprep.subr.bf16.mxu0 0
  %1738 = vmatpush1.bf16.msra.mxu0 0
  %1739 = vmatprep.subr.bf16.mxu0 0
  %1740 = vmatpush1.bf16.msra.mxu0 0
  %1741 = vmatprep.subr.bf16.mxu0 0
  %1742 = vmatpush1.bf16.msra.mxu0 0
  %1743 = vmatprep.subr.bf16.mxu0 0
  %1744 = vmatpush1.bf16.msra.mxu0 0
  %1745 = vmatprep.subr.bf16.mxu0 0
  %1746 = vmatpush1.bf16.msra.mxu0 0
  %1747 = vmatprep.subr.bf16.mxu0 0
  %1748 = vmatpush1.bf16.msra.mxu0 0
  %1749 = vmatprep.subr.bf16.mxu0 0
  %1750 = vmatpush1.bf16.msra.mxu0 0
  %1751 = vmatprep.subr.bf16.mxu0 0
  %1752 = vmatpush1.bf16.msra.mxu0 0
  %1753 = vmatprep.subr.bf16.mxu0 0
  %1754 = vmatpush1.bf16.msra.mxu0 0
  %1755 = vmatprep.subr.bf16.mxu0 0
  %1756 = vmatpush1.bf16.msra.mxu0 0
  %1757 = vmatprep.subr.bf16.mxu0 0
  %1758 = vmatpush1.bf16.msra.mxu0 0
  %1759 = vmatprep.mubr.bf16.mxu0 0
  %1760 = vmatmul.mubr.bf16.gmra.mrb[0].mxu0 %v1716
  %v1761 = vpop.f32.mrb[0].mxu0
  %v1762 = vadd.f32 0.0, %v1761
  %v1763 = vpop.f32.mrb[0].mxu0
  %v1764 = vpop.f32.mrb[0].mxu0
  %v1765 = vadd.f32 0.0, %v1764
  %v1766 = vpop.f32.mrb[0].mxu0
  %1767 = vmatprep.mubr.bf16.mxu0 0
  %1768 = vmatmul.mubr.bf16.gmra.mrb[0].mxu0 %v1719
  %v1769 = vpop.f32.mrb[0].mxu0
  %v1770 = vadd.f32 0.0, %v1769
  %v1771 = vpop.f32.mrb[0].mxu0
  %v1772 = vpop.f32.mrb[0].mxu0
  %v1773 = vadd.f32 0.0, %v1772
  %v1774 = vpop.f32.mrb[0].mxu0
  %1775 = vmatprep.mubr.bf16.mxu0 0
  %1776 = vmatmul.mubr.bf16.gmra.mrb[0].mxu0 %v1722
  %v1777 = vpop.f32.mrb[0].mxu0
  %v1778 = vadd.f32 0.0, %v1777
  %v1779 = vpop.f32.mrb[0].mxu0
  %v1780 = vpop.f32.mrb[0].mxu0
  %v1781 = vadd.f32 0.0, %v1780
  %v1782 = vpop.f32.mrb[0].mxu0
  %1783 = vmatprep.mubr.bf16.mxu0 0
  %1784 = vmatmul.mubr.bf16.gmra.mrb[0].mxu0 %v1725
  %v1785 = vpop.f32.mrb[0].mxu0
  %v1786 = vadd.f32 0.0, %v1785
  %v1787 = vpop.f32.mrb[0].mxu0
  %v1788 = vpop.f32.mrb[0].mxu0
  %v1789 = vadd.f32 0.0, %v1788
  %v1790 = vpop.f32.mrb[0].mxu0
  %1791 = vdwg.mxu0
  %v1800 = vcombine.high %v1762, %v1762
  %v1802 = vunpack.c.l.s4 1966171168
  %v1803 = vunpack.c.0.s8 %v1802
  %v1804 = vlaneseq
  %v1805 = vshrl.u32 %v1804, 7
  %v1806 = vsub.s32 %v1803, %v1805
  %v1807 = vrot.slane %v1762, %v1806
  %v1809 = vunpack.c.l.s4 1966171168
  %v1810 = vunpack.c.0.s8 %v1809
  %v1811 = vlaneseq
  %v1812 = vshrl.u32 %v1811, 7
  %v1813 = vsub.s32 %v1810, %v1812
  %v1814 = vrot.slane %v1800, %v1813
  %v1815 = vcombine.high %v1807, %v1807
  %v1816 = vcombine.high %v1814, %v1814
  %v1818 = vunpack.c.l.s4 1966171168
  %v1819 = vunpack.c.0.s8 %v1818
  %v1820 = vlaneseq
  %v1821 = vshrl.u32 %v1820, 7
  %v1822 = vsub.s32 %v1819, %v1821
  %v1823 = vrot.slane %v1807, %v1822
  %v1825 = vunpack.c.l.s4 1966171168
  %v1826 = vunpack.c.0.s8 %v1825
  %v1827 = vlaneseq
  %v1828 = vshrl.u32 %v1827, 7
  %v1829 = vsub.s32 %v1826, %v1828
  %v1830 = vrot.slane %v1814, %v1829
  %v1832 = vunpack.c.l.s4 1966171168
  %v1833 = vunpack.c.0.s8 %v1832
  %v1834 = vlaneseq
  %v1835 = vshrl.u32 %v1834, 7
  %v1836 = vsub.s32 %v1833, %v1835
  %v1837 = vrot.slane %v1815, %v1836
  %v1839 = vunpack.c.l.s4 1966171168
  %v1840 = vunpack.c.0.s8 %v1839
  %v1841 = vlaneseq
  %v1842 = vshrl.u32 %v1841, 7
  %v1843 = vsub.s32 %v1840, %v1842
  %v1844 = vrot.slane %v1816, %v1843
  %v1845 = vcombine.high %v1823, %v1823
  %v1846 = vcombine.high %v1830, %v1830
  %v1847 = vcombine.high %v1837, %v1837
  %v1848 = vcombine.high %v1844, %v1844
  %v1849 = vcombine.high %v1765, %v1765
  %v1851 = vunpack.c.l.s4 1966171168
  %v1852 = vunpack.c.0.s8 %v1851
  %v1853 = vlaneseq
  %v1854 = vshrl.u32 %v1853, 7
  %v1855 = vsub.s32 %v1852, %v1854
  %v1856 = vrot.slane %v1765, %v1855
  %v1858 = vunpack.c.l.s4 1966171168
  %v1859 = vunpack.c.0.s8 %v1858
  %v1860 = vlaneseq
  %v1861 = vshrl.u32 %v1860, 7
  %v1862 = vsub.s32 %v1859, %v1861
  %v1863 = vrot.slane %v1849, %v1862
  %v1864 = vcombine.high %v1856, %v1856
  %v1865 = vcombine.high %v1863, %v1863
  %v1867 = vunpack.c.l.s4 1966171168
  %v1868 = vunpack.c.0.s8 %v1867
  %v1869 = vlaneseq
  %v1870 = vshrl.u32 %v1869, 7
  %v1871 = vsub.s32 %v1868, %v1870
  %v1872 = vrot.slane %v1856, %v1871
  %v1874 = vunpack.c.l.s4 1966171168
  %v1875 = vunpack.c.0.s8 %v1874
  %v1876 = vlaneseq
  %v1877 = vshrl.u32 %v1876, 7
  %v1878 = vsub.s32 %v1875, %v1877
  %v1879 = vrot.slane %v1863, %v1878
  %v1881 = vunpack.c.l.s4 1966171168
  %v1882 = vunpack.c.0.s8 %v1881
  %v1883 = vlaneseq
  %v1884 = vshrl.u32 %v1883, 7
  %v1885 = vsub.s32 %v1882, %v1884
  %v1886 = vrot.slane %v1864, %v1885
  %v1888 = vunpack.c.l.s4 1966171168
  %v1889 = vunpack.c.0.s8 %v1888
  %v1890 = vlaneseq
  %v1891 = vshrl.u32 %v1890, 7
  %v1892 = vsub.s32 %v1889, %v1891
  %v1893 = vrot.slane %v1865, %v1892
  %v1894 = vcombine.high %v1872, %v1872
  %v1895 = vcombine.high %v1879, %v1879
  %v1896 = vcombine.high %v1886, %v1886
  %v1897 = vcombine.high %v1893, %v1893
  %v1898 = vcombine.high %v1770, %v1770
  %v1900 = vunpack.c.l.s4 1966171168
  %v1901 = vunpack.c.0.s8 %v1900
  %v1902 = vlaneseq
  %v1903 = vshrl.u32 %v1902, 7
  %v1904 = vsub.s32 %v1901, %v1903
  %v1905 = vrot.slane %v1770, %v1904
  %v1907 = vunpack.c.l.s4 1966171168
  %v1908 = vunpack.c.0.s8 %v1907
  %v1909 = vlaneseq
  %v1910 = vshrl.u32 %v1909, 7
  %v1911 = vsub.s32 %v1908, %v1910
  %v1912 = vrot.slane %v1898, %v1911
  %v1913 = vcombine.high %v1905, %v1905
  %v1914 = vcombine.high %v1912, %v1912
  %v1916 = vunpack.c.l.s4 1966171168
  %v1917 = vunpack.c.0.s8 %v1916
  %v1918 = vlaneseq
  %v1919 = vshrl.u32 %v1918, 7
  %v1920 = vsub.s32 %v1917, %v1919
  %v1921 = vrot.slane %v1905, %v1920
  %v1923 = vunpack.c.l.s4 1966171168
  %v1924 = vunpack.c.0.s8 %v1923
  %v1925 = vlaneseq
  %v1926 = vshrl.u32 %v1925, 7
  %v1927 = vsub.s32 %v1924, %v1926
  %v1928 = vrot.slane %v1912, %v1927
  %v1930 = vunpack.c.l.s4 1966171168
  %v1931 = vunpack.c.0.s8 %v1930
  %v1932 = vlaneseq
  %v1933 = vshrl.u32 %v1932, 7
  %v1934 = vsub.s32 %v1931, %v1933
  %v1935 = vrot.slane %v1913, %v1934
  %v1937 = vunpack.c.l.s4 1966171168
  %v1938 = vunpack.c.0.s8 %v1937
  %v1939 = vlaneseq
  %v1940 = vshrl.u32 %v1939, 7
  %v1941 = vsub.s32 %v1938, %v1940
  %v1942 = vrot.slane %v1914, %v1941
  %v1943 = vcombine.high %v1921, %v1921
  %v1944 = vcombine.high %v1928, %v1928
  %v1945 = vcombine.high %v1935, %v1935
  %v1946 = vcombine.high %v1942, %v1942
  %v1947 = vcombine.high %v1773, %v1773
  %v1949 = vunpack.c.l.s4 1966171168
  %v1950 = vunpack.c.0.s8 %v1949
  %v1951 = vlaneseq
  %v1952 = vshrl.u32 %v1951, 7
  %v1953 = vsub.s32 %v1950, %v1952
  %v1954 = vrot.slane %v1773, %v1953
  %v1956 = vunpack.c.l.s4 1966171168
  %v1957 = vunpack.c.0.s8 %v1956
  %v1958 = vlaneseq
  %v1959 = vshrl.u32 %v1958, 7
  %v1960 = vsub.s32 %v1957, %v1959
  %v1961 = vrot.slane %v1947, %v1960
  %v1962 = vcombine.high %v1954, %v1954
  %v1963 = vcombine.high %v1961, %v1961
  %v1965 = vunpack.c.l.s4 1966171168
  %v1966 = vunpack.c.0.s8 %v1965
  %v1967 = vlaneseq
  %v1968 = vshrl.u32 %v1967, 7
  %v1969 = vsub.s32 %v1966, %v1968
  %v1970 = vrot.slane %v1954, %v1969
  %v1972 = vunpack.c.l.s4 1966171168
  %v1973 = vunpack.c.0.s8 %v1972
  %v1974 = vlaneseq
  %v1975 = vshrl.u32 %v1974, 7
  %v1976 = vsub.s32 %v1973, %v1975
  %v1977 = vrot.slane %v1961, %v1976
  %v1979 = vunpack.c.l.s4 1966171168
  %v1980 = vunpack.c.0.s8 %v1979
  %v1981 = vlaneseq
  %v1982 = vshrl.u32 %v1981, 7
  %v1983 = vsub.s32 %v1980, %v1982
  %v1984 = vrot.slane %v1962, %v1983
  %v1986 = vunpack.c.l.s4 1966171168
  %v1987 = vunpack.c.0.s8 %v1986
  %v1988 = vlaneseq
  %v1989 = vshrl.u32 %v1988, 7
  %v1990 = vsub.s32 %v1987, %v1989
  %v1991 = vrot.slane %v1963, %v1990
  %v1992 = vcombine.high %v1970, %v1970
  %v1993 = vcombine.high %v1977, %v1977
  %v1994 = vcombine.high %v1984, %v1984
  %v1995 = vcombine.high %v1991, %v1991
  %v1996 = vcombine.high %v1778, %v1778
  %v1998 = vunpack.c.l.s4 1966171168
  %v1999 = vunpack.c.0.s8 %v1998
  %v2000 = vlaneseq
  %v2001 = vshrl.u32 %v2000, 7
  %v2002 = vsub.s32 %v1999, %v2001
  %v2003 = vrot.slane %v1778, %v2002
  %v2005 = vunpack.c.l.s4 1966171168
  %v2006 = vunpack.c.0.s8 %v2005
  %v2007 = vlaneseq
  %v2008 = vshrl.u32 %v2007, 7
  %v2009 = vsub.s32 %v2006, %v2008
  %v2010 = vrot.slane %v1996, %v2009
  %v2011 = vcombine.high %v2003, %v2003
  %v2012 = vcombine.high %v2010, %v2010
  %v2014 = vunpack.c.l.s4 1966171168
  %v2015 = vunpack.c.0.s8 %v2014
  %v2016 = vlaneseq
  %v2017 = vshrl.u32 %v2016, 7
  %v2018 = vsub.s32 %v2015, %v2017
  %v2019 = vrot.slane %v2003, %v2018
  %v2021 = vunpack.c.l.s4 1966171168
  %v2022 = vunpack.c.0.s8 %v2021
  %v2023 = vlaneseq
  %v2024 = vshrl.u32 %v2023, 7
  %v2025 = vsub.s32 %v2022, %v2024
  %v2026 = vrot.slane %v2010, %v2025
  %v2028 = vunpack.c.l.s4 1966171168
  %v2029 = vunpack.c.0.s8 %v2028
  %v2030 = vlaneseq
  %v2031 = vshrl.u32 %v2030, 7
  %v2032 = vsub.s32 %v2029, %v2031
  %v2033 = vrot.slane %v2011, %v2032
  %v2035 = vunpack.c.l.s4 1966171168
  %v2036 = vunpack.c.0.s8 %v2035
  %v2037 = vlaneseq
  %v2038 = vshrl.u32 %v2037, 7
  %v2039 = vsub.s32 %v2036, %v2038
  %v2040 = vrot.slane %v2012, %v2039
  %v2041 = vcombine.high %v2019, %v2019
  %v2042 = vcombine.high %v2026, %v2026
  %v2043 = vcombine.high %v2033, %v2033
  %v2044 = vcombine.high %v2040, %v2040
  %v2045 = vcombine.high %v1781, %v1781
  %v2047 = vunpack.c.l.s4 1966171168
  %v2048 = vunpack.c.0.s8 %v2047
  %v2049 = vlaneseq
  %v2050 = vshrl.u32 %v2049, 7
  %v2051 = vsub.s32 %v2048, %v2050
  %v2052 = vrot.slane %v1781, %v2051
  %v2054 = vunpack.c.l.s4 1966171168
  %v2055 = vunpack.c.0.s8 %v2054
  %v2056 = vlaneseq
  %v2057 = vshrl.u32 %v2056, 7
  %v2058 = vsub.s32 %v2055, %v2057
  %v2059 = vrot.slane %v2045, %v2058
  %v2060 = vcombine.high %v2052, %v2052
  %v2061 = vcombine.high %v2059, %v2059
  %v2063 = vunpack.c.l.s4 1966171168
  %v2064 = vunpack.c.0.s8 %v2063
  %v2065 = vlaneseq
  %v2066 = vshrl.u32 %v2065, 7
  %v2067 = vsub.s32 %v2064, %v2066
  %v2068 = vrot.slane %v2052, %v2067
  %v2070 = vunpack.c.l.s4 1966171168
  %v2071 = vunpack.c.0.s8 %v2070
  %v2072 = vlaneseq
  %v2073 = vshrl.u32 %v2072, 7
  %v2074 = vsub.s32 %v2071, %v2073
  %v2075 = vrot.slane %v2059, %v2074
  %v2077 = vunpack.c.l.s4 1966171168
  %v2078 = vunpack.c.0.s8 %v2077
  %v2079 = vlaneseq
  %v2080 = vshrl.u32 %v2079, 7
  %v2081 = vsub.s32 %v2078, %v2080
  %v2082 = vrot.slane %v2060, %v2081
  %v2084 = vunpack.c.l.s4 1966171168
  %v2085 = vunpack.c.0.s8 %v2084
  %v2086 = vlaneseq
  %v2087 = vshrl.u32 %v2086, 7
  %v2088 = vsub.s32 %v2085, %v2087
  %v2089 = vrot.slane %v2061, %v2088
  %v2090 = vcombine.high %v2068, %v2068
  %v2091 = vcombine.high %v2075, %v2075
  %v2092 = vcombine.high %v2082, %v2082
  %v2093 = vcombine.high %v2089, %v2089
  %v2094 = vcombine.high %v1786, %v1786
  %v2096 = vunpack.c.l.s4 1966171168
  %v2097 = vunpack.c.0.s8 %v2096
  %v2098 = vlaneseq
  %v2099 = vshrl.u32 %v2098, 7
  %v2100 = vsub.s32 %v2097, %v2099
  %v2101 = vrot.slane %v1786, %v2100
  %v2103 = vunpack.c.l.s4 1966171168
  %v2104 = vunpack.c.0.s8 %v2103
  %v2105 = vlaneseq
  %v2106 = vshrl.u32 %v2105, 7
  %v2107 = vsub.s32 %v2104, %v2106
  %v2108 = vrot.slane %v2094, %v2107
  %v2109 = vcombine.high %v2101, %v2101
  %v2110 = vcombine.high %v2108, %v2108
  %v2112 = vunpack.c.l.s4 1966171168
  %v2113 = vunpack.c.0.s8 %v2112
  %v2114 = vlaneseq
  %v2115 = vshrl.u32 %v2114, 7
  %v2116 = vsub.s32 %v2113, %v2115
  %v2117 = vrot.slane %v2101, %v2116
  %v2119 = vunpack.c.l.s4 1966171168
  %v2120 = vunpack.c.0.s8 %v2119
  %v2121 = vlaneseq
  %v2122 = vshrl.u32 %v2121, 7
  %v2123 = vsub.s32 %v2120, %v2122
  %v2124 = vrot.slane %v2108, %v2123
  %v2126 = vunpack.c.l.s4 1966171168
  %v2127 = vunpack.c.0.s8 %v2126
  %v2128 = vlaneseq
  %v2129 = vshrl.u32 %v2128, 7
  %v2130 = vsub.s32 %v2127, %v2129
  %v2131 = vrot.slane %v2109, %v2130
  %v2133 = vunpack.c.l.s4 1966171168
  %v2134 = vunpack.c.0.s8 %v2133
  %v2135 = vlaneseq
  %v2136 = vshrl.u32 %v2135, 7
  %v2137 = vsub.s32 %v2134, %v2136
  %v2138 = vrot.slane %v2110, %v2137
  %v2139 = vcombine.high %v2117, %v2117
  %v2140 = vcombine.high %v2124, %v2124
  %v2141 = vcombine.high %v2131, %v2131
  %v2142 = vcombine.high %v2138, %v2138
  %v2143 = vcombine.high %v1789, %v1789
  %v2145 = vunpack.c.l.s4 1966171168
  %v2146 = vunpack.c.0.s8 %v2145
  %v2147 = vlaneseq
  %v2148 = vshrl.u32 %v2147, 7
  %v2149 = vsub.s32 %v2146, %v2148
  %v2150 = vrot.slane %v1789, %v2149
  %v2152 = vunpack.c.l.s4 1966171168
  %v2153 = vunpack.c.0.s8 %v2152
  %v2154 = vlaneseq
  %v2155 = vshrl.u32 %v2154, 7
  %v2156 = vsub.s32 %v2153, %v2155
  %v2157 = vrot.slane %v2143, %v2156
  %v2158 = vcombine.high %v2150, %v2150
  %v2159 = vcombine.high %v2157, %v2157
  %v2161 = vunpack.c.l.s4 1966171168
  %v2162 = vunpack.c.0.s8 %v2161
  %v2163 = vlaneseq
  %v2164 = vshrl.u32 %v2163, 7
  %v2165 = vsub.s32 %v2162, %v2164
  %v2166 = vrot.slane %v2150, %v2165
  %v2168 = vunpack.c.l.s4 1966171168
  %v2169 = vunpack.c.0.s8 %v2168
  %v2170 = vlaneseq
  %v2171 = vshrl.u32 %v2170, 7
  %v2172 = vsub.s32 %v2169, %v2171
  %v2173 = vrot.slane %v2157, %v2172
  %v2175 = vunpack.c.l.s4 1966171168
  %v2176 = vunpack.c.0.s8 %v2175
  %v2177 = vlaneseq
  %v2178 = vshrl.u32 %v2177, 7
  %v2179 = vsub.s32 %v2176, %v2178
  %v2180 = vrot.slane %v2158, %v2179
  %v2182 = vunpack.c.l.s4 1966171168
  %v2183 = vunpack.c.0.s8 %v2182
  %v2184 = vlaneseq
  %v2185 = vshrl.u32 %v2184, 7
  %v2186 = vsub.s32 %v2183, %v2185
  %v2187 = vrot.slane %v2159, %v2186
  %v2188 = vcombine.high %v2166, %v2166
  %v2189 = vcombine.high %v2173, %v2173
  %v2190 = vcombine.high %v2180, %v2180
  %v2191 = vcombine.high %v2187, %v2187
  %v2192 = vlaneseq
  %v2193 = vshrl.u32 %v2192, 7
  %v2194 = vsub.s32 0, %v2193
  %v2195 = vrot.slane %v1823, %v2194
  %v2196 = vlaneseq
  %v2197 = vshrl.u32 %v2196, 7
  %v2198 = vsub.s32 0, %v2197
  %v2199 = vrot.slane %v1837, %v2198
  %v2200 = vlaneseq
  %v2201 = vshrl.u32 %v2200, 7
  %v2202 = vsub.s32 0, %v2201
  %v2203 = vrot.slane %v1845, %v2202
  %v2204 = vlaneseq
  %v2205 = vshrl.u32 %v2204, 7
  %v2206 = vsub.s32 0, %v2205
  %v2207 = vrot.slane %v1847, %v2206
  %v2208 = vlaneseq
  %v2209 = vshrl.u32 %v2208, 7
  %v2210 = vsub.s32 0, %v2209
  %v2211 = vrot.slane %v1830, %v2210
  %v2212 = vlaneseq
  %v2213 = vshrl.u32 %v2212, 7
  %v2214 = vsub.s32 0, %v2213
  %v2215 = vrot.slane %v1844, %v2214
  %v2216 = vlaneseq
  %v2217 = vshrl.u32 %v2216, 7
  %v2218 = vsub.s32 0, %v2217
  %v2219 = vrot.slane %v1846, %v2218
  %v2220 = vlaneseq
  %v2221 = vshrl.u32 %v2220, 7
  %v2222 = vsub.s32 0, %v2221
  %v2223 = vrot.slane %v1848, %v2222
  %v2224 = vlaneseq
  %v2225 = vshrl.u32 %v2224, 7
  %v2226 = vsub.s32 0, %v2225
  %v2227 = vrot.slane %v1872, %v2226
  %v2228 = vlaneseq
  %v2229 = vshrl.u32 %v2228, 7
  %v2230 = vsub.s32 0, %v2229
  %v2231 = vrot.slane %v1886, %v2230
  %v2232 = vlaneseq
  %v2233 = vshrl.u32 %v2232, 7
  %v2234 = vsub.s32 0, %v2233
  %v2235 = vrot.slane %v1894, %v2234
  %v2236 = vlaneseq
  %v2237 = vshrl.u32 %v2236, 7
  %v2238 = vsub.s32 0, %v2237
  %v2239 = vrot.slane %v1896, %v2238
  %v2240 = vlaneseq
  %v2241 = vshrl.u32 %v2240, 7
  %v2242 = vsub.s32 0, %v2241
  %v2243 = vrot.slane %v1879, %v2242
  %v2244 = vlaneseq
  %v2245 = vshrl.u32 %v2244, 7
  %v2246 = vsub.s32 0, %v2245
  %v2247 = vrot.slane %v1893, %v2246
  %v2248 = vlaneseq
  %v2249 = vshrl.u32 %v2248, 7
  %v2250 = vsub.s32 0, %v2249
  %v2251 = vrot.slane %v1895, %v2250
  %v2252 = vlaneseq
  %v2253 = vshrl.u32 %v2252, 7
  %v2254 = vsub.s32 0, %v2253
  %v2255 = vrot.slane %v1897, %v2254
  %v2256 = vlaneseq
  %v2257 = vshrl.u32 %v2256, 7
  %v2258 = vsub.s32 0, %v2257
  %v2259 = vrot.slane %v1921, %v2258
  %v2260 = vlaneseq
  %v2261 = vshrl.u32 %v2260, 7
  %v2262 = vsub.s32 0, %v2261
  %v2263 = vrot.slane %v1935, %v2262
  %v2264 = vlaneseq
  %v2265 = vshrl.u32 %v2264, 7
  %v2266 = vsub.s32 0, %v2265
  %v2267 = vrot.slane %v1943, %v2266
  %v2268 = vlaneseq
  %v2269 = vshrl.u32 %v2268, 7
  %v2270 = vsub.s32 0, %v2269
  %v2271 = vrot.slane %v1945, %v2270
  %v2272 = vlaneseq
  %v2273 = vshrl.u32 %v2272, 7
  %v2274 = vsub.s32 0, %v2273
  %v2275 = vrot.slane %v1928, %v2274
  %v2276 = vlaneseq
  %v2277 = vshrl.u32 %v2276, 7
  %v2278 = vsub.s32 0, %v2277
  %v2279 = vrot.slane %v1942, %v2278
  %v2280 = vlaneseq
  %v2281 = vshrl.u32 %v2280, 7
  %v2282 = vsub.s32 0, %v2281
  %v2283 = vrot.slane %v1944, %v2282
  %v2284 = vlaneseq
  %v2285 = vshrl.u32 %v2284, 7
  %v2286 = vsub.s32 0, %v2285
  %v2287 = vrot.slane %v1946, %v2286
  %v2288 = vlaneseq
  %v2289 = vshrl.u32 %v2288, 7
  %v2290 = vsub.s32 0, %v2289
  %v2291 = vrot.slane %v1970, %v2290
  %v2292 = vlaneseq
  %v2293 = vshrl.u32 %v2292, 7
  %v2294 = vsub.s32 0, %v2293
  %v2295 = vrot.slane %v1984, %v2294
  %v2296 = vlaneseq
  %v2297 = vshrl.u32 %v2296, 7
  %v2298 = vsub.s32 0, %v2297
  %v2299 = vrot.slane %v1992, %v2298
  %v2300 = vlaneseq
  %v2301 = vshrl.u32 %v2300, 7
  %v2302 = vsub.s32 0, %v2301
  %v2303 = vrot.slane %v1994, %v2302
  %v2304 = vlaneseq
  %v2305 = vshrl.u32 %v2304, 7
  %v2306 = vsub.s32 0, %v2305
  %v2307 = vrot.slane %v1977, %v2306
  %v2308 = vlaneseq
  %v2309 = vshrl.u32 %v2308, 7
  %v2310 = vsub.s32 0, %v2309
  %v2311 = vrot.slane %v1991, %v2310
  %v2312 = vlaneseq
  %v2313 = vshrl.u32 %v2312, 7
  %v2314 = vsub.s32 0, %v2313
  %v2315 = vrot.slane %v1993, %v2314
  %v2316 = vlaneseq
  %v2317 = vshrl.u32 %v2316, 7
  %v2318 = vsub.s32 0, %v2317
  %v2319 = vrot.slane %v1995, %v2318
  %v2320 = vlaneseq
  %v2321 = vshrl.u32 %v2320, 7
  %v2322 = vsub.s32 0, %v2321
  %v2323 = vrot.slane %v2019, %v2322
  %v2324 = vlaneseq
  %v2325 = vshrl.u32 %v2324, 7
  %v2326 = vsub.s32 0, %v2325
  %v2327 = vrot.slane %v2033, %v2326
  %v2328 = vlaneseq
  %v2329 = vshrl.u32 %v2328, 7
  %v2330 = vsub.s32 0, %v2329
  %v2331 = vrot.slane %v2041, %v2330
  %v2332 = vlaneseq
  %v2333 = vshrl.u32 %v2332, 7
  %v2334 = vsub.s32 0, %v2333
  %v2335 = vrot.slane %v2043, %v2334
  %v2336 = vlaneseq
  %v2337 = vshrl.u32 %v2336, 7
  %v2338 = vsub.s32 0, %v2337
  %v2339 = vrot.slane %v2026, %v2338
  %v2340 = vlaneseq
  %v2341 = vshrl.u32 %v2340, 7
  %v2342 = vsub.s32 0, %v2341
  %v2343 = vrot.slane %v2040, %v2342
  %v2344 = vlaneseq
  %v2345 = vshrl.u32 %v2344, 7
  %v2346 = vsub.s32 0, %v2345
  %v2347 = vrot.slane %v2042, %v2346
  %v2348 = vlaneseq
  %v2349 = vshrl.u32 %v2348, 7
  %v2350 = vsub.s32 0, %v2349
  %v2351 = vrot.slane %v2044, %v2350
  %v2352 = vlaneseq
  %v2353 = vshrl.u32 %v2352, 7
  %v2354 = vsub.s32 0, %v2353
  %v2355 = vrot.slane %v2068, %v2354
  %v2356 = vlaneseq
  %v2357 = vshrl.u32 %v2356, 7
  %v2358 = vsub.s32 0, %v2357
  %v2359 = vrot.slane %v2082, %v2358
  %v2360 = vlaneseq
  %v2361 = vshrl.u32 %v2360, 7
  %v2362 = vsub.s32 0, %v2361
  %v2363 = vrot.slane %v2090, %v2362
  %v2364 = vlaneseq
  %v2365 = vshrl.u32 %v2364, 7
  %v2366 = vsub.s32 0, %v2365
  %v2367 = vrot.slane %v2092, %v2366
  %v2368 = vlaneseq
  %v2369 = vshrl.u32 %v2368, 7
  %v2370 = vsub.s32 0, %v2369
  %v2371 = vrot.slane %v2075, %v2370
  %v2372 = vlaneseq
  %v2373 = vshrl.u32 %v2372, 7
  %v2374 = vsub.s32 0, %v2373
  %v2375 = vrot.slane %v2089, %v2374
  %v2376 = vlaneseq
  %v2377 = vshrl.u32 %v2376, 7
  %v2378 = vsub.s32 0, %v2377
  %v2379 = vrot.slane %v2091, %v2378
  %v2380 = vlaneseq
  %v2381 = vshrl.u32 %v2380, 7
  %v2382 = vsub.s32 0, %v2381
  %v2383 = vrot.slane %v2093, %v2382
  %v2384 = vlaneseq
  %v2385 = vshrl.u32 %v2384, 7
  %v2386 = vsub.s32 0, %v2385
  %v2387 = vrot.slane %v2117, %v2386
  %v2388 = vlaneseq
  %v2389 = vshrl.u32 %v2388, 7
  %v2390 = vsub.s32 0, %v2389
  %v2391 = vrot.slane %v2131, %v2390
  %v2392 = vlaneseq
  %v2393 = vshrl.u32 %v2392, 7
  %v2394 = vsub.s32 0, %v2393
  %v2395 = vrot.slane %v2139, %v2394
  %v2396 = vlaneseq
  %v2397 = vshrl.u32 %v2396, 7
  %v2398 = vsub.s32 0, %v2397
  %v2399 = vrot.slane %v2141, %v2398
  %v2400 = vlaneseq
  %v2401 = vshrl.u32 %v2400, 7
  %v2402 = vsub.s32 0, %v2401
  %v2403 = vrot.slane %v2124, %v2402
  %v2404 = vlaneseq
  %v2405 = vshrl.u32 %v2404, 7
  %v2406 = vsub.s32 0, %v2405
  %v2407 = vrot.slane %v2138, %v2406
  %v2408 = vlaneseq
  %v2409 = vshrl.u32 %v2408, 7
  %v2410 = vsub.s32 0, %v2409
  %v2411 = vrot.slane %v2140, %v2410
  %v2412 = vlaneseq
  %v2413 = vshrl.u32 %v2412, 7
  %v2414 = vsub.s32 0, %v2413
  %v2415 = vrot.slane %v2142, %v2414
  %v2416 = vlaneseq
  %v2417 = vshrl.u32 %v2416, 7
  %v2418 = vsub.s32 0, %v2417
  %v2419 = vrot.slane %v2166, %v2418
  %v2420 = vlaneseq
  %v2421 = vshrl.u32 %v2420, 7
  %v2422 = vsub.s32 0, %v2421
  %v2423 = vrot.slane %v2180, %v2422
  %v2424 = vlaneseq
  %v2425 = vshrl.u32 %v2424, 7
  %v2426 = vsub.s32 0, %v2425
  %v2427 = vrot.slane %v2188, %v2426
  %v2428 = vlaneseq
  %v2429 = vshrl.u32 %v2428, 7
  %v2430 = vsub.s32 0, %v2429
  %v2431 = vrot.slane %v2190, %v2430
  %v2432 = vlaneseq
  %v2433 = vshrl.u32 %v2432, 7
  %v2434 = vsub.s32 0, %v2433
  %v2435 = vrot.slane %v2173, %v2434
  %v2436 = vlaneseq
  %v2437 = vshrl.u32 %v2436, 7
  %v2438 = vsub.s32 0, %v2437
  %v2439 = vrot.slane %v2187, %v2438
  %v2440 = vlaneseq
  %v2441 = vshrl.u32 %v2440, 7
  %v2442 = vsub.s32 0, %v2441
  %v2443 = vrot.slane %v2189, %v2442
  %v2444 = vlaneseq
  %v2445 = vshrl.u32 %v2444, 7
  %v2446 = vsub.s32 0, %v2445
  %v2447 = vrot.slane %v2191, %v2446
  %v2512 = vadd.f32 %v1130, %v2195
  %v2513 = vadd.f32 %v1133, %v2199
  %v2514 = vadd.f32 %v1138, %v2203
  %v2515 = vadd.f32 %v1141, %v2207
  %v2516 = vadd.f32 %v1146, %v2211
  %v2517 = vadd.f32 %v1149, %v2215
  %v2518 = vadd.f32 %v1154, %v2219
  %v2519 = vadd.f32 %v1157, %v2223
  %v2520 = vadd.f32 %v1162, %v2227
  %v2521 = vadd.f32 %v1165, %v2231
  %v2522 = vadd.f32 %v1170, %v2235
  %v2523 = vadd.f32 %v1173, %v2239
  %v2524 = vadd.f32 %v1178, %v2243
  %v2525 = vadd.f32 %v1181, %v2247
  %v2526 = vadd.f32 %v1186, %v2251
  %v2527 = vadd.f32 %v1189, %v2255
  %v2528 = vadd.f32 %v1194, %v2259
  %v2529 = vadd.f32 %v1197, %v2263
  %v2530 = vadd.f32 %v1202, %v2267
  %v2531 = vadd.f32 %v1205, %v2271
  %v2532 = vadd.f32 %v1210, %v2275
  %v2533 = vadd.f32 %v1213, %v2279
  %v2534 = vadd.f32 %v1218, %v2283
  %v2535 = vadd.f32 %v1221, %v2287
  %v2536 = vadd.f32 %v1226, %v2291
  %v2537 = vadd.f32 %v1229, %v2295
  %v2538 = vadd.f32 %v1234, %v2299
  %v2539 = vadd.f32 %v1237, %v2303
  %v2540 = vadd.f32 %v1242, %v2307
  %v2541 = vadd.f32 %v1245, %v2311
  %v2542 = vadd.f32 %v1250, %v2315
  %v2543 = vadd.f32 %v1253, %v2319
  %v2544 = vadd.f32 %v1258, %v2323
  %v2545 = vadd.f32 %v1261, %v2327
  %v2546 = vadd.f32 %v1266, %v2331
  %v2547 = vadd.f32 %v1269, %v2335
  %v2548 = vadd.f32 %v1274, %v2339
  %v2549 = vadd.f32 %v1277, %v2343
  %v2550 = vadd.f32 %v1282, %v2347
  %v2551 = vadd.f32 %v1285, %v2351
  %v2552 = vadd.f32 %v1290, %v2355
  %v2553 = vadd.f32 %v1293, %v2359
  %v2554 = vadd.f32 %v1298, %v2363
  %v2555 = vadd.f32 %v1301, %v2367
  %v2556 = vadd.f32 %v1306, %v2371
  %v2557 = vadd.f32 %v1309, %v2375
  %v2558 = vadd.f32 %v1314, %v2379
  %v2559 = vadd.f32 %v1317, %v2383
  %v2560 = vadd.f32 %v1322, %v2387
  %v2561 = vadd.f32 %v1325, %v2391
  %v2562 = vadd.f32 %v1330, %v2395
  %v2563 = vadd.f32 %v1333, %v2399
  %v2564 = vadd.f32 %v1338, %v2403
  %v2565 = vadd.f32 %v1341, %v2407
  %v2566 = vadd.f32 %v1346, %v2411
  %v2567 = vadd.f32 %v1349, %v2415
  %v2568 = vadd.f32 %v1354, %v2419
  %v2569 = vadd.f32 %v1357, %v2423
  %v2570 = vadd.f32 %v1362, %v2427
  %v2571 = vadd.f32 %v1365, %v2431
  %v2572 = vadd.f32 %v1370, %v2435
  %v2573 = vadd.f32 %v1373, %v2439
  %v2574 = vadd.f32 %v1378, %v2443
  %v2575 = vadd.f32 %v1381, %v2447
  %v2576 = vld [vmem:[%s7] sm:$0x1]
  %v2578 = vlaneseq
  %v2579 = vshrl.u32 %v2578, 7
  %v2580 = vsub.s32 0, %v2579
  %v2581 = vrot.slane %v2576, %v2580
  %v2583 = vadd.f32 %v2512, %v2581
  %v2584 = vadd.f32 %v2513, %v2581
  %v2585 = vadd.f32 %v2514, %v2581
  %v2586 = vadd.f32 %v2515, %v2581
  %v2587 = vadd.f32 %v2516, %v2581
  %v2588 = vadd.f32 %v2517, %v2581
  %v2589 = vadd.f32 %v2518, %v2581
  %v2590 = vadd.f32 %v2519, %v2581
  %v2591 = vadd.f32 %v2520, %v2581
  %v2592 = vadd.f32 %v2521, %v2581
  %v2593 = vadd.f32 %v2522, %v2581
  %v2594 = vadd.f32 %v2523, %v2581
  %v2595 = vadd.f32 %v2524, %v2581
  %v2596 = vadd.f32 %v2525, %v2581
  %v2597 = vadd.f32 %v2526, %v2581
  %v2598 = vadd.f32 %v2527, %v2581
  %v2599 = vadd.f32 %v2528, %v2581
  %v2600 = vadd.f32 %v2529, %v2581
  %v2601 = vadd.f32 %v2530, %v2581
  %v2602 = vadd.f32 %v2531, %v2581
  %v2603 = vadd.f32 %v2532, %v2581
  %v2604 = vadd.f32 %v2533, %v2581
  %v2605 = vadd.f32 %v2534, %v2581
  %v2606 = vadd.f32 %v2535, %v2581
  %v2607 = vadd.f32 %v2536, %v2581
  %v2608 = vadd.f32 %v2537, %v2581
  %v2609 = vadd.f32 %v2538, %v2581
  %v2610 = vadd.f32 %v2539, %v2581
  %v2611 = vadd.f32 %v2540, %v2581
  %v2612 = vadd.f32 %v2541, %v2581
  %v2613 = vadd.f32 %v2542, %v2581
  %v2614 = vadd.f32 %v2543, %v2581
  %v2615 = vadd.f32 %v2544, %v2581
  %v2616 = vadd.f32 %v2545, %v2581
  %v2617 = vadd.f32 %v2546, %v2581
  %v2618 = vadd.f32 %v2547, %v2581
  %v2619 = vadd.f32 %v2548, %v2581
  %v2620 = vadd.f32 %v2549, %v2581
  %v2621 = vadd.f32 %v2550, %v2581
  %v2622 = vadd.f32 %v2551, %v2581
  %v2623 = vadd.f32 %v2552, %v2581
  %v2624 = vadd.f32 %v2553, %v2581
  %v2625 = vadd.f32 %v2554, %v2581
  %v2626 = vadd.f32 %v2555, %v2581
  %v2627 = vadd.f32 %v2556, %v2581
  %v2628 = vadd.f32 %v2557, %v2581
  %v2629 = vadd.f32 %v2558, %v2581
  %v2630 = vadd.f32 %v2559, %v2581
  %v2631 = vadd.f32 %v2560, %v2581
  %v2632 = vadd.f32 %v2561, %v2581
  %v2633 = vadd.f32 %v2562, %v2581
  %v2634 = vadd.f32 %v2563, %v2581
  %v2635 = vadd.f32 %v2564, %v2581
  %v2636 = vadd.f32 %v2565, %v2581
  %v2637 = vadd.f32 %v2566, %v2581
  %v2638 = vadd.f32 %v2567, %v2581
  %v2639 = vadd.f32 %v2568, %v2581
  %v2640 = vadd.f32 %v2569, %v2581
  %v2641 = vadd.f32 %v2570, %v2581
  %v2642 = vadd.f32 %v2571, %v2581
  %v2643 = vadd.f32 %v2572, %v2581
  %v2644 = vadd.f32 %v2573, %v2581
  %v2645 = vadd.f32 %v2574, %v2581
  %v2646 = vadd.f32 %v2575, %v2581
  %v2647 = vld [vmem:[%s4] sm:$0xff]
  %v2648 = vmul.f32 %v2583, %v2647
  %v2649 = vmul.f32 %v2584, %v2647
  %v2650 = vmul.f32 %v2585, %v2647
  %v2651 = vmul.f32 %v2586, %v2647
  %v2652 = vmul.f32 %v2587, %v2647
  %v2653 = vmul.f32 %v2588, %v2647
  %v2654 = vmul.f32 %v2589, %v2647
  %v2655 = vmul.f32 %v2590, %v2647
  %v2656 = vmul.f32 %v2591, %v2647
  %v2657 = vmul.f32 %v2592, %v2647
  %v2658 = vmul.f32 %v2593, %v2647
  %v2659 = vmul.f32 %v2594, %v2647
  %v2660 = vmul.f32 %v2595, %v2647
  %v2661 = vmul.f32 %v2596, %v2647
  %v2662 = vmul.f32 %v2597, %v2647
  %v2663 = vmul.f32 %v2598, %v2647
  %v2664 = vmul.f32 %v2599, %v2647
  %v2665 = vmul.f32 %v2600, %v2647
  %v2666 = vmul.f32 %v2601, %v2647
  %v2667 = vmul.f32 %v2602, %v2647
  %v2668 = vmul.f32 %v2603, %v2647
  %v2669 = vmul.f32 %v2604, %v2647
  %v2670 = vmul.f32 %v2605, %v2647
  %v2671 = vmul.f32 %v2606, %v2647
  %v2672 = vmul.f32 %v2607, %v2647
  %v2673 = vmul.f32 %v2608, %v2647
  %v2674 = vmul.f32 %v2609, %v2647
  %v2675 = vmul.f32 %v2610, %v2647
  %v2676 = vmul.f32 %v2611, %v2647
  %v2677 = vmul.f32 %v2612, %v2647
  %v2678 = vmul.f32 %v2613, %v2647
  %v2679 = vmul.f32 %v2614, %v2647
  %v2680 = vmul.f32 %v2615, %v2647
  %v2681 = vmul.f32 %v2616, %v2647
  %v2682 = vmul.f32 %v2617, %v2647
  %v2683 = vmul.f32 %v2618, %v2647
  %v2684 = vmul.f32 %v2619, %v2647
  %v2685 = vmul.f32 %v2620, %v2647
  %v2686 = vmul.f32 %v2621, %v2647
  %v2687 = vmul.f32 %v2622, %v2647
  %v2688 = vmul.f32 %v2623, %v2647
  %v2689 = vmul.f32 %v2624, %v2647
  %v2690 = vmul.f32 %v2625, %v2647
  %v2691 = vmul.f32 %v2626, %v2647
  %v2692 = vmul.f32 %v2627, %v2647
  %v2693 = vmul.f32 %v2628, %v2647
  %v2694 = vmul.f32 %v2629, %v2647
  %v2695 = vmul.f32 %v2630, %v2647
  %v2696 = vmul.f32 %v2631, %v2647
  %v2697 = vmul.f32 %v2632, %v2647
  %v2698 = vmul.f32 %v2633, %v2647
  %v2699 = vmul.f32 %v2634, %v2647
  %v2700 = vmul.f32 %v2635, %v2647
  %v2701 = vmul.f32 %v2636, %v2647
  %v2702 = vmul.f32 %v2637, %v2647
  %v2703 = vmul.f32 %v2638, %v2647
  %v2704 = vmul.f32 %v2639, %v2647
  %v2705 = vmul.f32 %v2640, %v2647
  %v2706 = vmul.f32 %v2641, %v2647
  %v2707 = vmul.f32 %v2642, %v2647
  %v2708 = vmul.f32 %v2643, %v2647
  %v2709 = vmul.f32 %v2644, %v2647
  %v2710 = vmul.f32 %v2645, %v2647
  %v2711 = vmul.f32 %v2646, %v2647
  %v2712 = vld [vmem:[%s5] sm:$0xff]
  %v2713 = vadd.f32 %v2648, %v2712
  %v2714 = vadd.f32 %v2649, %v2712
  %v2715 = vadd.f32 %v2650, %v2712
  %v2716 = vadd.f32 %v2651, %v2712
  %v2717 = vadd.f32 %v2652, %v2712
  %v2718 = vadd.f32 %v2653, %v2712
  %v2719 = vadd.f32 %v2654, %v2712
  %v2720 = vadd.f32 %v2655, %v2712
  %v2721 = vadd.f32 %v2656, %v2712
  %v2722 = vadd.f32 %v2657, %v2712
  %v2723 = vadd.f32 %v2658, %v2712
  %v2724 = vadd.f32 %v2659, %v2712
  %v2725 = vadd.f32 %v2660, %v2712
  %v2726 = vadd.f32 %v2661, %v2712
  %v2727 = vadd.f32 %v2662, %v2712
  %v2728 = vadd.f32 %v2663, %v2712
  %v2729 = vadd.f32 %v2664, %v2712
  %v2730 = vadd.f32 %v2665, %v2712
  %v2731 = vadd.f32 %v2666, %v2712
  %v2732 = vadd.f32 %v2667, %v2712
  %v2733 = vadd.f32 %v2668, %v2712
  %v2734 = vadd.f32 %v2669, %v2712
  %v2735 = vadd.f32 %v2670, %v2712
  %v2736 = vadd.f32 %v2671, %v2712
  %v2737 = vadd.f32 %v2672, %v2712
  %v2738 = vadd.f32 %v2673, %v2712
  %v2739 = vadd.f32 %v2674, %v2712
  %v2740 = vadd.f32 %v2675, %v2712
  %v2741 = vadd.f32 %v2676, %v2712
  %v2742 = vadd.f32 %v2677, %v2712
  %v2743 = vadd.f32 %v2678, %v2712
  %v2744 = vadd.f32 %v2679, %v2712
  %v2745 = vadd.f32 %v2680, %v2712
  %v2746 = vadd.f32 %v2681, %v2712
  %v2747 = vadd.f32 %v2682, %v2712
  %v2748 = vadd.f32 %v2683, %v2712
  %v2749 = vadd.f32 %v2684, %v2712
  %v2750 = vadd.f32 %v2685, %v2712
  %v2751 = vadd.f32 %v2686, %v2712
  %v2752 = vadd.f32 %v2687, %v2712
  %v2753 = vadd.f32 %v2688, %v2712
  %v2754 = vadd.f32 %v2689, %v2712
  %v2755 = vadd.f32 %v2690, %v2712
  %v2756 = vadd.f32 %v2691, %v2712
  %v2757 = vadd.f32 %v2692, %v2712
  %v2758 = vadd.f32 %v2693, %v2712
  %v2759 = vadd.f32 %v2694, %v2712
  %v2760 = vadd.f32 %v2695, %v2712
  %v2761 = vadd.f32 %v2696, %v2712
  %v2762 = vadd.f32 %v2697, %v2712
  %v2763 = vadd.f32 %v2698, %v2712
  %v2764 = vadd.f32 %v2699, %v2712
  %v2765 = vadd.f32 %v2700, %v2712
  %v2766 = vadd.f32 %v2701, %v2712
  %v2767 = vadd.f32 %v2702, %v2712
  %v2768 = vadd.f32 %v2703, %v2712
  %v2769 = vadd.f32 %v2704, %v2712
  %v2770 = vadd.f32 %v2705, %v2712
  %v2771 = vadd.f32 %v2706, %v2712
  %v2772 = vadd.f32 %v2707, %v2712
  %v2773 = vadd.f32 %v2708, %v2712
  %v2774 = vadd.f32 %v2709, %v2712
  %v2775 = vadd.f32 %v2710, %v2712
  %v2776 = vadd.f32 %v2711, %v2712
  %v2777 = vxor.u32 %v2713, 2147483648
  %v2778 = vxor.u32 %v2714, 2147483648
  %v2779 = vxor.u32 %v2715, 2147483648
  %v2780 = vxor.u32 %v2716, 2147483648
  %v2781 = vxor.u32 %v2717, 2147483648
  %v2782 = vxor.u32 %v2718, 2147483648
  %v2783 = vxor.u32 %v2719, 2147483648
  %v2784 = vxor.u32 %v2720, 2147483648
  %v2785 = vxor.u32 %v2721, 2147483648
  %v2786 = vxor.u32 %v2722, 2147483648
  %v2787 = vxor.u32 %v2723, 2147483648
  %v2788 = vxor.u32 %v2724, 2147483648
  %v2789 = vxor.u32 %v2725, 2147483648
  %v2790 = vxor.u32 %v2726, 2147483648
  %v2791 = vxor.u32 %v2727, 2147483648
  %v2792 = vxor.u32 %v2728, 2147483648
  %v2793 = vxor.u32 %v2729, 2147483648
  %v2794 = vxor.u32 %v2730, 2147483648
  %v2795 = vxor.u32 %v2731, 2147483648
  %v2796 = vxor.u32 %v2732, 2147483648
  %v2797 = vxor.u32 %v2733, 2147483648
  %v2798 = vxor.u32 %v2734, 2147483648
  %v2799 = vxor.u32 %v2735, 2147483648
  %v2800 = vxor.u32 %v2736, 2147483648
  %v2801 = vxor.u32 %v2737, 2147483648
  %v2802 = vxor.u32 %v2738, 2147483648
  %v2803 = vxor.u32 %v2739, 2147483648
  %v2804 = vxor.u32 %v2740, 2147483648
  %v2805 = vxor.u32 %v2741, 2147483648
  %v2806 = vxor.u32 %v2742, 2147483648
  %v2807 = vxor.u32 %v2743, 2147483648
  %v2808 = vxor.u32 %v2744, 2147483648
  %v2809 = vxor.u32 %v2745, 2147483648
  %v2810 = vxor.u32 %v2746, 2147483648
  %v2811 = vxor.u32 %v2747, 2147483648
  %v2812 = vxor.u32 %v2748, 2147483648
  %v2813 = vxor.u32 %v2749, 2147483648
  %v2814 = vxor.u32 %v2750, 2147483648
  %v2815 = vxor.u32 %v2751, 2147483648
  %v2816 = vxor.u32 %v2752, 2147483648
  %v2817 = vxor.u32 %v2753, 2147483648
  %v2818 = vxor.u32 %v2754, 2147483648
  %v2819 = vxor.u32 %v2755, 2147483648
  %v2820 = vxor.u32 %v2756, 2147483648
  %v2821 = vxor.u32 %v2757, 2147483648
  %v2822 = vxor.u32 %v2758, 2147483648
  %v2823 = vxor.u32 %v2759, 2147483648
  %v2824 = vxor.u32 %v2760, 2147483648
  %v2825 = vxor.u32 %v2761, 2147483648
  %v2826 = vxor.u32 %v2762, 2147483648
  %v2827 = vxor.u32 %v2763, 2147483648
  %v2828 = vxor.u32 %v2764, 2147483648
  %v2829 = vxor.u32 %v2765, 2147483648
  %v2830 = vxor.u32 %v2766, 2147483648
  %v2831 = vxor.u32 %v2767, 2147483648
  %v2832 = vxor.u32 %v2768, 2147483648
  %v2833 = vxor.u32 %v2769, 2147483648
  %v2834 = vxor.u32 %v2770, 2147483648
  %v2835 = vxor.u32 %v2771, 2147483648
  %v2836 = vxor.u32 %v2772, 2147483648
  %v2837 = vxor.u32 %v2773, 2147483648
  %v2838 = vxor.u32 %v2774, 2147483648
  %v2839 = vxor.u32 %v2775, 2147483648
  %v2840 = vxor.u32 %v2776, 2147483648
  %v2841 = vmul.f32 %v2777, 1.442695
  %v2842 = vpow.pop %v2841
  %v2843 = vmul.f32 %v2778, 1.442695
  %v2844 = vpow.pop %v2843
  %v2845 = vmul.f32 %v2779, 1.442695
  %v2846 = vpow.pop %v2845
  %v2847 = vmul.f32 %v2780, 1.442695
  %v2848 = vpow.pop %v2847
  %v2849 = vmul.f32 %v2781, 1.442695
  %v2850 = vpow.pop %v2849
  %v2851 = vmul.f32 %v2782, 1.442695
  %v2852 = vpow.pop %v2851
  %v2853 = vmul.f32 %v2783, 1.442695
  %v2854 = vpow.pop %v2853
  %v2855 = vmul.f32 %v2784, 1.442695
  %v2856 = vpow.pop %v2855
  %v2857 = vmul.f32 %v2785, 1.442695
  %v2858 = vpow.pop %v2857
  %v2859 = vmul.f32 %v2786, 1.442695
  %v2860 = vpow.pop %v2859
  %v2861 = vmul.f32 %v2787, 1.442695
  %v2862 = vpow.pop %v2861
  %v2863 = vmul.f32 %v2788, 1.442695
  %v2864 = vpow.pop %v2863
  %v2865 = vmul.f32 %v2789, 1.442695
  %v2866 = vpow.pop %v2865
  %v2867 = vmul.f32 %v2790, 1.442695
  %v2868 = vpow.pop %v2867
  %v2869 = vmul.f32 %v2791, 1.442695
  %v2870 = vpow.pop %v2869
  %v2871 = vmul.f32 %v2792, 1.442695
  %v2872 = vpow.pop %v2871
  %v2873 = vmul.f32 %v2793, 1.442695
  %v2874 = vpow.pop %v2873
  %v2875 = vmul.f32 %v2794, 1.442695
  %v2876 = vpow.pop %v2875
  %v2877 = vmul.f32 %v2795, 1.442695
  %v2878 = vpow.pop %v2877
  %v2879 = vmul.f32 %v2796, 1.442695
  %v2880 = vpow.pop %v2879
  %v2881 = vmul.f32 %v2797, 1.442695
  %v2882 = vpow.pop %v2881
  %v2883 = vmul.f32 %v2798, 1.442695
  %v2884 = vpow.pop %v2883
  %v2885 = vmul.f32 %v2799, 1.442695
  %v2886 = vpow.pop %v2885
  %v2887 = vmul.f32 %v2800, 1.442695
  %v2888 = vpow.pop %v2887
  %v2889 = vmul.f32 %v2801, 1.442695
  %v2890 = vpow.pop %v2889
  %v2891 = vmul.f32 %v2802, 1.442695
  %v2892 = vpow.pop %v2891
  %v2893 = vmul.f32 %v2803, 1.442695
  %v2894 = vpow.pop %v2893
  %v2895 = vmul.f32 %v2804, 1.442695
  %v2896 = vpow.pop %v2895
  %v2897 = vmul.f32 %v2805, 1.442695
  %v2898 = vpow.pop %v2897
  %v2899 = vmul.f32 %v2806, 1.442695
  %v2900 = vpow.pop %v2899
  %v2901 = vmul.f32 %v2807, 1.442695
  %v2902 = vpow.pop %v2901
  %v2903 = vmul.f32 %v2808, 1.442695
  %v2904 = vpow.pop %v2903
  %v2905 = vmul.f32 %v2809, 1.442695
  %v2906 = vpow.pop %v2905
  %v2907 = vmul.f32 %v2810, 1.442695
  %v2908 = vpow.pop %v2907
  %v2909 = vmul.f32 %v2811, 1.442695
  %v2910 = vpow.pop %v2909
  %v2911 = vmul.f32 %v2812, 1.442695
  %v2912 = vpow.pop %v2911
  %v2913 = vmul.f32 %v2813, 1.442695
  %v2914 = vpow.pop %v2913
  %v2915 = vmul.f32 %v2814, 1.442695
  %v2916 = vpow.pop %v2915
  %v2917 = vmul.f32 %v2815, 1.442695
  %v2918 = vpow.pop %v2917
  %v2919 = vmul.f32 %v2816, 1.442695
  %v2920 = vpow.pop %v2919
  %v2921 = vmul.f32 %v2817, 1.442695
  %v2922 = vpow.pop %v2921
  %v2923 = vmul.f32 %v2818, 1.442695
  %v2924 = vpow.pop %v2923
  %v2925 = vmul.f32 %v2819, 1.442695
  %v2926 = vpow.pop %v2925
  %v2927 = vmul.f32 %v2820, 1.442695
  %v2928 = vpow.pop %v2927
  %v2929 = vmul.f32 %v2821, 1.442695
  %v2930 = vpow.pop %v2929
  %v2931 = vmul.f32 %v2822, 1.442695
  %v2932 = vpow.pop %v2931
  %v2933 = vmul.f32 %v2823, 1.442695
  %v2934 = vpow.pop %v2933
  %v2935 = vmul.f32 %v2824, 1.442695
  %v2936 = vpow.pop %v2935
  %v2937 = vmul.f32 %v2825, 1.442695
  %v2938 = vpow.pop %v2937
  %v2939 = vmul.f32 %v2826, 1.442695
  %v2940 = vpow.pop %v2939
  %v2941 = vmul.f32 %v2827, 1.442695
  %v2942 = vpow.pop %v2941
  %v2943 = vmul.f32 %v2828, 1.442695
  %v2944 = vpow.pop %v2943
  %v2945 = vmul.f32 %v2829, 1.442695
  %v2946 = vpow.pop %v2945
  %v2947 = vmul.f32 %v2830, 1.442695
  %v2948 = vpow.pop %v2947
  %v2949 = vmul.f32 %v2831, 1.442695
  %v2950 = vpow.pop %v2949
  %v2951 = vmul.f32 %v2832, 1.442695
  %v2952 = vpow.pop %v2951
  %v2953 = vmul.f32 %v2833, 1.442695
  %v2954 = vpow.pop %v2953
  %v2955 = vmul.f32 %v2834, 1.442695
  %v2956 = vpow.pop %v2955
  %v2957 = vmul.f32 %v2835, 1.442695
  %v2958 = vpow.pop %v2957
  %v2959 = vmul.f32 %v2836, 1.442695
  %v2960 = vpow.pop %v2959
  %v2961 = vmul.f32 %v2837, 1.442695
  %v2962 = vpow.pop %v2961
  %v2963 = vmul.f32 %v2838, 1.442695
  %v2964 = vpow.pop %v2963
  %v2965 = vmul.f32 %v2839, 1.442695
  %v2966 = vpow.pop %v2965
  %v2967 = vmul.f32 %v2840, 1.442695
  %v2968 = vpow.pop %v2967
  %v2969 = vadd.f32 %v2842, 1.0
  %v2970 = vadd.f32 %v2844, 1.0
  %v2971 = vadd.f32 %v2846, 1.0
  %v2972 = vadd.f32 %v2848, 1.0
  %v2973 = vadd.f32 %v2850, 1.0
  %v2974 = vadd.f32 %v2852, 1.0
  %v2975 = vadd.f32 %v2854, 1.0
  %v2976 = vadd.f32 %v2856, 1.0
  %v2977 = vadd.f32 %v2858, 1.0
  %v2978 = vadd.f32 %v2860, 1.0
  %v2979 = vadd.f32 %v2862, 1.0
  %v2980 = vadd.f32 %v2864, 1.0
  %v2981 = vadd.f32 %v2866, 1.0
  %v2982 = vadd.f32 %v2868, 1.0
  %v2983 = vadd.f32 %v2870, 1.0
  %v2984 = vadd.f32 %v2872, 1.0
  %v2985 = vadd.f32 %v2874, 1.0
  %v2986 = vadd.f32 %v2876, 1.0
  %v2987 = vadd.f32 %v2878, 1.0
  %v2988 = vadd.f32 %v2880, 1.0
  %v2989 = vadd.f32 %v2882, 1.0
  %v2990 = vadd.f32 %v2884, 1.0
  %v2991 = vadd.f32 %v2886, 1.0
  %v2992 = vadd.f32 %v2888, 1.0
  %v2993 = vadd.f32 %v2890, 1.0
  %v2994 = vadd.f32 %v2892, 1.0
  %v2995 = vadd.f32 %v2894, 1.0
  %v2996 = vadd.f32 %v2896, 1.0
  %v2997 = vadd.f32 %v2898, 1.0
  %v2998 = vadd.f32 %v2900, 1.0
  %v2999 = vadd.f32 %v2902, 1.0
  %v3000 = vadd.f32 %v2904, 1.0
  %v3001 = vadd.f32 %v2906, 1.0
  %v3002 = vadd.f32 %v2908, 1.0
  %v3003 = vadd.f32 %v2910, 1.0
  %v3004 = vadd.f32 %v2912, 1.0
  %v3005 = vadd.f32 %v2914, 1.0
  %v3006 = vadd.f32 %v2916, 1.0
  %v3007 = vadd.f32 %v2918, 1.0
  %v3008 = vadd.f32 %v2920, 1.0
  %v3009 = vadd.f32 %v2922, 1.0
  %v3010 = vadd.f32 %v2924, 1.0
  %v3011 = vadd.f32 %v2926, 1.0
  %v3012 = vadd.f32 %v2928, 1.0
  %v3013 = vadd.f32 %v2930, 1.0
  %v3014 = vadd.f32 %v2932, 1.0
  %v3015 = vadd.f32 %v2934, 1.0
  %v3016 = vadd.f32 %v2936, 1.0
  %v3017 = vadd.f32 %v2938, 1.0
  %v3018 = vadd.f32 %v2940, 1.0
  %v3019 = vadd.f32 %v2942, 1.0
  %v3020 = vadd.f32 %v2944, 1.0
  %v3021 = vadd.f32 %v2946, 1.0
  %v3022 = vadd.f32 %v2948, 1.0
  %v3023 = vadd.f32 %v2950, 1.0
  %v3024 = vadd.f32 %v2952, 1.0
  %v3025 = vadd.f32 %v2954, 1.0
  %v3026 = vadd.f32 %v2956, 1.0
  %v3027 = vadd.f32 %v2958, 1.0
  %v3028 = vadd.f32 %v2960, 1.0
  %v3029 = vadd.f32 %v2962, 1.0
  %v3030 = vadd.f32 %v2964, 1.0
  %v3031 = vadd.f32 %v2966, 1.0
  %v3032 = vadd.f32 %v2968, 1.0
  %v3033 = vrcp.pop %v2969
  %v3034 = vmul.f32 1.0, %v3033
  %v3035 = vrcp.pop %v2970
  %v3036 = vmul.f32 1.0, %v3035
  %v3037 = vrcp.pop %v2971
  %v3038 = vmul.f32 1.0, %v3037
  %v3039 = vrcp.pop %v2972
  %v3040 = vmul.f32 1.0, %v3039
  %v3041 = vrcp.pop %v2973
  %v3042 = vmul.f32 1.0, %v3041
  %v3043 = vrcp.pop %v2974
  %v3044 = vmul.f32 1.0, %v3043
  %v3045 = vrcp.pop %v2975
  %v3046 = vmul.f32 1.0, %v3045
  %v3047 = vrcp.pop %v2976
  %v3048 = vmul.f32 1.0, %v3047
  %v3049 = vrcp.pop %v2977
  %v3050 = vmul.f32 1.0, %v3049
  %v3051 = vrcp.pop %v2978
  %v3052 = vmul.f32 1.0, %v3051
  %v3053 = vrcp.pop %v2979
  %v3054 = vmul.f32 1.0, %v3053
  %v3055 = vrcp.pop %v2980
  %v3056 = vmul.f32 1.0, %v3055
  %v3057 = vrcp.pop %v2981
  %v3058 = vmul.f32 1.0, %v3057
  %v3059 = vrcp.pop %v2982
  %v3060 = vmul.f32 1.0, %v3059
  %v3061 = vrcp.pop %v2983
  %v3062 = vmul.f32 1.0, %v3061
  %v3063 = vrcp.pop %v2984
  %v3064 = vmul.f32 1.0, %v3063
  %v3065 = vrcp.pop %v2985
  %v3066 = vmul.f32 1.0, %v3065
  %v3067 = vrcp.pop %v2986
  %v3068 = vmul.f32 1.0, %v3067
  %v3069 = vrcp.pop %v2987
  %v3070 = vmul.f32 1.0, %v3069
  %v3071 = vrcp.pop %v2988
  %v3072 = vmul.f32 1.0, %v3071
  %v3073 = vrcp.pop %v2989
  %v3074 = vmul.f32 1.0, %v3073
  %v3075 = vrcp.pop %v2990
  %v3076 = vmul.f32 1.0, %v3075
  %v3077 = vrcp.pop %v2991
  %v3078 = vmul.f32 1.0, %v3077
  %v3079 = vrcp.pop %v2992
  %v3080 = vmul.f32 1.0, %v3079
  %v3081 = vrcp.pop %v2993
  %v3082 = vmul.f32 1.0, %v3081
  %v3083 = vrcp.pop %v2994
  %v3084 = vmul.f32 1.0, %v3083
  %v3085 = vrcp.pop %v2995
  %v3086 = vmul.f32 1.0, %v3085
  %v3087 = vrcp.pop %v2996
  %v3088 = vmul.f32 1.0, %v3087
  %v3089 = vrcp.pop %v2997
  %v3090 = vmul.f32 1.0, %v3089
  %v3091 = vrcp.pop %v2998
  %v3092 = vmul.f32 1.0, %v3091
  %v3093 = vrcp.pop %v2999
  %v3094 = vmul.f32 1.0, %v3093
  %v3095 = vrcp.pop %v3000
  %v3096 = vmul.f32 1.0, %v3095
  %v3097 = vrcp.pop %v3001
  %v3098 = vmul.f32 1.0, %v3097
  %v3099 = vrcp.pop %v3002
  %v3100 = vmul.f32 1.0, %v3099
  %v3101 = vrcp.pop %v3003
  %v3102 = vmul.f32 1.0, %v3101
  %v3103 = vrcp.pop %v3004
  %v3104 = vmul.f32 1.0, %v3103
  %v3105 = vrcp.pop %v3005
  %v3106 = vmul.f32 1.0, %v3105
  %v3107 = vrcp.pop %v3006
  %v3108 = vmul.f32 1.0, %v3107
  %v3109 = vrcp.pop %v3007
  %v3110 = vmul.f32 1.0, %v3109
  %v3111 = vrcp.pop %v3008
  %v3112 = vmul.f32 1.0, %v3111
  %v3113 = vrcp.pop %v3009
  %v3114 = vmul.f32 1.0, %v3113
  %v3115 = vrcp.pop %v3010
  %v3116 = vmul.f32 1.0, %v3115
  %v3117 = vrcp.pop %v3011
  %v3118 = vmul.f32 1.0, %v3117
  %v3119 = vrcp.pop %v3012
  %v3120 = vmul.f32 1.0, %v3119
  %v3121 = vrcp.pop %v3013
  %v3122 = vmul.f32 1.0, %v3121
  %v3123 = vrcp.pop %v3014
  %v3124 = vmul.f32 1.0, %v3123
  %v3125 = vrcp.pop %v3015
  %v3126 = vmul.f32 1.0, %v3125
  %v3127 = vrcp.pop %v3016
  %v3128 = vmul.f32 1.0, %v3127
  %v3129 = vrcp.pop %v3017
  %v3130 = vmul.f32 1.0, %v3129
  %v3131 = vrcp.pop %v3018
  %v3132 = vmul.f32 1.0, %v3131
  %v3133 = vrcp.pop %v3019
  %v3134 = vmul.f32 1.0, %v3133
  %v3135 = vrcp.pop %v3020
  %v3136 = vmul.f32 1.0, %v3135
  %v3137 = vrcp.pop %v3021
  %v3138 = vmul.f32 1.0, %v3137
  %v3139 = vrcp.pop %v3022
  %v3140 = vmul.f32 1.0, %v3139
  %v3141 = vrcp.pop %v3023
  %v3142 = vmul.f32 1.0, %v3141
  %v3143 = vrcp.pop %v3024
  %v3144 = vmul.f32 1.0, %v3143
  %v3145 = vrcp.pop %v3025
  %v3146 = vmul.f32 1.0, %v3145
  %v3147 = vrcp.pop %v3026
  %v3148 = vmul.f32 1.0, %v3147
  %v3149 = vrcp.pop %v3027
  %v3150 = vmul.f32 1.0, %v3149
  %v3151 = vrcp.pop %v3028
  %v3152 = vmul.f32 1.0, %v3151
  %v3153 = vrcp.pop %v3029
  %v3154 = vmul.f32 1.0, %v3153
  %v3155 = vrcp.pop %v3030
  %v3156 = vmul.f32 1.0, %v3155
  %v3157 = vrcp.pop %v3031
  %v3158 = vmul.f32 1.0, %v3157
  %v3159 = vrcp.pop %v3032
  %v3160 = vmul.f32 1.0, %v3159
  %v3161 = vld [vmem:[%s6] sm:$0x1]
  %v3162 = vsub.f32 1.0, %v3161
  %v3164 = vlaneseq
  %v3165 = vshrl.u32 %v3164, 7
  %v3166 = vsub.s32 0, %v3165
  %v3167 = vrot.slane %v3162, %v3166
  %v3169 = vmul.f32 %v3034, %v3167
  %v3170 = vmul.f32 %v3036, %v3167
  %v3171 = vmul.f32 %v3038, %v3167
  %v3172 = vmul.f32 %v3040, %v3167
  %v3173 = vmul.f32 %v3042, %v3167
  %v3174 = vmul.f32 %v3044, %v3167
  %v3175 = vmul.f32 %v3046, %v3167
  %v3176 = vmul.f32 %v3048, %v3167
  %v3177 = vmul.f32 %v3050, %v3167
  %v3178 = vmul.f32 %v3052, %v3167
  %v3179 = vmul.f32 %v3054, %v3167
  %v3180 = vmul.f32 %v3056, %v3167
  %v3181 = vmul.f32 %v3058, %v3167
  %v3182 = vmul.f32 %v3060, %v3167
  %v3183 = vmul.f32 %v3062, %v3167
  %v3184 = vmul.f32 %v3064, %v3167
  %v3185 = vmul.f32 %v3066, %v3167
  %v3186 = vmul.f32 %v3068, %v3167
  %v3187 = vmul.f32 %v3070, %v3167
  %v3188 = vmul.f32 %v3072, %v3167
  %v3189 = vmul.f32 %v3074, %v3167
  %v3190 = vmul.f32 %v3076, %v3167
  %v3191 = vmul.f32 %v3078, %v3167
  %v3192 = vmul.f32 %v3080, %v3167
  %v3193 = vmul.f32 %v3082, %v3167
  %v3194 = vmul.f32 %v3084, %v3167
  %v3195 = vmul.f32 %v3086, %v3167
  %v3196 = vmul.f32 %v3088, %v3167
  %v3197 = vmul.f32 %v3090, %v3167
  %v3198 = vmul.f32 %v3092, %v3167
  %v3199 = vmul.f32 %v3094, %v3167
  %v3200 = vmul.f32 %v3096, %v3167
  %v3201 = vmul.f32 %v3098, %v3167
  %v3202 = vmul.f32 %v3100, %v3167
  %v3203 = vmul.f32 %v3102, %v3167
  %v3204 = vmul.f32 %v3104, %v3167
  %v3205 = vmul.f32 %v3106, %v3167
  %v3206 = vmul.f32 %v3108, %v3167
  %v3207 = vmul.f32 %v3110, %v3167
  %v3208 = vmul.f32 %v3112, %v3167
  %v3209 = vmul.f32 %v3114, %v3167
  %v3210 = vmul.f32 %v3116, %v3167
  %v3211 = vmul.f32 %v3118, %v3167
  %v3212 = vmul.f32 %v3120, %v3167
  %v3213 = vmul.f32 %v3122, %v3167
  %v3214 = vmul.f32 %v3124, %v3167
  %v3215 = vmul.f32 %v3126, %v3167
  %v3216 = vmul.f32 %v3128, %v3167
  %v3217 = vmul.f32 %v3130, %v3167
  %v3218 = vmul.f32 %v3132, %v3167
  %v3219 = vmul.f32 %v3134, %v3167
  %v3220 = vmul.f32 %v3136, %v3167
  %v3221 = vmul.f32 %v3138, %v3167
  %v3222 = vmul.f32 %v3140, %v3167
  %v3223 = vmul.f32 %v3142, %v3167
  %v3224 = vmul.f32 %v3144, %v3167
  %v3225 = vmul.f32 %v3146, %v3167
  %v3226 = vmul.f32 %v3148, %v3167
  %v3227 = vmul.f32 %v3150, %v3167
  %v3228 = vmul.f32 %v3152, %v3167
  %v3229 = vmul.f32 %v3154, %v3167
  %v3230 = vmul.f32 %v3156, %v3167
  %v3231 = vmul.f32 %v3158, %v3167
  %v3232 = vmul.f32 %v3160, %v3167
  %v3234 = vlaneseq
  %v3235 = vshrl.u32 %v3234, 7
  %v3236 = vsub.s32 0, %v3235
  %v3237 = vrot.slane %v3161, %v3236
  %v3239 = vadd.f32 %v3237, %v3169
  %v3240 = vadd.f32 %v3237, %v3170
  %v3241 = vadd.f32 %v3237, %v3171
  %v3242 = vadd.f32 %v3237, %v3172
  %v3243 = vadd.f32 %v3237, %v3173
  %v3244 = vadd.f32 %v3237, %v3174
  %v3245 = vadd.f32 %v3237, %v3175
  %v3246 = vadd.f32 %v3237, %v3176
  %v3247 = vadd.f32 %v3237, %v3177
  %v3248 = vadd.f32 %v3237, %v3178
  %v3249 = vadd.f32 %v3237, %v3179
  %v3250 = vadd.f32 %v3237, %v3180
  %v3251 = vadd.f32 %v3237, %v3181
  %v3252 = vadd.f32 %v3237, %v3182
  %v3253 = vadd.f32 %v3237, %v3183
  %v3254 = vadd.f32 %v3237, %v3184
  %v3255 = vadd.f32 %v3237, %v3185
  %v3256 = vadd.f32 %v3237, %v3186
  %v3257 = vadd.f32 %v3237, %v3187
  %v3258 = vadd.f32 %v3237, %v3188
  %v3259 = vadd.f32 %v3237, %v3189
  %v3260 = vadd.f32 %v3237, %v3190
  %v3261 = vadd.f32 %v3237, %v3191
  %v3262 = vadd.f32 %v3237, %v3192
  %v3263 = vadd.f32 %v3237, %v3193
  %v3264 = vadd.f32 %v3237, %v3194
  %v3265 = vadd.f32 %v3237, %v3195
  %v3266 = vadd.f32 %v3237, %v3196
  %v3267 = vadd.f32 %v3237, %v3197
  %v3268 = vadd.f32 %v3237, %v3198
  %v3269 = vadd.f32 %v3237, %v3199
  %v3270 = vadd.f32 %v3237, %v3200
  %v3271 = vadd.f32 %v3237, %v3201
  %v3272 = vadd.f32 %v3237, %v3202
  %v3273 = vadd.f32 %v3237, %v3203
  %v3274 = vadd.f32 %v3237, %v3204
  %v3275 = vadd.f32 %v3237, %v3205
  %v3276 = vadd.f32 %v3237, %v3206
  %v3277 = vadd.f32 %v3237, %v3207
  %v3278 = vadd.f32 %v3237, %v3208
  %v3279 = vadd.f32 %v3237, %v3209
  %v3280 = vadd.f32 %v3237, %v3210
  %v3281 = vadd.f32 %v3237, %v3211
  %v3282 = vadd.f32 %v3237, %v3212
  %v3283 = vadd.f32 %v3237, %v3213
  %v3284 = vadd.f32 %v3237, %v3214
  %v3285 = vadd.f32 %v3237, %v3215
  %v3286 = vadd.f32 %v3237, %v3216
  %v3287 = vadd.f32 %v3237, %v3217
  %v3288 = vadd.f32 %v3237, %v3218
  %v3289 = vadd.f32 %v3237, %v3219
  %v3290 = vadd.f32 %v3237, %v3220
  %v3291 = vadd.f32 %v3237, %v3221
  %v3292 = vadd.f32 %v3237, %v3222
  %v3293 = vadd.f32 %v3237, %v3223
  %v3294 = vadd.f32 %v3237, %v3224
  %v3295 = vadd.f32 %v3237, %v3225
  %v3296 = vadd.f32 %v3237, %v3226
  %v3297 = vadd.f32 %v3237, %v3227
  %v3298 = vadd.f32 %v3237, %v3228
  %v3299 = vadd.f32 %v3237, %v3229
  %v3300 = vadd.f32 %v3237, %v3230
  %v3301 = vadd.f32 %v3237, %v3231
  %v3302 = vadd.f32 %v3237, %v3232
  %v3303 = vmul.f32 %v2583, %v3239
  %v3304 = vmul.f32 %v2584, %v3240
  %v3305 = vmul.f32 %v2585, %v3241
  %v3306 = vmul.f32 %v2586, %v3242
  %v3307 = vmul.f32 %v2587, %v3243
  %v3308 = vmul.f32 %v2588, %v3244
  %v3309 = vmul.f32 %v2589, %v3245
  %v3310 = vmul.f32 %v2590, %v3246
  %v3311 = vmul.f32 %v2591, %v3247
  %v3312 = vmul.f32 %v2592, %v3248
  %v3313 = vmul.f32 %v2593, %v3249
  %v3314 = vmul.f32 %v2594, %v3250
  %v3315 = vmul.f32 %v2595, %v3251
  %v3316 = vmul.f32 %v2596, %v3252
  %v3317 = vmul.f32 %v2597, %v3253
  %v3318 = vmul.f32 %v2598, %v3254
  %v3319 = vmul.f32 %v2599, %v3255
  %v3320 = vmul.f32 %v2600, %v3256
  %v3321 = vmul.f32 %v2601, %v3257
  %v3322 = vmul.f32 %v2602, %v3258
  %v3323 = vmul.f32 %v2603, %v3259
  %v3324 = vmul.f32 %v2604, %v3260
  %v3325 = vmul.f32 %v2605, %v3261
  %v3326 = vmul.f32 %v2606, %v3262
  %v3327 = vmul.f32 %v2607, %v3263
  %v3328 = vmul.f32 %v2608, %v3264
  %v3329 = vmul.f32 %v2609, %v3265
  %v3330 = vmul.f32 %v2610, %v3266
  %v3331 = vmul.f32 %v2611, %v3267
  %v3332 = vmul.f32 %v2612, %v3268
  %v3333 = vmul.f32 %v2613, %v3269
  %v3334 = vmul.f32 %v2614, %v3270
  %v3335 = vmul.f32 %v2615, %v3271
  %v3336 = vmul.f32 %v2616, %v3272
  %v3337 = vmul.f32 %v2617, %v3273
  %v3338 = vmul.f32 %v2618, %v3274
  %v3339 = vmul.f32 %v2619, %v3275
  %v3340 = vmul.f32 %v2620, %v3276
  %v3341 = vmul.f32 %v2621, %v3277
  %v3342 = vmul.f32 %v2622, %v3278
  %v3343 = vmul.f32 %v2623, %v3279
  %v3344 = vmul.f32 %v2624, %v3280
  %v3345 = vmul.f32 %v2625, %v3281
  %v3346 = vmul.f32 %v2626, %v3282
  %v3347 = vmul.f32 %v2627, %v3283
  %v3348 = vmul.f32 %v2628, %v3284
  %v3349 = vmul.f32 %v2629, %v3285
  %v3350 = vmul.f32 %v2630, %v3286
  %v3351 = vmul.f32 %v2631, %v3287
  %v3352 = vmul.f32 %v2632, %v3288
  %v3353 = vmul.f32 %v2633, %v3289
  %v3354 = vmul.f32 %v2634, %v3290
  %v3355 = vmul.f32 %v2635, %v3291
  %v3356 = vmul.f32 %v2636, %v3292
  %v3357 = vmul.f32 %v2637, %v3293
  %v3358 = vmul.f32 %v2638, %v3294
  %v3359 = vmul.f32 %v2639, %v3295
  %v3360 = vmul.f32 %v2640, %v3296
  %v3361 = vmul.f32 %v2641, %v3297
  %v3362 = vmul.f32 %v2642, %v3298
  %v3363 = vmul.f32 %v2643, %v3299
  %v3364 = vmul.f32 %v2644, %v3300
  %v3365 = vmul.f32 %v2645, %v3301
  %v3366 = vmul.f32 %v2646, %v3302
  %v3367 = vld [vmem:[%s8] sm:$0x1]
  %v3369 = vlaneseq
  %v3370 = vshrl.u32 %v3369, 7
  %v3371 = vsub.s32 0, %v3370
  %v3372 = vrot.slane %v3367, %v3371
  %v3374 = vmul.f32 %v3303, %v3372
  %v3375 = vmul.f32 %v3304, %v3372
  %v3376 = vmul.f32 %v3305, %v3372
  %v3377 = vmul.f32 %v3306, %v3372
  %v3378 = vmul.f32 %v3307, %v3372
  %v3379 = vmul.f32 %v3308, %v3372
  %v3380 = vmul.f32 %v3309, %v3372
  %v3381 = vmul.f32 %v3310, %v3372
  %v3382 = vmul.f32 %v3311, %v3372
  %v3383 = vmul.f32 %v3312, %v3372
  %v3384 = vmul.f32 %v3313, %v3372
  %v3385 = vmul.f32 %v3314, %v3372
  %v3386 = vmul.f32 %v3315, %v3372
  %v3387 = vmul.f32 %v3316, %v3372
  %v3388 = vmul.f32 %v3317, %v3372
  %v3389 = vmul.f32 %v3318, %v3372
  %v3390 = vmul.f32 %v3319, %v3372
  %v3391 = vmul.f32 %v3320, %v3372
  %v3392 = vmul.f32 %v3321, %v3372
  %v3393 = vmul.f32 %v3322, %v3372
  %v3394 = vmul.f32 %v3323, %v3372
  %v3395 = vmul.f32 %v3324, %v3372
  %v3396 = vmul.f32 %v3325, %v3372
  %v3397 = vmul.f32 %v3326, %v3372
  %v3398 = vmul.f32 %v3327, %v3372
  %v3399 = vmul.f32 %v3328, %v3372
  %v3400 = vmul.f32 %v3329, %v3372
  %v3401 = vmul.f32 %v3330, %v3372
  %v3402 = vmul.f32 %v3331, %v3372
  %v3403 = vmul.f32 %v3332, %v3372
  %v3404 = vmul.f32 %v3333, %v3372
  %v3405 = vmul.f32 %v3334, %v3372
  %v3406 = vmul.f32 %v3335, %v3372
  %v3407 = vmul.f32 %v3336, %v3372
  %v3408 = vmul.f32 %v3337, %v3372
  %v3409 = vmul.f32 %v3338, %v3372
  %v3410 = vmul.f32 %v3339, %v3372
  %v3411 = vmul.f32 %v3340, %v3372
  %v3412 = vmul.f32 %v3341, %v3372
  %v3413 = vmul.f32 %v3342, %v3372
  %v3414 = vmul.f32 %v3343, %v3372
  %v3415 = vmul.f32 %v3344, %v3372
  %v3416 = vmul.f32 %v3345, %v3372
  %v3417 = vmul.f32 %v3346, %v3372
  %v3418 = vmul.f32 %v3347, %v3372
  %v3419 = vmul.f32 %v3348, %v3372
  %v3420 = vmul.f32 %v3349, %v3372
  %v3421 = vmul.f32 %v3350, %v3372
  %v3422 = vmul.f32 %v3351, %v3372
  %v3423 = vmul.f32 %v3352, %v3372
  %v3424 = vmul.f32 %v3353, %v3372
  %v3425 = vmul.f32 %v3354, %v3372
  %v3426 = vmul.f32 %v3355, %v3372
  %v3427 = vmul.f32 %v3356, %v3372
  %v3428 = vmul.f32 %v3357, %v3372
  %v3429 = vmul.f32 %v3358, %v3372
  %v3430 = vmul.f32 %v3359, %v3372
  %v3431 = vmul.f32 %v3360, %v3372
  %v3432 = vmul.f32 %v3361, %v3372
  %v3433 = vmul.f32 %v3362, %v3372
  %v3434 = vmul.f32 %v3363, %v3372
  %v3435 = vmul.f32 %v3364, %v3372
  %v3436 = vmul.f32 %v3365, %v3372
  %v3437 = vmul.f32 %v3366, %v3372
  %vm3438 = vcmask 293888
  %v3439 = vsel %vm3438, %v3374, 0.0
  %3440 = vadd.xlane.f32.xlu0 %v3439
  %v3441 = vpop.xlane.xlu0 %3440
  %v3442 = vsel %vm3438, %v3375, 0.0
  %3443 = vadd.xlane.f32.xlu0 %v3442
  %v3444 = vpop.xlane.xlu0 %3443
  %v3445 = vsel %vm3438, %v3376, 0.0
  %3446 = vadd.xlane.f32.xlu0 %v3445
  %v3447 = vpop.xlane.xlu0 %3446
  %v3448 = vsel %vm3438, %v3377, 0.0
  %3449 = vadd.xlane.f32.xlu0 %v3448
  %v3450 = vpop.xlane.xlu0 %3449
  %v3451 = vsel %vm3438, %v3378, 0.0
  %3452 = vadd.xlane.f32.xlu0 %v3451
  %v3453 = vpop.xlane.xlu0 %3452
  %v3454 = vsel %vm3438, %v3379, 0.0
  %3455 = vadd.xlane.f32.xlu0 %v3454
  %v3456 = vpop.xlane.xlu0 %3455
  %v3457 = vsel %vm3438, %v3380, 0.0
  %3458 = vadd.xlane.f32.xlu0 %v3457
  %v3459 = vpop.xlane.xlu0 %3458
  %v3460 = vsel %vm3438, %v3381, 0.0
  %3461 = vadd.xlane.f32.xlu0 %v3460
  %v3462 = vpop.xlane.xlu0 %3461
  %v3463 = vsel %vm3438, %v3382, 0.0
  %3464 = vadd.xlane.f32.xlu0 %v3463
  %v3465 = vpop.xlane.xlu0 %3464
  %v3466 = vsel %vm3438, %v3383, 0.0
  %3467 = vadd.xlane.f32.xlu0 %v3466
  %v3468 = vpop.xlane.xlu0 %3467
  %v3469 = vsel %vm3438, %v3384, 0.0
  %3470 = vadd.xlane.f32.xlu0 %v3469
  %v3471 = vpop.xlane.xlu0 %3470
  %v3472 = vsel %vm3438, %v3385, 0.0
  %3473 = vadd.xlane.f32.xlu0 %v3472
  %v3474 = vpop.xlane.xlu0 %3473
  %v3475 = vsel %vm3438, %v3386, 0.0
  %3476 = vadd.xlane.f32.xlu0 %v3475
  %v3477 = vpop.xlane.xlu0 %3476
  %v3478 = vsel %vm3438, %v3387, 0.0
  %3479 = vadd.xlane.f32.xlu0 %v3478
  %v3480 = vpop.xlane.xlu0 %3479
  %v3481 = vsel %vm3438, %v3388, 0.0
  %3482 = vadd.xlane.f32.xlu0 %v3481
  %v3483 = vpop.xlane.xlu0 %3482
  %v3484 = vsel %vm3438, %v3389, 0.0
  %3485 = vadd.xlane.f32.xlu0 %v3484
  %v3486 = vpop.xlane.xlu0 %3485
  %v3487 = vsel %vm3438, %v3390, 0.0
  %3488 = vadd.xlane.f32.xlu0 %v3487
  %v3489 = vpop.xlane.xlu0 %3488
  %v3490 = vsel %vm3438, %v3391, 0.0
  %3491 = vadd.xlane.f32.xlu0 %v3490
  %v3492 = vpop.xlane.xlu0 %3491
  %v3493 = vsel %vm3438, %v3392, 0.0
  %3494 = vadd.xlane.f32.xlu0 %v3493
  %v3495 = vpop.xlane.xlu0 %3494
  %v3496 = vsel %vm3438, %v3393, 0.0
  %3497 = vadd.xlane.f32.xlu0 %v3496
  %v3498 = vpop.xlane.xlu0 %3497
  %v3499 = vsel %vm3438, %v3394, 0.0
  %3500 = vadd.xlane.f32.xlu0 %v3499
  %v3501 = vpop.xlane.xlu0 %3500
  %v3502 = vsel %vm3438, %v3395, 0.0
  %3503 = vadd.xlane.f32.xlu0 %v3502
  %v3504 = vpop.xlane.xlu0 %3503
  %v3505 = vsel %vm3438, %v3396, 0.0
  %3506 = vadd.xlane.f32.xlu0 %v3505
  %v3507 = vpop.xlane.xlu0 %3506
  %v3508 = vsel %vm3438, %v3397, 0.0
  %3509 = vadd.xlane.f32.xlu0 %v3508
  %v3510 = vpop.xlane.xlu0 %3509
  %v3511 = vsel %vm3438, %v3398, 0.0
  %3512 = vadd.xlane.f32.xlu0 %v3511
  %v3513 = vpop.xlane.xlu0 %3512
  %v3514 = vsel %vm3438, %v3399, 0.0
  %3515 = vadd.xlane.f32.xlu0 %v3514
  %v3516 = vpop.xlane.xlu0 %3515
  %v3517 = vsel %vm3438, %v3400, 0.0
  %3518 = vadd.xlane.f32.xlu0 %v3517
  %v3519 = vpop.xlane.xlu0 %3518
  %v3520 = vsel %vm3438, %v3401, 0.0
  %3521 = vadd.xlane.f32.xlu0 %v3520
  %v3522 = vpop.xlane.xlu0 %3521
  %v3523 = vsel %vm3438, %v3402, 0.0
  %3524 = vadd.xlane.f32.xlu0 %v3523
  %v3525 = vpop.xlane.xlu0 %3524
  %v3526 = vsel %vm3438, %v3403, 0.0
  %3527 = vadd.xlane.f32.xlu0 %v3526
  %v3528 = vpop.xlane.xlu0 %3527
  %v3529 = vsel %vm3438, %v3404, 0.0
  %3530 = vadd.xlane.f32.xlu0 %v3529
  %v3531 = vpop.xlane.xlu0 %3530
  %v3532 = vsel %vm3438, %v3405, 0.0
  %3533 = vadd.xlane.f32.xlu0 %v3532
  %v3534 = vpop.xlane.xlu0 %3533
  %v3535 = vsel %vm3438, %v3406, 0.0
  %3536 = vadd.xlane.f32.xlu0 %v3535
  %v3537 = vpop.xlane.xlu0 %3536
  %v3538 = vsel %vm3438, %v3407, 0.0
  %3539 = vadd.xlane.f32.xlu0 %v3538
  %v3540 = vpop.xlane.xlu0 %3539
  %v3541 = vsel %vm3438, %v3408, 0.0
  %3542 = vadd.xlane.f32.xlu0 %v3541
  %v3543 = vpop.xlane.xlu0 %3542
  %v3544 = vsel %vm3438, %v3409, 0.0
  %3545 = vadd.xlane.f32.xlu0 %v3544
  %v3546 = vpop.xlane.xlu0 %3545
  %v3547 = vsel %vm3438, %v3410, 0.0
  %3548 = vadd.xlane.f32.xlu0 %v3547
  %v3549 = vpop.xlane.xlu0 %3548
  %v3550 = vsel %vm3438, %v3411, 0.0
  %3551 = vadd.xlane.f32.xlu0 %v3550
  %v3552 = vpop.xlane.xlu0 %3551
  %v3553 = vsel %vm3438, %v3412, 0.0
  %3554 = vadd.xlane.f32.xlu0 %v3553
  %v3555 = vpop.xlane.xlu0 %3554
  %v3556 = vsel %vm3438, %v3413, 0.0
  %3557 = vadd.xlane.f32.xlu0 %v3556
  %v3558 = vpop.xlane.xlu0 %3557
  %v3559 = vsel %vm3438, %v3414, 0.0
  %3560 = vadd.xlane.f32.xlu0 %v3559
  %v3561 = vpop.xlane.xlu0 %3560
  %v3562 = vsel %vm3438, %v3415, 0.0
  %3563 = vadd.xlane.f32.xlu0 %v3562
  %v3564 = vpop.xlane.xlu0 %3563
  %v3565 = vsel %vm3438, %v3416, 0.0
  %3566 = vadd.xlane.f32.xlu0 %v3565
  %v3567 = vpop.xlane.xlu0 %3566
  %v3568 = vsel %vm3438, %v3417, 0.0
  %3569 = vadd.xlane.f32.xlu0 %v3568
  %v3570 = vpop.xlane.xlu0 %3569
  %v3571 = vsel %vm3438, %v3418, 0.0
  %3572 = vadd.xlane.f32.xlu0 %v3571
  %v3573 = vpop.xlane.xlu0 %3572
  %v3574 = vsel %vm3438, %v3419, 0.0
  %3575 = vadd.xlane.f32.xlu0 %v3574
  %v3576 = vpop.xlane.xlu0 %3575
  %v3577 = vsel %vm3438, %v3420, 0.0
  %3578 = vadd.xlane.f32.xlu0 %v3577
  %v3579 = vpop.xlane.xlu0 %3578
  %v3580 = vsel %vm3438, %v3421, 0.0
  %3581 = vadd.xlane.f32.xlu0 %v3580
  %v3582 = vpop.xlane.xlu0 %3581
  %v3583 = vsel %vm3438, %v3422, 0.0
  %3584 = vadd.xlane.f32.xlu0 %v3583
  %v3585 = vpop.xlane.xlu0 %3584
  %v3586 = vsel %vm3438, %v3423, 0.0
  %3587 = vadd.xlane.f32.xlu0 %v3586
  %v3588 = vpop.xlane.xlu0 %3587
  %v3589 = vsel %vm3438, %v3424, 0.0
  %3590 = vadd.xlane.f32.xlu0 %v3589
  %v3591 = vpop.xlane.xlu0 %3590
  %v3592 = vsel %vm3438, %v3425, 0.0
  %3593 = vadd.xlane.f32.xlu0 %v3592
  %v3594 = vpop.xlane.xlu0 %3593
  %v3595 = vsel %vm3438, %v3426, 0.0
  %3596 = vadd.xlane.f32.xlu0 %v3595
  %v3597 = vpop.xlane.xlu0 %3596
  %v3598 = vsel %vm3438, %v3427, 0.0
  %3599 = vadd.xlane.f32.xlu0 %v3598
  %v3600 = vpop.xlane.xlu0 %3599
  %v3601 = vsel %vm3438, %v3428, 0.0
  %3602 = vadd.xlane.f32.xlu0 %v3601
  %v3603 = vpop.xlane.xlu0 %3602
  %v3604 = vsel %vm3438, %v3429, 0.0
  %3605 = vadd.xlane.f32.xlu0 %v3604
  %v3606 = vpop.xlane.xlu0 %3605
  %v3607 = vsel %vm3438, %v3430, 0.0
  %3608 = vadd.xlane.f32.xlu0 %v3607
  %v3609 = vpop.xlane.xlu0 %3608
  %v3610 = vsel %vm3438, %v3431, 0.0
  %3611 = vadd.xlane.f32.xlu0 %v3610
  %v3612 = vpop.xlane.xlu0 %3611
  %v3613 = vsel %vm3438, %v3432, 0.0
  %3614 = vadd.xlane.f32.xlu0 %v3613
  %v3615 = vpop.xlane.xlu0 %3614
  %v3616 = vsel %vm3438, %v3433, 0.0
  %3617 = vadd.xlane.f32.xlu0 %v3616
  %v3618 = vpop.xlane.xlu0 %3617
  %v3619 = vsel %vm3438, %v3434, 0.0
  %3620 = vadd.xlane.f32.xlu0 %v3619
  %v3621 = vpop.xlane.xlu0 %3620
  %v3622 = vsel %vm3438, %v3435, 0.0
  %3623 = vadd.xlane.f32.xlu0 %v3622
  %v3624 = vpop.xlane.xlu0 %3623
  %v3625 = vsel %vm3438, %v3436, 0.0
  %3626 = vadd.xlane.f32.xlu0 %v3625
  %v3627 = vpop.xlane.xlu0 %3626
  %v3628 = vsel %vm3438, %v3437, 0.0
  %3629 = vadd.xlane.f32.xlu0 %v3628
  %v3630 = vpop.xlane.xlu0 %3629
  %s3631 = sld [smem:[#allocation2]]
  %v3632 = vstv %s3631
  %v3633 = vadd.f32 %v3441, %v3632
  %v3634 = vadd.f32 %v3444, %v3632
  %v3635 = vadd.f32 %v3447, %v3632
  %v3636 = vadd.f32 %v3450, %v3632
  %v3637 = vadd.f32 %v3453, %v3632
  %v3638 = vadd.f32 %v3456, %v3632
  %v3639 = vadd.f32 %v3459, %v3632
  %v3640 = vadd.f32 %v3462, %v3632
  %v3641 = vadd.f32 %v3465, %v3632
  %v3642 = vadd.f32 %v3468, %v3632
  %v3643 = vadd.f32 %v3471, %v3632
  %v3644 = vadd.f32 %v3474, %v3632
  %v3645 = vadd.f32 %v3477, %v3632
  %v3646 = vadd.f32 %v3480, %v3632
  %v3647 = vadd.f32 %v3483, %v3632
  %v3648 = vadd.f32 %v3486, %v3632
  %v3649 = vadd.f32 %v3489, %v3632
  %v3650 = vadd.f32 %v3492, %v3632
  %v3651 = vadd.f32 %v3495, %v3632
  %v3652 = vadd.f32 %v3498, %v3632
  %v3653 = vadd.f32 %v3501, %v3632
  %v3654 = vadd.f32 %v3504, %v3632
  %v3655 = vadd.f32 %v3507, %v3632
  %v3656 = vadd.f32 %v3510, %v3632
  %v3657 = vadd.f32 %v3513, %v3632
  %v3658 = vadd.f32 %v3516, %v3632
  %v3659 = vadd.f32 %v3519, %v3632
  %v3660 = vadd.f32 %v3522, %v3632
  %v3661 = vadd.f32 %v3525, %v3632
  %v3662 = vadd.f32 %v3528, %v3632
  %v3663 = vadd.f32 %v3531, %v3632
  %v3664 = vadd.f32 %v3534, %v3632
  %v3665 = vadd.f32 %v3537, %v3632
  %v3666 = vadd.f32 %v3540, %v3632
  %v3667 = vadd.f32 %v3543, %v3632
  %v3668 = vadd.f32 %v3546, %v3632
  %v3669 = vadd.f32 %v3549, %v3632
  %v3670 = vadd.f32 %v3552, %v3632
  %v3671 = vadd.f32 %v3555, %v3632
  %v3672 = vadd.f32 %v3558, %v3632
  %v3673 = vadd.f32 %v3561, %v3632
  %v3674 = vadd.f32 %v3564, %v3632
  %v3675 = vadd.f32 %v3567, %v3632
  %v3676 = vadd.f32 %v3570, %v3632
  %v3677 = vadd.f32 %v3573, %v3632
  %v3678 = vadd.f32 %v3576, %v3632
  %v3679 = vadd.f32 %v3579, %v3632
  %v3680 = vadd.f32 %v3582, %v3632
  %v3681 = vadd.f32 %v3585, %v3632
  %v3682 = vadd.f32 %v3588, %v3632
  %v3683 = vadd.f32 %v3591, %v3632
  %v3684 = vadd.f32 %v3594, %v3632
  %v3685 = vadd.f32 %v3597, %v3632
  %v3686 = vadd.f32 %v3600, %v3632
  %v3687 = vadd.f32 %v3603, %v3632
  %v3688 = vadd.f32 %v3606, %v3632
  %v3689 = vadd.f32 %v3609, %v3632
  %v3690 = vadd.f32 %v3612, %v3632
  %v3691 = vadd.f32 %v3615, %v3632
  %v3692 = vadd.f32 %v3618, %v3632
  %v3693 = vadd.f32 %v3621, %v3632
  %v3694 = vadd.f32 %v3624, %v3632
  %v3695 = vadd.f32 %v3627, %v3632
  %v3696 = vadd.f32 %v3630, %v3632
  %v3697 = vmul.f32 %v3633, %v37
  %v3698 = vmul.f32 %v3634, %v38
  %v3699 = vmul.f32 %v3635, %v39
  %v3700 = vmul.f32 %v3636, %v40
  %v3701 = vmul.f32 %v3637, %v41
  %v3702 = vmul.f32 %v3638, %v42
  %v3703 = vmul.f32 %v3639, %v43
  %v3704 = vmul.f32 %v3640, %v44
  %v3705 = vmul.f32 %v3641, %v45
  %v3706 = vmul.f32 %v3642, %v46
  %v3707 = vmul.f32 %v3643, %v47
  %v3708 = vmul.f32 %v3644, %v48
  %v3709 = vmul.f32 %v3645, %v49
  %v3710 = vmul.f32 %v3646, %v50
  %v3711 = vmul.f32 %v3647, %v51
  %v3712 = vmul.f32 %v3648, %v52
  %v3713 = vmul.f32 %v3649, %v53
  %v3714 = vmul.f32 %v3650, %v54
  %v3715 = vmul.f32 %v3651, %v55
  %v3716 = vmul.f32 %v3652, %v56
  %v3717 = vmul.f32 %v3653, %v57
  %v3718 = vmul.f32 %v3654, %v58
  %v3719 = vmul.f32 %v3655, %v59
  %v3720 = vmul.f32 %v3656, %v60
  %v3721 = vmul.f32 %v3657, %v61
  %v3722 = vmul.f32 %v3658, %v62
  %v3723 = vmul.f32 %v3659, %v63
  %v3724 = vmul.f32 %v3660, %v64
  %v3725 = vmul.f32 %v3661, %v65
  %v3726 = vmul.f32 %v3662, %v66
  %v3727 = vmul.f32 %v3663, %v67
  %v3728 = vmul.f32 %v3664, %v68
  %v3729 = vmul.f32 %v3665, %v69
  %v3730 = vmul.f32 %v3666, %v70
  %v3731 = vmul.f32 %v3667, %v71
  %v3732 = vmul.f32 %v3668, %v72
  %v3733 = vmul.f32 %v3669, %v73
  %v3734 = vmul.f32 %v3670, %v74
  %v3735 = vmul.f32 %v3671, %v75
  %v3736 = vmul.f32 %v3672, %v76
  %v3737 = vmul.f32 %v3673, %v77
  %v3738 = vmul.f32 %v3674, %v78
  %v3739 = vmul.f32 %v3675, %v79
  %v3740 = vmul.f32 %v3676, %v80
  %v3741 = vmul.f32 %v3677, %v81
  %v3742 = vmul.f32 %v3678, %v82
  %v3743 = vmul.f32 %v3679, %v83
  %v3744 = vmul.f32 %v3680, %v84
  %v3745 = vmul.f32 %v3681, %v85
  %v3746 = vmul.f32 %v3682, %v86
  %v3747 = vmul.f32 %v3683, %v87
  %v3748 = vmul.f32 %v3684, %v88
  %v3749 = vmul.f32 %v3685, %v89
  %v3750 = vmul.f32 %v3686, %v90
  %v3751 = vmul.f32 %v3687, %v91
  %v3752 = vmul.f32 %v3688, %v92
  %v3753 = vmul.f32 %v3689, %v93
  %v3754 = vmul.f32 %v3690, %v94
  %v3755 = vmul.f32 %v3691, %v95
  %v3756 = vmul.f32 %v3692, %v96
  %v3757 = vmul.f32 %v3693, %v97
  %v3758 = vmul.f32 %v3694, %v98
  %v3759 = vmul.f32 %v3695, %v99
  %v3760 = vmul.f32 %v3696, %v100
  %v3761 = vsel %vm869, %v3697, 0.0
  %v3762 = vrot.slane %v3761, 4
  %v3763 = vadd.f32 %v3761, %v3762
  %v3764 = vrot.slane %v3763, 2
  %v3765 = vadd.f32 %v3763, %v3764
  %v3766 = vrot.slane %v3765, 1
  %v3767 = vadd.f32 %v3765, %v3766
  %v3768 = vsel %vm869, %v3698, 0.0
  %v3769 = vrot.slane %v3768, 4
  %v3770 = vadd.f32 %v3768, %v3769
  %v3771 = vrot.slane %v3770, 2
  %v3772 = vadd.f32 %v3770, %v3771
  %v3773 = vrot.slane %v3772, 1
  %v3774 = vadd.f32 %v3772, %v3773
  %v3775 = vsel %vm869, %v3699, 0.0
  %v3776 = vrot.slane %v3775, 4
  %v3777 = vadd.f32 %v3775, %v3776
  %v3778 = vrot.slane %v3777, 2
  %v3779 = vadd.f32 %v3777, %v3778
  %v3780 = vrot.slane %v3779, 1
  %v3781 = vadd.f32 %v3779, %v3780
  %v3782 = vsel %vm869, %v3700, 0.0
  %v3783 = vrot.slane %v3782, 4
  %v3784 = vadd.f32 %v3782, %v3783
  %v3785 = vrot.slane %v3784, 2
  %v3786 = vadd.f32 %v3784, %v3785
  %v3787 = vrot.slane %v3786, 1
  %v3788 = vadd.f32 %v3786, %v3787
  %v3789 = vsel %vm869, %v3701, 0.0
  %v3790 = vrot.slane %v3789, 4
  %v3791 = vadd.f32 %v3789, %v3790
  %v3792 = vrot.slane %v3791, 2
  %v3793 = vadd.f32 %v3791, %v3792
  %v3794 = vrot.slane %v3793, 1
  %v3795 = vadd.f32 %v3793, %v3794
  %v3796 = vsel %vm869, %v3702, 0.0
  %v3797 = vrot.slane %v3796, 4
  %v3798 = vadd.f32 %v3796, %v3797
  %v3799 = vrot.slane %v3798, 2
  %v3800 = vadd.f32 %v3798, %v3799
  %v3801 = vrot.slane %v3800, 1
  %v3802 = vadd.f32 %v3800, %v3801
  %v3803 = vsel %vm869, %v3703, 0.0
  %v3804 = vrot.slane %v3803, 4
  %v3805 = vadd.f32 %v3803, %v3804
  %v3806 = vrot.slane %v3805, 2
  %v3807 = vadd.f32 %v3805, %v3806
  %v3808 = vrot.slane %v3807, 1
  %v3809 = vadd.f32 %v3807, %v3808
  %v3810 = vsel %vm869, %v3704, 0.0
  %v3811 = vrot.slane %v3810, 4
  %v3812 = vadd.f32 %v3810, %v3811
  %v3813 = vrot.slane %v3812, 2
  %v3814 = vadd.f32 %v3812, %v3813
  %v3815 = vrot.slane %v3814, 1
  %v3816 = vadd.f32 %v3814, %v3815
  %v3817 = vsel %vm869, %v3705, 0.0
  %v3818 = vrot.slane %v3817, 4
  %v3819 = vadd.f32 %v3817, %v3818
  %v3820 = vrot.slane %v3819, 2
  %v3821 = vadd.f32 %v3819, %v3820
  %v3822 = vrot.slane %v3821, 1
  %v3823 = vadd.f32 %v3821, %v3822
  %v3824 = vsel %vm869, %v3706, 0.0
  %v3825 = vrot.slane %v3824, 4
  %v3826 = vadd.f32 %v3824, %v3825
  %v3827 = vrot.slane %v3826, 2
  %v3828 = vadd.f32 %v3826, %v3827
  %v3829 = vrot.slane %v3828, 1
  %v3830 = vadd.f32 %v3828, %v3829
  %v3831 = vsel %vm869, %v3707, 0.0
  %v3832 = vrot.slane %v3831, 4
  %v3833 = vadd.f32 %v3831, %v3832
  %v3834 = vrot.slane %v3833, 2
  %v3835 = vadd.f32 %v3833, %v3834
  %v3836 = vrot.slane %v3835, 1
  %v3837 = vadd.f32 %v3835, %v3836
  %v3838 = vsel %vm869, %v3708, 0.0
  %v3839 = vrot.slane %v3838, 4
  %v3840 = vadd.f32 %v3838, %v3839
  %v3841 = vrot.slane %v3840, 2
  %v3842 = vadd.f32 %v3840, %v3841
  %v3843 = vrot.slane %v3842, 1
  %v3844 = vadd.f32 %v3842, %v3843
  %v3845 = vsel %vm869, %v3709, 0.0
  %v3846 = vrot.slane %v3845, 4
  %v3847 = vadd.f32 %v3845, %v3846
  %v3848 = vrot.slane %v3847, 2
  %v3849 = vadd.f32 %v3847, %v3848
  %v3850 = vrot.slane %v3849, 1
  %v3851 = vadd.f32 %v3849, %v3850
  %v3852 = vsel %vm869, %v3710, 0.0
  %v3853 = vrot.slane %v3852, 4
  %v3854 = vadd.f32 %v3852, %v3853
  %v3855 = vrot.slane %v3854, 2
  %v3856 = vadd.f32 %v3854, %v3855
  %v3857 = vrot.slane %v3856, 1
  %v3858 = vadd.f32 %v3856, %v3857
  %v3859 = vsel %vm869, %v3711, 0.0
  %v3860 = vrot.slane %v3859, 4
  %v3861 = vadd.f32 %v3859, %v3860
  %v3862 = vrot.slane %v3861, 2
  %v3863 = vadd.f32 %v3861, %v3862
  %v3864 = vrot.slane %v3863, 1
  %v3865 = vadd.f32 %v3863, %v3864
  %v3866 = vsel %vm869, %v3712, 0.0
  %v3867 = vrot.slane %v3866, 4
  %v3868 = vadd.f32 %v3866, %v3867
  %v3869 = vrot.slane %v3868, 2
  %v3870 = vadd.f32 %v3868, %v3869
  %v3871 = vrot.slane %v3870, 1
  %v3872 = vadd.f32 %v3870, %v3871
  %v3873 = vsel %vm869, %v3713, 0.0
  %v3874 = vrot.slane %v3873, 4
  %v3875 = vadd.f32 %v3873, %v3874
  %v3876 = vrot.slane %v3875, 2
  %v3877 = vadd.f32 %v3875, %v3876
  %v3878 = vrot.slane %v3877, 1
  %v3879 = vadd.f32 %v3877, %v3878
  %v3880 = vsel %vm869, %v3714, 0.0
  %v3881 = vrot.slane %v3880, 4
  %v3882 = vadd.f32 %v3880, %v3881
  %v3883 = vrot.slane %v3882, 2
  %v3884 = vadd.f32 %v3882, %v3883
  %v3885 = vrot.slane %v3884, 1
  %v3886 = vadd.f32 %v3884, %v3885
  %v3887 = vsel %vm869, %v3715, 0.0
  %v3888 = vrot.slane %v3887, 4
  %v3889 = vadd.f32 %v3887, %v3888
  %v3890 = vrot.slane %v3889, 2
  %v3891 = vadd.f32 %v3889, %v3890
  %v3892 = vrot.slane %v3891, 1
  %v3893 = vadd.f32 %v3891, %v3892
  %v3894 = vsel %vm869, %v3716, 0.0
  %v3895 = vrot.slane %v3894, 4
  %v3896 = vadd.f32 %v3894, %v3895
  %v3897 = vrot.slane %v3896, 2
  %v3898 = vadd.f32 %v3896, %v3897
  %v3899 = vrot.slane %v3898, 1
  %v3900 = vadd.f32 %v3898, %v3899
  %v3901 = vsel %vm869, %v3717, 0.0
  %v3902 = vrot.slane %v3901, 4
  %v3903 = vadd.f32 %v3901, %v3902
  %v3904 = vrot.slane %v3903, 2
  %v3905 = vadd.f32 %v3903, %v3904
  %v3906 = vrot.slane %v3905, 1
  %v3907 = vadd.f32 %v3905, %v3906
  %v3908 = vsel %vm869, %v3718, 0.0
  %v3909 = vrot.slane %v3908, 4
  %v3910 = vadd.f32 %v3908, %v3909
  %v3911 = vrot.slane %v3910, 2
  %v3912 = vadd.f32 %v3910, %v3911
  %v3913 = vrot.slane %v3912, 1
  %v3914 = vadd.f32 %v3912, %v3913
  %v3915 = vsel %vm869, %v3719, 0.0
  %v3916 = vrot.slane %v3915, 4
  %v3917 = vadd.f32 %v3915, %v3916
  %v3918 = vrot.slane %v3917, 2
  %v3919 = vadd.f32 %v3917, %v3918
  %v3920 = vrot.slane %v3919, 1
  %v3921 = vadd.f32 %v3919, %v3920
  %v3922 = vsel %vm869, %v3720, 0.0
  %v3923 = vrot.slane %v3922, 4
  %v3924 = vadd.f32 %v3922, %v3923
  %v3925 = vrot.slane %v3924, 2
  %v3926 = vadd.f32 %v3924, %v3925
  %v3927 = vrot.slane %v3926, 1
  %v3928 = vadd.f32 %v3926, %v3927
  %v3929 = vsel %vm869, %v3721, 0.0
  %v3930 = vrot.slane %v3929, 4
  %v3931 = vadd.f32 %v3929, %v3930
  %v3932 = vrot.slane %v3931, 2
  %v3933 = vadd.f32 %v3931, %v3932
  %v3934 = vrot.slane %v3933, 1
  %v3935 = vadd.f32 %v3933, %v3934
  %v3936 = vsel %vm869, %v3722, 0.0
  %v3937 = vrot.slane %v3936, 4
  %v3938 = vadd.f32 %v3936, %v3937
  %v3939 = vrot.slane %v3938, 2
  %v3940 = vadd.f32 %v3938, %v3939
  %v3941 = vrot.slane %v3940, 1
  %v3942 = vadd.f32 %v3940, %v3941
  %v3943 = vsel %vm869, %v3723, 0.0
  %v3944 = vrot.slane %v3943, 4
  %v3945 = vadd.f32 %v3943, %v3944
  %v3946 = vrot.slane %v3945, 2
  %v3947 = vadd.f32 %v3945, %v3946
  %v3948 = vrot.slane %v3947, 1
  %v3949 = vadd.f32 %v3947, %v3948
  %v3950 = vsel %vm869, %v3724, 0.0
  %v3951 = vrot.slane %v3950, 4
  %v3952 = vadd.f32 %v3950, %v3951
  %v3953 = vrot.slane %v3952, 2
  %v3954 = vadd.f32 %v3952, %v3953
  %v3955 = vrot.slane %v3954, 1
  %v3956 = vadd.f32 %v3954, %v3955
  %v3957 = vsel %vm869, %v3725, 0.0
  %v3958 = vrot.slane %v3957, 4
  %v3959 = vadd.f32 %v3957, %v3958
  %v3960 = vrot.slane %v3959, 2
  %v3961 = vadd.f32 %v3959, %v3960
  %v3962 = vrot.slane %v3961, 1
  %v3963 = vadd.f32 %v3961, %v3962
  %v3964 = vsel %vm869, %v3726, 0.0
  %v3965 = vrot.slane %v3964, 4
  %v3966 = vadd.f32 %v3964, %v3965
  %v3967 = vrot.slane %v3966, 2
  %v3968 = vadd.f32 %v3966, %v3967
  %v3969 = vrot.slane %v3968, 1
  %v3970 = vadd.f32 %v3968, %v3969
  %v3971 = vsel %vm869, %v3727, 0.0
  %v3972 = vrot.slane %v3971, 4
  %v3973 = vadd.f32 %v3971, %v3972
  %v3974 = vrot.slane %v3973, 2
  %v3975 = vadd.f32 %v3973, %v3974
  %v3976 = vrot.slane %v3975, 1
  %v3977 = vadd.f32 %v3975, %v3976
  %v3978 = vsel %vm869, %v3728, 0.0
  %v3979 = vrot.slane %v3978, 4
  %v3980 = vadd.f32 %v3978, %v3979
  %v3981 = vrot.slane %v3980, 2
  %v3982 = vadd.f32 %v3980, %v3981
  %v3983 = vrot.slane %v3982, 1
  %v3984 = vadd.f32 %v3982, %v3983
  %v3985 = vsel %vm869, %v3729, 0.0
  %v3986 = vrot.slane %v3985, 4
  %v3987 = vadd.f32 %v3985, %v3986
  %v3988 = vrot.slane %v3987, 2
  %v3989 = vadd.f32 %v3987, %v3988
  %v3990 = vrot.slane %v3989, 1
  %v3991 = vadd.f32 %v3989, %v3990
  %v3992 = vsel %vm869, %v3730, 0.0
  %v3993 = vrot.slane %v3992, 4
  %v3994 = vadd.f32 %v3992, %v3993
  %v3995 = vrot.slane %v3994, 2
  %v3996 = vadd.f32 %v3994, %v3995
  %v3997 = vrot.slane %v3996, 1
  %v3998 = vadd.f32 %v3996, %v3997
  %v3999 = vsel %vm869, %v3731, 0.0
  %v4000 = vrot.slane %v3999, 4
  %v4001 = vadd.f32 %v3999, %v4000
  %v4002 = vrot.slane %v4001, 2
  %v4003 = vadd.f32 %v4001, %v4002
  %v4004 = vrot.slane %v4003, 1
  %v4005 = vadd.f32 %v4003, %v4004
  %v4006 = vsel %vm869, %v3732, 0.0
  %v4007 = vrot.slane %v4006, 4
  %v4008 = vadd.f32 %v4006, %v4007
  %v4009 = vrot.slane %v4008, 2
  %v4010 = vadd.f32 %v4008, %v4009
  %v4011 = vrot.slane %v4010, 1
  %v4012 = vadd.f32 %v4010, %v4011
  %v4013 = vsel %vm869, %v3733, 0.0
  %v4014 = vrot.slane %v4013, 4
  %v4015 = vadd.f32 %v4013, %v4014
  %v4016 = vrot.slane %v4015, 2
  %v4017 = vadd.f32 %v4015, %v4016
  %v4018 = vrot.slane %v4017, 1
  %v4019 = vadd.f32 %v4017, %v4018
  %v4020 = vsel %vm869, %v3734, 0.0
  %v4021 = vrot.slane %v4020, 4
  %v4022 = vadd.f32 %v4020, %v4021
  %v4023 = vrot.slane %v4022, 2
  %v4024 = vadd.f32 %v4022, %v4023
  %v4025 = vrot.slane %v4024, 1
  %v4026 = vadd.f32 %v4024, %v4025
  %v4027 = vsel %vm869, %v3735, 0.0
  %v4028 = vrot.slane %v4027, 4
  %v4029 = vadd.f32 %v4027, %v4028
  %v4030 = vrot.slane %v4029, 2
  %v4031 = vadd.f32 %v4029, %v4030
  %v4032 = vrot.slane %v4031, 1
  %v4033 = vadd.f32 %v4031, %v4032
  %v4034 = vsel %vm869, %v3736, 0.0
  %v4035 = vrot.slane %v4034, 4
  %v4036 = vadd.f32 %v4034, %v4035
  %v4037 = vrot.slane %v4036, 2
  %v4038 = vadd.f32 %v4036, %v4037
  %v4039 = vrot.slane %v4038, 1
  %v4040 = vadd.f32 %v4038, %v4039
  %v4041 = vsel %vm869, %v3737, 0.0
  %v4042 = vrot.slane %v4041, 4
  %v4043 = vadd.f32 %v4041, %v4042
  %v4044 = vrot.slane %v4043, 2
  %v4045 = vadd.f32 %v4043, %v4044
  %v4046 = vrot.slane %v4045, 1
  %v4047 = vadd.f32 %v4045, %v4046
  %v4048 = vsel %vm869, %v3738, 0.0
  %v4049 = vrot.slane %v4048, 4
  %v4050 = vadd.f32 %v4048, %v4049
  %v4051 = vrot.slane %v4050, 2
  %v4052 = vadd.f32 %v4050, %v4051
  %v4053 = vrot.slane %v4052, 1
  %v4054 = vadd.f32 %v4052, %v4053
  %v4055 = vsel %vm869, %v3739, 0.0
  %v4056 = vrot.slane %v4055, 4
  %v4057 = vadd.f32 %v4055, %v4056
  %v4058 = vrot.slane %v4057, 2
  %v4059 = vadd.f32 %v4057, %v4058
  %v4060 = vrot.slane %v4059, 1
  %v4061 = vadd.f32 %v4059, %v4060
  %v4062 = vsel %vm869, %v3740, 0.0
  %v4063 = vrot.slane %v4062, 4
  %v4064 = vadd.f32 %v4062, %v4063
  %v4065 = vrot.slane %v4064, 2
  %v4066 = vadd.f32 %v4064, %v4065
  %v4067 = vrot.slane %v4066, 1
  %v4068 = vadd.f32 %v4066, %v4067
  %v4069 = vsel %vm869, %v3741, 0.0
  %v4070 = vrot.slane %v4069, 4
  %v4071 = vadd.f32 %v4069, %v4070
  %v4072 = vrot.slane %v4071, 2
  %v4073 = vadd.f32 %v4071, %v4072
  %v4074 = vrot.slane %v4073, 1
  %v4075 = vadd.f32 %v4073, %v4074
  %v4076 = vsel %vm869, %v3742, 0.0
  %v4077 = vrot.slane %v4076, 4
  %v4078 = vadd.f32 %v4076, %v4077
  %v4079 = vrot.slane %v4078, 2
  %v4080 = vadd.f32 %v4078, %v4079
  %v4081 = vrot.slane %v4080, 1
  %v4082 = vadd.f32 %v4080, %v4081
  %v4083 = vsel %vm869, %v3743, 0.0
  %v4084 = vrot.slane %v4083, 4
  %v4085 = vadd.f32 %v4083, %v4084
  %v4086 = vrot.slane %v4085, 2
  %v4087 = vadd.f32 %v4085, %v4086
  %v4088 = vrot.slane %v4087, 1
  %v4089 = vadd.f32 %v4087, %v4088
  %v4090 = vsel %vm869, %v3744, 0.0
  %v4091 = vrot.slane %v4090, 4
  %v4092 = vadd.f32 %v4090, %v4091
  %v4093 = vrot.slane %v4092, 2
  %v4094 = vadd.f32 %v4092, %v4093
  %v4095 = vrot.slane %v4094, 1
  %v4096 = vadd.f32 %v4094, %v4095
  %v4097 = vsel %vm869, %v3745, 0.0
  %v4098 = vrot.slane %v4097, 4
  %v4099 = vadd.f32 %v4097, %v4098
  %v4100 = vrot.slane %v4099, 2
  %v4101 = vadd.f32 %v4099, %v4100
  %v4102 = vrot.slane %v4101, 1
  %v4103 = vadd.f32 %v4101, %v4102
  %v4104 = vsel %vm869, %v3746, 0.0
  %v4105 = vrot.slane %v4104, 4
  %v4106 = vadd.f32 %v4104, %v4105
  %v4107 = vrot.slane %v4106, 2
  %v4108 = vadd.f32 %v4106, %v4107
  %v4109 = vrot.slane %v4108, 1
  %v4110 = vadd.f32 %v4108, %v4109
  %v4111 = vsel %vm869, %v3747, 0.0
  %v4112 = vrot.slane %v4111, 4
  %v4113 = vadd.f32 %v4111, %v4112
  %v4114 = vrot.slane %v4113, 2
  %v4115 = vadd.f32 %v4113, %v4114
  %v4116 = vrot.slane %v4115, 1
  %v4117 = vadd.f32 %v4115, %v4116
  %v4118 = vsel %vm869, %v3748, 0.0
  %v4119 = vrot.slane %v4118, 4
  %v4120 = vadd.f32 %v4118, %v4119
  %v4121 = vrot.slane %v4120, 2
  %v4122 = vadd.f32 %v4120, %v4121
  %v4123 = vrot.slane %v4122, 1
  %v4124 = vadd.f32 %v4122, %v4123
  %v4125 = vsel %vm869, %v3749, 0.0
  %v4126 = vrot.slane %v4125, 4
  %v4127 = vadd.f32 %v4125, %v4126
  %v4128 = vrot.slane %v4127, 2
  %v4129 = vadd.f32 %v4127, %v4128
  %v4130 = vrot.slane %v4129, 1
  %v4131 = vadd.f32 %v4129, %v4130
  %v4132 = vsel %vm869, %v3750, 0.0
  %v4133 = vrot.slane %v4132, 4
  %v4134 = vadd.f32 %v4132, %v4133
  %v4135 = vrot.slane %v4134, 2
  %v4136 = vadd.f32 %v4134, %v4135
  %v4137 = vrot.slane %v4136, 1
  %v4138 = vadd.f32 %v4136, %v4137
  %v4139 = vsel %vm869, %v3751, 0.0
  %v4140 = vrot.slane %v4139, 4
  %v4141 = vadd.f32 %v4139, %v4140
  %v4142 = vrot.slane %v4141, 2
  %v4143 = vadd.f32 %v4141, %v4142
  %v4144 = vrot.slane %v4143, 1
  %v4145 = vadd.f32 %v4143, %v4144
  %v4146 = vsel %vm869, %v3752, 0.0
  %v4147 = vrot.slane %v4146, 4
  %v4148 = vadd.f32 %v4146, %v4147
  %v4149 = vrot.slane %v4148, 2
  %v4150 = vadd.f32 %v4148, %v4149
  %v4151 = vrot.slane %v4150, 1
  %v4152 = vadd.f32 %v4150, %v4151
  %v4153 = vsel %vm869, %v3753, 0.0
  %v4154 = vrot.slane %v4153, 4
  %v4155 = vadd.f32 %v4153, %v4154
  %v4156 = vrot.slane %v4155, 2
  %v4157 = vadd.f32 %v4155, %v4156
  %v4158 = vrot.slane %v4157, 1
  %v4159 = vadd.f32 %v4157, %v4158
  %v4160 = vsel %vm869, %v3754, 0.0
  %v4161 = vrot.slane %v4160, 4
  %v4162 = vadd.f32 %v4160, %v4161
  %v4163 = vrot.slane %v4162, 2
  %v4164 = vadd.f32 %v4162, %v4163
  %v4165 = vrot.slane %v4164, 1
  %v4166 = vadd.f32 %v4164, %v4165
  %v4167 = vsel %vm869, %v3755, 0.0
  %v4168 = vrot.slane %v4167, 4
  %v4169 = vadd.f32 %v4167, %v4168
  %v4170 = vrot.slane %v4169, 2
  %v4171 = vadd.f32 %v4169, %v4170
  %v4172 = vrot.slane %v4171, 1
  %v4173 = vadd.f32 %v4171, %v4172
  %v4174 = vsel %vm869, %v3756, 0.0
  %v4175 = vrot.slane %v4174, 4
  %v4176 = vadd.f32 %v4174, %v4175
  %v4177 = vrot.slane %v4176, 2
  %v4178 = vadd.f32 %v4176, %v4177
  %v4179 = vrot.slane %v4178, 1
  %v4180 = vadd.f32 %v4178, %v4179
  %v4181 = vsel %vm869, %v3757, 0.0
  %v4182 = vrot.slane %v4181, 4
  %v4183 = vadd.f32 %v4181, %v4182
  %v4184 = vrot.slane %v4183, 2
  %v4185 = vadd.f32 %v4183, %v4184
  %v4186 = vrot.slane %v4185, 1
  %v4187 = vadd.f32 %v4185, %v4186
  %v4188 = vsel %vm869, %v3758, 0.0
  %v4189 = vrot.slane %v4188, 4
  %v4190 = vadd.f32 %v4188, %v4189
  %v4191 = vrot.slane %v4190, 2
  %v4192 = vadd.f32 %v4190, %v4191
  %v4193 = vrot.slane %v4192, 1
  %v4194 = vadd.f32 %v4192, %v4193
  %v4195 = vsel %vm869, %v3759, 0.0
  %v4196 = vrot.slane %v4195, 4
  %v4197 = vadd.f32 %v4195, %v4196
  %v4198 = vrot.slane %v4197, 2
  %v4199 = vadd.f32 %v4197, %v4198
  %v4200 = vrot.slane %v4199, 1
  %v4201 = vadd.f32 %v4199, %v4200
  %v4202 = vsel %vm869, %v3760, 0.0
  %v4203 = vrot.slane %v4202, 4
  %v4204 = vadd.f32 %v4202, %v4203
  %v4205 = vrot.slane %v4204, 2
  %v4206 = vadd.f32 %v4204, %v4205
  %v4207 = vrot.slane %v4206, 1
  %v4208 = vadd.f32 %v4206, %v4207
  %v4273 = vsel %vm1581, %v3774, %v3767
  %v4274 = vsel %vm1584, %v3781, %v4273
  %v4275 = vsel %vm1587, %v3788, %v4274
  %v4276 = vsel %vm1590, %v3795, %v4275
  %v4277 = vsel %vm1593, %v3802, %v4276
  %v4278 = vsel %vm1596, %v3809, %v4277
  %v4279 = vsel %vm1599, %v3816, %v4278
  %v4280 = vsel %vm1581, %v3830, %v3823
  %v4281 = vsel %vm1584, %v3837, %v4280
  %v4282 = vsel %vm1587, %v3844, %v4281
  %v4283 = vsel %vm1590, %v3851, %v4282
  %v4284 = vsel %vm1593, %v3858, %v4283
  %v4285 = vsel %vm1596, %v3865, %v4284
  %v4286 = vsel %vm1599, %v3872, %v4285
  %v4287 = vsel %vm1581, %v3886, %v3879
  %v4288 = vsel %vm1584, %v3893, %v4287
  %v4289 = vsel %vm1587, %v3900, %v4288
  %v4290 = vsel %vm1590, %v3907, %v4289
  %v4291 = vsel %vm1593, %v3914, %v4290
  %v4292 = vsel %vm1596, %v3921, %v4291
  %v4293 = vsel %vm1599, %v3928, %v4292
  %v4294 = vsel %vm1581, %v3942, %v3935
  %v4295 = vsel %vm1584, %v3949, %v4294
  %v4296 = vsel %vm1587, %v3956, %v4295
  %v4297 = vsel %vm1590, %v3963, %v4296
  %v4298 = vsel %vm1593, %v3970, %v4297
  %v4299 = vsel %vm1596, %v3977, %v4298
  %v4300 = vsel %vm1599, %v3984, %v4299
  %v4301 = vsel %vm1581, %v3998, %v3991
  %v4302 = vsel %vm1584, %v4005, %v4301
  %v4303 = vsel %vm1587, %v4012, %v4302
  %v4304 = vsel %vm1590, %v4019, %v4303
  %v4305 = vsel %vm1593, %v4026, %v4304
  %v4306 = vsel %vm1596, %v4033, %v4305
  %v4307 = vsel %vm1599, %v4040, %v4306
  %v4308 = vsel %vm1581, %v4054, %v4047
  %v4309 = vsel %vm1584, %v4061, %v4308
  %v4310 = vsel %vm1587, %v4068, %v4309
  %v4311 = vsel %vm1590, %v4075, %v4310
  %v4312 = vsel %vm1593, %v4082, %v4311
  %v4313 = vsel %vm1596, %v4089, %v4312
  %v4314 = vsel %vm1599, %v4096, %v4313
  %v4315 = vsel %vm1581, %v4110, %v4103
  %v4316 = vsel %vm1584, %v4117, %v4315
  %v4317 = vsel %vm1587, %v4124, %v4316
  %v4318 = vsel %vm1590, %v4131, %v4317
  %v4319 = vsel %vm1593, %v4138, %v4318
  %v4320 = vsel %vm1596, %v4145, %v4319
  %v4321 = vsel %vm1599, %v4152, %v4320
  %v4322 = vsel %vm1581, %v4166, %v4159
  %v4323 = vsel %vm1584, %v4173, %v4322
  %v4324 = vsel %vm1587, %v4180, %v4323
  %v4325 = vsel %vm1590, %v4187, %v4324
  %v4326 = vsel %vm1593, %v4194, %v4325
  %v4327 = vsel %vm1596, %v4201, %v4326
  %v4328 = vsel %vm1599, %v4208, %v4327
  %4337 = vst.msk [vmem:[%s10] sm:$0xff] %vm869, %v4279
  %4338 = vst.msk [vmem:[%s10 + $0x8] sm:$0xff] %vm869, %v4286
  %4339 = vst.msk [vmem:[%s10 + $0x10] sm:$0xff] %vm869, %v4293
  %4340 = vst.msk [vmem:[%s10 + $0x18] sm:$0xff] %vm869, %v4300
  %4341 = vst.msk [vmem:[%s10 + $0x20] sm:$0xff] %vm869, %v4307
  %4342 = vst.msk [vmem:[%s10 + $0x28] sm:$0xff] %vm869, %v4314
  %4343 = vst.msk [vmem:[%s10 + $0x30] sm:$0xff] %vm869, %v4321
  %4344 = vst.msk [vmem:[%s10 + $0x38] sm:$0xff] %vm869, %v4328
  // Predicated region
  $region42: #{tpu_custom_call.1} parent=0 // pred_check
    _
  $region43: #{tpu_custom_call.1} parent=0 // pred_check_branch
    %4346 = sbr.rel (0) target = $region45
  $region44: #{tpu_custom_call.1} parent=0 // pred_region
    _
  $region45: #{tpu_custom_call.1} parent=0 // pred_fallthru
    _
  // Predicated region
  $region46: #{tpu_custom_call.1} parent=0 // pred_check
    _
  $region47: #{tpu_custom_call.1} parent=0 // pred_check_branch
    %4348 = sbr.rel (0) target = $region49
  $region48: #{tpu_custom_call.1} parent=0 // pred_region
    _
  $region49: #{tpu_custom_call.1} parent=0 // pred_fallthru
    _

</llo_original>
